<compile_context>
chip_gen: v7x
topology: tpu7x:2x2x1
jax: 0.10.0
libtpu: 0.0.40
codegen_flags: <defaults>
</compile_context>

<pallas_src>
import jax
import jax.numpy as jnp
import numpy as np
from jax.experimental import pallas as pl
from jax.experimental.pallas import tpu as pltpu

EPS = 1e-5
GROUPS = 4
KH = KW = 3
STRIDE = 2
PAD = 1


def _round_up(v, m):
    return ((v + m - 1) // m) * m


def _make_fused_kernel(N, Ho, Wo, Wev_p, Wod_p, cin_g, cout_g):
    inv_count = 1.0 / float(N * Ho * Wo)

    def kernel(ee_ref, eo_ref, oe_ref, oo_ref, w_ref, g_ref, b_ref, o_ref,
               acc0_ref, acc1_ref, acc2_ref):
        # Stride-2 3x3 conv as 9 polyphase taps:
        #   kh=0 -> even rows [0:Ho]    kw=0 -> even cols, out col = phase col
        #   kh=1 -> odd  rows [0:Ho]    kw=1 -> odd  cols, out col = phase col
        #   kh=2 -> even rows [1:Ho+1]  kw=2 -> even cols, out col = phase col - 1
        # Taps with the same kw accumulate on that phase's column grid.

        def tap(x_ref, rh, wpad, kh, kw):
            lhs = x_ref[0, :, rh:rh + Ho, :, :]            # (N, Ho, wpad, cin) bf16
            lhs = lhs.reshape(N * Ho * wpad, cin_g)        # wpad % 16 == 0 -> free
            res = jnp.dot(lhs, w_ref[0, kh, kw],
                          preferred_element_type=jnp.float32)
            return res.reshape(N, Ho, wpad, cout_g)

        # kw = 0 taps -> acc0 (even-col grid)
        acc0_ref[...] = tap(ee_ref, 0, Wev_p, 0, 0)
        acc0_ref[...] += tap(oe_ref, 0, Wev_p, 1, 0)
        acc0_ref[...] += tap(ee_ref, 1, Wev_p, 2, 0)
        # kw = 1 taps -> acc1 (odd-col grid)
        acc1_ref[...] = tap(eo_ref, 0, Wod_p, 0, 1)
        acc1_ref[...] += tap(oo_ref, 0, Wod_p, 1, 1)
        acc1_ref[...] += tap(eo_ref, 1, Wod_p, 2, 1)
        # kw = 2 taps -> acc2 (even-col grid, read shifted by one column below)
        acc2_ref[...] = tap(ee_ref, 0, Wev_p, 0, 2)
        acc2_ref[...] += tap(oe_ref, 0, Wev_p, 1, 2)
        acc2_ref[...] += tap(ee_ref, 1, Wev_p, 2, 2)

        conv = (acc0_ref[:, :, 0:Wo, :]
                + acc2_ref[:, :, 1:1 + Wo, :]
                + acc1_ref[:, :, 0:Wo, :])                 # (N, Ho, Wo, cout) f32

        # BatchNorm training-mode statistics over (N, Ho, Wo), per channel.
        s = jnp.sum(conv, axis=(0, 1, 2), keepdims=True)
        ss = jnp.sum(conv * conv, axis=(0, 1, 2), keepdims=True)
        mean = s * inv_count
        var = jnp.maximum(ss * inv_count - mean * mean, 0.0)   # biased variance
        inv_std = jax.lax.rsqrt(var + EPS)                     # EUP slot
        scale = g_ref[0].reshape(1, 1, 1, cout_g) * inv_std
        shift = b_ref[0].reshape(1, 1, 1, cout_g) - mean * scale

        y = jnp.maximum(conv * scale + shift, 0.0)             # BN apply + relu8
        o_ref[0] = y.astype(o_ref.dtype)

    return kernel


def relu_conv_bn_relu(x, w, gamma, beta):
    """x: (N, C, H, W) f32; w: (Cout, C//G, 3, 3) f32; gamma/beta: (Cout,) f32."""
    N, C, H, W = x.shape
    Cout = w.shape[0]
    G = GROUPS
    cin_g = C // G
    cout_g = Cout // G
    Ho = (H + 2 * PAD - KH) // STRIDE + 1
    Wo = (W + 2 * PAD - KW) // STRIDE + 1
    He = Ho + 1                      # even-row phase rows needed (indices 0..Ho)
    Wev = Wo + 1                     # even-col phase cols needed (indices 0..Wo)
    Wev_p = _round_up(Wev, 16)       # multiple of 16 keeps bf16 reshapes layout-free
    Wod_p = _round_up(Wo, 16)

    # --- glue: leading ReLU + bf16 cast once per element, pad, polyphase split
    x_nhwc = jnp.transpose(x, (0, 2, 3, 1))
    x_nhwc = jnp.maximum(x_nhwc, 0.0).astype(jnp.bfloat16)          # relu7
    xp = jnp.pad(x_nhwc, ((0, 0), (PAD, PAD), (PAD, PAD), (0, 0)))

    x_ee = xp[:, 0:2 * Ho + 1:2, 0:2 * Wo + 1:2, :]    # (N, He, Wev, C)
    x_eo = xp[:, 0:2 * Ho + 1:2, 1:2 * Wo:2, :]        # (N, He, Wo,  C)
    x_oe = xp[:, 1:2 * Ho:2, 0:2 * Wo + 1:2, :]        # (N, Ho, Wev, C)
    x_oo = xp[:, 1:2 * Ho:2, 1:2 * Wo:2, :]            # (N, Ho, Wo,  C)

    def to_groups(a, wpad):
        n, hh, wh, _ = a.shape
        a = a.reshape(n, hh, wh, G, cin_g)
        a = jnp.transpose(a, (3, 0, 1, 2, 4))          # (G, N, hh, wh, cin_g)
        return jnp.pad(a, ((0, 0), (0, 0), (0, 0), (0, wpad - wh), (0, 0)))

    p_ee = to_groups(x_ee, Wev_p)
    p_eo = to_groups(x_eo, Wod_p)
    p_oe = to_groups(x_oe, Wev_p)
    p_oo = to_groups(x_oo, Wod_p)

    wk = w.reshape(G, cout_g, cin_g, KH, KW)
    wk = jnp.transpose(wk, (0, 3, 4, 2, 1)).astype(jnp.bfloat16)   # (G,3,3,cin,cout)
    gamma_g = gamma.reshape(G, 1, cout_g).astype(jnp.float32)
    beta_g = beta.reshape(G, 1, cout_g).astype(jnp.float32)

    kernel = _make_fused_kernel(N, Ho, Wo, Wev_p, Wod_p, cin_g, cout_g)

    out = pl.pallas_call(
        kernel,
        out_shape=jax.ShapeDtypeStruct((G, N, Ho, Wo, cout_g), jnp.float32),
        grid=(G,),
        in_specs=[
            pl.BlockSpec((1, N, He, Wev_p, cin_g), lambda g: (g, 0, 0, 0, 0)),
            pl.BlockSpec((1, N, He, Wod_p, cin_g), lambda g: (g, 0, 0, 0, 0)),
            pl.BlockSpec((1, N, Ho, Wev_p, cin_g), lambda g: (g, 0, 0, 0, 0)),
            pl.BlockSpec((1, N, Ho, Wod_p, cin_g), lambda g: (g, 0, 0, 0, 0)),
            pl.BlockSpec((1, KH, KW, cin_g, cout_g), lambda g: (g, 0, 0, 0, 0)),
            pl.BlockSpec((1, 1, cout_g), lambda g: (g, 0, 0)),
            pl.BlockSpec((1, 1, cout_g), lambda g: (g, 0, 0)),
        ],
        out_specs=pl.BlockSpec((1, N, Ho, Wo, cout_g), lambda g: (g, 0, 0, 0, 0)),
        scratch_shapes=[
            pltpu.VMEM((N, Ho, Wev_p, cout_g), jnp.float32),   # acc0 (kw=0)
            pltpu.VMEM((N, Ho, Wod_p, cout_g), jnp.float32),   # acc1 (kw=1)
            pltpu.VMEM((N, Ho, Wev_p, cout_g), jnp.float32),   # acc2 (kw=2)
        ],
        compiler_params=pltpu.CompilerParams(
            dimension_semantics=("parallel",),
            vmem_limit_bytes=32 * 1024 * 1024,
        ),
    )(p_ee, p_eo, p_oe, p_oo, wk, gamma_g, beta_g)

    # (G, N, Ho, Wo, cout_g) -> (N, Cout, Ho, Wo)
    out = jnp.transpose(out, (1, 0, 4, 2, 3)).reshape(N, Cout, Ho, Wo)
    return out


def _reference(x, w, gamma, beta):
    xr = jnp.maximum(x, 0.0)
    y = jax.lax.conv_general_dilated(
        xr, w, window_strides=(STRIDE, STRIDE), padding=((PAD, PAD), (PAD, PAD)),
        dimension_numbers=("NCHW", "OIHW", "NCHW"), feature_group_count=GROUPS)
    mean = jnp.mean(y, axis=(0, 2, 3), keepdims=True)
    var = jnp.mean((y - mean) ** 2, axis=(0, 2, 3), keepdims=True)
    yn = (y - mean) * jax.lax.rsqrt(var + EPS)
    yn = yn * gamma.reshape(1, -1, 1, 1) + beta.reshape(1, -1, 1, 1)
    return jnp.maximum(yn, 0.0)


if __name__ == "__main__":
    # Channel counts fixed by the module (512 in / 512 out, groups=4);
    # spatial size reduced from 56x56 to 16x16 to keep the example small.
    N, C, H, W = 1, 512, 16, 16
    Cout = 512
    cin_g = C // GROUPS

    key = jax.random.PRNGKey(0)
    kx, kw, kg, kb = jax.random.split(key, 4)
    x = jax.random.normal(kx, (N, C, H, W), dtype=jnp.float32)
    conv_w = jax.random.normal(kw, (Cout, cin_g, KH, KW), dtype=jnp.float32) * 0.05
    bn_gamma = 1.0 + 0.1 * jax.random.normal(kg, (Cout,), dtype=jnp.float32)
    bn_beta = 0.1 * jax.random.normal(kb, (Cout,), dtype=jnp.float32)

    out = jax.jit(relu_conv_bn_relu)(x, conv_w, bn_gamma, bn_beta)
    out = jax.block_until_ready(out)

    ref = jax.block_until_ready(_reference(x, conv_w, bn_gamma, bn_beta))
    # bf16 activations/weights with f32 accumulation -> looser tolerance than f32.
    np.testing.assert_allclose(np.asarray(out), np.asarray(ref), rtol=2e-2, atol=2e-2)

    print("KERNEL_OK")
</pallas_src>

<mosaic_0001>
module attributes {stable_mosaic.version = 11 : i64} {
  func.func @kernel(%arg0: i32, %arg1: memref<1x1x9x16x128xbf16, #tpu.memory_space<vmem>>, %arg2: memref<1x1x9x16x128xbf16, #tpu.memory_space<vmem>>, %arg3: memref<1x1x8x16x128xbf16, #tpu.memory_space<vmem>>, %arg4: memref<1x1x8x16x128xbf16, #tpu.memory_space<vmem>>, %arg5: memref<1x3x3x128x128xbf16, #tpu.memory_space<vmem>>, %arg6: memref<1x1x128xf32, #tpu.memory_space<vmem>>, %arg7: memref<1x1x128xf32, #tpu.memory_space<vmem>>, %arg8: memref<1x1x8x8x128xf32, #tpu.memory_space<vmem>>, %arg9: memref<1x8x16x128xf32, #tpu.memory_space<vmem>>, %arg10: memref<1x8x16x128xf32, #tpu.memory_space<vmem>>, %arg11: memref<1x8x16x128xf32, #tpu.memory_space<vmem>>) attributes {dimension_semantics = [#tpu.dimension_semantics<parallel>], iteration_bounds = array<i64: 4>, scalar_prefetch = 0 : i64, scratch_operands = 3 : i64, tpu.core_type = #tpu.core_type<tc>, window_params = [{transform_indices = @transform_0, window_bounds = array<i64: 1, 1, 9, 16, 128>}, {transform_indices = @transform_1, window_bounds = array<i64: 1, 1, 9, 16, 128>}, {transform_indices = @transform_2, window_bounds = array<i64: 1, 1, 8, 16, 128>}, {transform_indices = @transform_3, window_bounds = array<i64: 1, 1, 8, 16, 128>}, {transform_indices = @transform_4, window_bounds = array<i64: 1, 3, 3, 128, 128>}, {transform_indices = @transform_5, window_bounds = array<i64: 1, 1, 128>}, {transform_indices = @transform_6, window_bounds = array<i64: 1, 1, 128>}, {transform_indices = @transform_7, window_bounds = array<i64: 1, 1, 8, 8, 128>}]} {
    %c0 = arith.constant 0 : index
    %c0_0 = arith.constant 0 : index
    %c0_1 = arith.constant 0 : index
    %c0_2 = arith.constant 0 : index
    %c0_3 = arith.constant 0 : index
    %0 = vector.load %arg1[%c0, %c0_0, %c0_1, %c0_2, %c0_3] : memref<1x1x9x16x128xbf16, #tpu.memory_space<vmem>>, vector<1x1x8x16x128xbf16>
    %1 = vector.shape_cast %0 : vector<1x1x8x16x128xbf16> to vector<1x8x16x128xbf16>
    %2 = vector.shape_cast %1 : vector<1x8x16x128xbf16> to vector<128x128xbf16>
    %c0_4 = arith.constant 0 : index
    %c0_5 = arith.constant 0 : index
    %c0_6 = arith.constant 0 : index
    %c0_7 = arith.constant 0 : index
    %c0_8 = arith.constant 0 : index
    %3 = vector.load %arg5[%c0_4, %c0_5, %c0_6, %c0_7, %c0_8] : memref<1x3x3x128x128xbf16, #tpu.memory_space<vmem>>, vector<1x1x1x128x128xbf16>
    %4 = vector.shape_cast %3 : vector<1x1x1x128x128xbf16> to vector<128x128xbf16>
    %cst = arith.constant dense<0.000000e+00> : vector<128x128xf32>
    %5 = tpu.matmul %2, %4, %cst {dimension_numbers = #tpu.dot_dimension_numbers<[1], [0], [0], [1], [0, 0, 1, 1], [], []>} : vector<128x128xbf16>, vector<128x128xbf16>, vector<128x128xf32> -> vector<128x128xf32>
    %6 = vector.shape_cast %5 : vector<128x128xf32> to vector<1x8x16x128xf32>
    %c0_9 = arith.constant 0 : index
    %c0_10 = arith.constant 0 : index
    %c0_11 = arith.constant 0 : index
    %c0_12 = arith.constant 0 : index
    %7 = vector.load %arg9[%c0_9, %c0_10, %c0_11, %c0_12] : memref<1x8x16x128xf32, #tpu.memory_space<vmem>>, vector<1x8x16x128xf32>
    tpu.vector_store %arg9[%c0_9, %c0_10, %c0_11, %c0_12], %6 {strides = array<i32>} : memref<1x8x16x128xf32, #tpu.memory_space<vmem>>, vector<1x8x16x128xf32>,
    %c0_13 = arith.constant 0 : index
    %c0_14 = arith.constant 0 : index
    %c0_15 = arith.constant 0 : index
    %c0_16 = arith.constant 0 : index
    %8 = vector.load %arg9[%c0_13, %c0_14, %c0_15, %c0_16] : memref<1x8x16x128xf32, #tpu.memory_space<vmem>>, vector<1x8x16x128xf32>
    %c0_17 = arith.constant 0 : index
    %c0_18 = arith.constant 0 : index
    %c0_19 = arith.constant 0 : index
    %c0_20 = arith.constant 0 : index
    %c0_21 = arith.constant 0 : index
    %9 = vector.load %arg3[%c0_17, %c0_18, %c0_19, %c0_20, %c0_21] : memref<1x1x8x16x128xbf16, #tpu.memory_space<vmem>>, vector<1x1x8x16x128xbf16>
    %10 = vector.shape_cast %9 : vector<1x1x8x16x128xbf16> to vector<1x8x16x128xbf16>
    %11 = vector.shape_cast %10 : vector<1x8x16x128xbf16> to vector<128x128xbf16>
    %c0_22 = arith.constant 0 : index
    %c1 = arith.constant 1 : index
    %c0_23 = arith.constant 0 : index
    %c0_24 = arith.constant 0 : index
    %c0_25 = arith.constant 0 : index
    %12 = vector.load %arg5[%c0_22, %c1, %c0_23, %c0_24, %c0_25] : memref<1x3x3x128x128xbf16, #tpu.memory_space<vmem>>, vector<1x1x1x128x128xbf16>
    %13 = vector.shape_cast %12 : vector<1x1x1x128x128xbf16> to vector<128x128xbf16>
    %cst_26 = arith.constant dense<0.000000e+00> : vector<128x128xf32>
    %14 = tpu.matmul %11, %13, %cst_26 {dimension_numbers = #tpu.dot_dimension_numbers<[1], [0], [0], [1], [0, 0, 1, 1], [], []>} : vector<128x128xbf16>, vector<128x128xbf16>, vector<128x128xf32> -> vector<128x128xf32>
    %15 = vector.shape_cast %14 : vector<128x128xf32> to vector<1x8x16x128xf32>
    %16 = arith.addf %8, %15 : vector<1x8x16x128xf32>
    %c0_27 = arith.constant 0 : index
    %c0_28 = arith.constant 0 : index
    %c0_29 = arith.constant 0 : index
    %c0_30 = arith.constant 0 : index
    %17 = vector.load %arg9[%c0_27, %c0_28, %c0_29, %c0_30] : memref<1x8x16x128xf32, #tpu.memory_space<vmem>>, vector<1x8x16x128xf32>
    tpu.vector_store %arg9[%c0_27, %c0_28, %c0_29, %c0_30], %16 {strides = array<i32>} : memref<1x8x16x128xf32, #tpu.memory_space<vmem>>, vector<1x8x16x128xf32>,
    %c0_31 = arith.constant 0 : index
    %c0_32 = arith.constant 0 : index
    %c0_33 = arith.constant 0 : index
    %c0_34 = arith.constant 0 : index
    %18 = vector.load %arg9[%c0_31, %c0_32, %c0_33, %c0_34] : memref<1x8x16x128xf32, #tpu.memory_space<vmem>>, vector<1x8x16x128xf32>
    %c0_35 = arith.constant 0 : index
    %c0_36 = arith.constant 0 : index
    %c1_37 = arith.constant 1 : index
    %c0_38 = arith.constant 0 : index
    %c0_39 = arith.constant 0 : index
    %19 = vector.load %arg1[%c0_35, %c0_36, %c1_37, %c0_38, %c0_39] : memref<1x1x9x16x128xbf16, #tpu.memory_space<vmem>>, vector<1x1x8x16x128xbf16>
    %20 = vector.shape_cast %19 : vector<1x1x8x16x128xbf16> to vector<1x8x16x128xbf16>
    %21 = vector.shape_cast %20 : vector<1x8x16x128xbf16> to vector<128x128xbf16>
    %c0_40 = arith.constant 0 : index
    %c2 = arith.constant 2 : index
    %c0_41 = arith.constant 0 : index
    %c0_42 = arith.constant 0 : index
    %c0_43 = arith.constant 0 : index
    %22 = vector.load %arg5[%c0_40, %c2, %c0_41, %c0_42, %c0_43] : memref<1x3x3x128x128xbf16, #tpu.memory_space<vmem>>, vector<1x1x1x128x128xbf16>
    %23 = vector.shape_cast %22 : vector<1x1x1x128x128xbf16> to vector<128x128xbf16>
    %cst_44 = arith.constant dense<0.000000e+00> : vector<128x128xf32>
    %24 = tpu.matmul %21, %23, %cst_44 {dimension_numbers = #tpu.dot_dimension_numbers<[1], [0], [0], [1], [0, 0, 1, 1], [], []>} : vector<128x128xbf16>, vector<128x128xbf16>, vector<128x128xf32> -> vector<128x128xf32>
    %25 = vector.shape_cast %24 : vector<128x128xf32> to vector<1x8x16x128xf32>
    %26 = arith.addf %18, %25 : vector<1x8x16x128xf32>
    %c0_45 = arith.constant 0 : index
    %c0_46 = arith.constant 0 : index
    %c0_47 = arith.constant 0 : index
    %c0_48 = arith.constant 0 : index
    %27 = vector.load %arg9[%c0_45, %c0_46, %c0_47, %c0_48] : memref<1x8x16x128xf32, #tpu.memory_space<vmem>>, vector<1x8x16x128xf32>
    tpu.vector_store %arg9[%c0_45, %c0_46, %c0_47, %c0_48], %26 {strides = array<i32>} : memref<1x8x16x128xf32, #tpu.memory_space<vmem>>, vector<1x8x16x128xf32>,
    %c0_49 = arith.constant 0 : index
    %c0_50 = arith.constant 0 : index
    %c0_51 = arith.constant 0 : index
    %c0_52 = arith.constant 0 : index
    %c0_53 = arith.constant 0 : index
    %28 = vector.load %arg2[%c0_49, %c0_50, %c0_51, %c0_52, %c0_53] : memref<1x1x9x16x128xbf16, #tpu.memory_space<vmem>>, vector<1x1x8x16x128xbf16>
    %29 = vector.shape_cast %28 : vector<1x1x8x16x128xbf16> to vector<1x8x16x128xbf16>
    %30 = vector.shape_cast %29 : vector<1x8x16x128xbf16> to vector<128x128xbf16>
    %c0_54 = arith.constant 0 : index
    %c0_55 = arith.constant 0 : index
    %c1_56 = arith.constant 1 : index
    %c0_57 = arith.constant 0 : index
    %c0_58 = arith.constant 0 : index
    %31 = vector.load %arg5[%c0_54, %c0_55, %c1_56, %c0_57, %c0_58] : memref<1x3x3x128x128xbf16, #tpu.memory_space<vmem>>, vector<1x1x1x128x128xbf16>
    %32 = vector.shape_cast %31 : vector<1x1x1x128x128xbf16> to vector<128x128xbf16>
    %cst_59 = arith.constant dense<0.000000e+00> : vector<128x128xf32>
    %33 = tpu.matmul %30, %32, %cst_59 {dimension_numbers = #tpu.dot_dimension_numbers<[1], [0], [0], [1], [0, 0, 1, 1], [], []>} : vector<128x128xbf16>, vector<128x128xbf16>, vector<128x128xf32> -> vector<128x128xf32>
    %34 = vector.shape_cast %33 : vector<128x128xf32> to vector<1x8x16x128xf32>
    %c0_60 = arith.constant 0 : index
    %c0_61 = arith.constant 0 : index
    %c0_62 = arith.constant 0 : index
    %c0_63 = arith.constant 0 : index
    %35 = vector.load %arg10[%c0_60, %c0_61, %c0_62, %c0_63] : memref<1x8x16x128xf32, #tpu.memory_space<vmem>>, vector<1x8x16x128xf32>
    tpu.vector_store %arg10[%c0_60, %c0_61, %c0_62, %c0_63], %34 {strides = array<i32>} : memref<1x8x16x128xf32, #tpu.memory_space<vmem>>, vector<1x8x16x128xf32>,
    %c0_64 = arith.constant 0 : index
    %c0_65 = arith.constant 0 : index
    %c0_66 = arith.constant 0 : index
    %c0_67 = arith.constant 0 : index
    %36 = vector.load %arg10[%c0_64, %c0_65, %c0_66, %c0_67] : memref<1x8x16x128xf32, #tpu.memory_space<vmem>>, vector<1x8x16x128xf32>
    %c0_68 = arith.constant 0 : index
    %c0_69 = arith.constant 0 : index
    %c0_70 = arith.constant 0 : index
    %c0_71 = arith.constant 0 : index
    %c0_72 = arith.constant 0 : index
    %37 = vector.load %arg4[%c0_68, %c0_69, %c0_70, %c0_71, %c0_72] : memref<1x1x8x16x128xbf16, #tpu.memory_space<vmem>>, vector<1x1x8x16x128xbf16>
    %38 = vector.shape_cast %37 : vector<1x1x8x16x128xbf16> to vector<1x8x16x128xbf16>
    %39 = vector.shape_cast %38 : vector<1x8x16x128xbf16> to vector<128x128xbf16>
    %c0_73 = arith.constant 0 : index
    %c1_74 = arith.constant 1 : index
    %c1_75 = arith.constant 1 : index
    %c0_76 = arith.constant 0 : index
    %c0_77 = arith.constant 0 : index
    %40 = vector.load %arg5[%c0_73, %c1_74, %c1_75, %c0_76, %c0_77] : memref<1x3x3x128x128xbf16, #tpu.memory_space<vmem>>, vector<1x1x1x128x128xbf16>
    %41 = vector.shape_cast %40 : vector<1x1x1x128x128xbf16> to vector<128x128xbf16>
    %cst_78 = arith.constant dense<0.000000e+00> : vector<128x128xf32>
    %42 = tpu.matmul %39, %41, %cst_78 {dimension_numbers = #tpu.dot_dimension_numbers<[1], [0], [0], [1], [0, 0, 1, 1], [], []>} : vector<128x128xbf16>, vector<128x128xbf16>, vector<128x128xf32> -> vector<128x128xf32>
    %43 = vector.shape_cast %42 : vector<128x128xf32> to vector<1x8x16x128xf32>
    %44 = arith.addf %36, %43 : vector<1x8x16x128xf32>
    %c0_79 = arith.constant 0 : index
    %c0_80 = arith.constant 0 : index
    %c0_81 = arith.constant 0 : index
    %c0_82 = arith.constant 0 : index
    %45 = vector.load %arg10[%c0_79, %c0_80, %c0_81, %c0_82] : memref<1x8x16x128xf32, #tpu.memory_space<vmem>>, vector<1x8x16x128xf32>
    tpu.vector_store %arg10[%c0_79, %c0_80, %c0_81, %c0_82], %44 {strides = array<i32>} : memref<1x8x16x128xf32, #tpu.memory_space<vmem>>, vector<1x8x16x128xf32>,
    %c0_83 = arith.constant 0 : index
    %c0_84 = arith.constant 0 : index
    %c0_85 = arith.constant 0 : index
    %c0_86 = arith.constant 0 : index
    %46 = vector.load %arg10[%c0_83, %c0_84, %c0_85, %c0_86] : memref<1x8x16x128xf32, #tpu.memory_space<vmem>>, vector<1x8x16x128xf32>
    %c0_87 = arith.constant 0 : index
    %c0_88 = arith.constant 0 : index
    %c1_89 = arith.constant 1 : index
    %c0_90 = arith.constant 0 : index
    %c0_91 = arith.constant 0 : index
    %47 = vector.load %arg2[%c0_87, %c0_88, %c1_89, %c0_90, %c0_91] : memref<1x1x9x16x128xbf16, #tpu.memory_space<vmem>>, vector<1x1x8x16x128xbf16>
    %48 = vector.shape_cast %47 : vector<1x1x8x16x128xbf16> to vector<1x8x16x128xbf16>
    %49 = vector.shape_cast %48 : vector<1x8x16x128xbf16> to vector<128x128xbf16>
    %c0_92 = arith.constant 0 : index
    %c2_93 = arith.constant 2 : index
    %c1_94 = arith.constant 1 : index
    %c0_95 = arith.constant 0 : index
    %c0_96 = arith.constant 0 : index
    %50 = vector.load %arg5[%c0_92, %c2_93, %c1_94, %c0_95, %c0_96] : memref<1x3x3x128x128xbf16, #tpu.memory_space<vmem>>, vector<1x1x1x128x128xbf16>
    %51 = vector.shape_cast %50 : vector<1x1x1x128x128xbf16> to vector<128x128xbf16>
    %cst_97 = arith.constant dense<0.000000e+00> : vector<128x128xf32>
    %52 = tpu.matmul %49, %51, %cst_97 {dimension_numbers = #tpu.dot_dimension_numbers<[1], [0], [0], [1], [0, 0, 1, 1], [], []>} : vector<128x128xbf16>, vector<128x128xbf16>, vector<128x128xf32> -> vector<128x128xf32>
    %53 = vector.shape_cast %52 : vector<128x128xf32> to vector<1x8x16x128xf32>
    %54 = arith.addf %46, %53 : vector<1x8x16x128xf32>
    %c0_98 = arith.constant 0 : index
    %c0_99 = arith.constant 0 : index
    %c0_100 = arith.constant 0 : index
    %c0_101 = arith.constant 0 : index
    %55 = vector.load %arg10[%c0_98, %c0_99, %c0_100, %c0_101] : memref<1x8x16x128xf32, #tpu.memory_space<vmem>>, vector<1x8x16x128xf32>
    tpu.vector_store %arg10[%c0_98, %c0_99, %c0_100, %c0_101], %54 {strides = array<i32>} : memref<1x8x16x128xf32, #tpu.memory_space<vmem>>, vector<1x8x16x128xf32>,
    %c0_102 = arith.constant 0 : index
    %c0_103 = arith.constant 0 : index
    %c0_104 = arith.constant 0 : index
    %c0_105 = arith.constant 0 : index
    %c0_106 = arith.constant 0 : index
    %56 = vector.load %arg1[%c0_102, %c0_103, %c0_104, %c0_105, %c0_106] : memref<1x1x9x16x128xbf16, #tpu.memory_space<vmem>>, vector<1x1x8x16x128xbf16>
    %57 = vector.shape_cast %56 : vector<1x1x8x16x128xbf16> to vector<1x8x16x128xbf16>
    %58 = vector.shape_cast %57 : vector<1x8x16x128xbf16> to vector<128x128xbf16>
    %c0_107 = arith.constant 0 : index
    %c0_108 = arith.constant 0 : index
    %c2_109 = arith.constant 2 : index
    %c0_110 = arith.constant 0 : index
    %c0_111 = arith.constant 0 : index
    %59 = vector.load %arg5[%c0_107, %c0_108, %c2_109, %c0_110, %c0_111] : memref<1x3x3x128x128xbf16, #tpu.memory_space<vmem>>, vector<1x1x1x128x128xbf16>
    %60 = vector.shape_cast %59 : vector<1x1x1x128x128xbf16> to vector<128x128xbf16>
    %cst_112 = arith.constant dense<0.000000e+00> : vector<128x128xf32>
    %61 = tpu.matmul %58, %60, %cst_112 {dimension_numbers = #tpu.dot_dimension_numbers<[1], [0], [0], [1], [0, 0, 1, 1], [], []>} : vector<128x128xbf16>, vector<128x128xbf16>, vector<128x128xf32> -> vector<128x128xf32>
    %62 = vector.shape_cast %61 : vector<128x128xf32> to vector<1x8x16x128xf32>
    %c0_113 = arith.constant 0 : index
    %c0_114 = arith.constant 0 : index
    %c0_115 = arith.constant 0 : index
    %c0_116 = arith.constant 0 : index
    %63 = vector.load %arg11[%c0_113, %c0_114, %c0_115, %c0_116] : memref<1x8x16x128xf32, #tpu.memory_space<vmem>>, vector<1x8x16x128xf32>
    tpu.vector_store %arg11[%c0_113, %c0_114, %c0_115, %c0_116], %62 {strides = array<i32>} : memref<1x8x16x128xf32, #tpu.memory_space<vmem>>, vector<1x8x16x128xf32>,
    %c0_117 = arith.constant 0 : index
    %c0_118 = arith.constant 0 : index
    %c0_119 = arith.constant 0 : index
    %c0_120 = arith.constant 0 : index
    %64 = vector.load %arg11[%c0_117, %c0_118, %c0_119, %c0_120] : memref<1x8x16x128xf32, #tpu.memory_space<vmem>>, vector<1x8x16x128xf32>
    %c0_121 = arith.constant 0 : index
    %c0_122 = arith.constant 0 : index
    %c0_123 = arith.constant 0 : index
    %c0_124 = arith.constant 0 : index
    %c0_125 = arith.constant 0 : index
    %65 = vector.load %arg3[%c0_121, %c0_122, %c0_123, %c0_124, %c0_125] : memref<1x1x8x16x128xbf16, #tpu.memory_space<vmem>>, vector<1x1x8x16x128xbf16>
    %66 = vector.shape_cast %65 : vector<1x1x8x16x128xbf16> to vector<1x8x16x128xbf16>
    %67 = vector.shape_cast %66 : vector<1x8x16x128xbf16> to vector<128x128xbf16>
    %c0_126 = arith.constant 0 : index
    %c1_127 = arith.constant 1 : index
    %c2_128 = arith.constant 2 : index
    %c0_129 = arith.constant 0 : index
    %c0_130 = arith.constant 0 : index
    %68 = vector.load %arg5[%c0_126, %c1_127, %c2_128, %c0_129, %c0_130] : memref<1x3x3x128x128xbf16, #tpu.memory_space<vmem>>, vector<1x1x1x128x128xbf16>
    %69 = vector.shape_cast %68 : vector<1x1x1x128x128xbf16> to vector<128x128xbf16>
    %cst_131 = arith.constant dense<0.000000e+00> : vector<128x128xf32>
    %70 = tpu.matmul %67, %69, %cst_131 {dimension_numbers = #tpu.dot_dimension_numbers<[1], [0], [0], [1], [0, 0, 1, 1], [], []>} : vector<128x128xbf16>, vector<128x128xbf16>, vector<128x128xf32> -> vector<128x128xf32>
    %71 = vector.shape_cast %70 : vector<128x128xf32> to vector<1x8x16x128xf32>
    %72 = arith.addf %64, %71 : vector<1x8x16x128xf32>
    %c0_132 = arith.constant 0 : index
    %c0_133 = arith.constant 0 : index
    %c0_134 = arith.constant 0 : index
    %c0_135 = arith.constant 0 : index
    %73 = vector.load %arg11[%c0_132, %c0_133, %c0_134, %c0_135] : memref<1x8x16x128xf32, #tpu.memory_space<vmem>>, vector<1x8x16x128xf32>
    tpu.vector_store %arg11[%c0_132, %c0_133, %c0_134, %c0_135], %72 {strides = array<i32>} : memref<1x8x16x128xf32, #tpu.memory_space<vmem>>, vector<1x8x16x128xf32>,
    %c0_136 = arith.constant 0 : index
    %c0_137 = arith.constant 0 : index
    %c0_138 = arith.constant 0 : index
    %c0_139 = arith.constant 0 : index
    %74 = vector.load %arg11[%c0_136, %c0_137, %c0_138, %c0_139] : memref<1x8x16x128xf32, #tpu.memory_space<vmem>>, vector<1x8x16x128xf32>
    %c0_140 = arith.constant 0 : index
    %c0_141 = arith.constant 0 : index
    %c1_142 = arith.constant 1 : index
    %c0_143 = arith.constant 0 : index
    %c0_144 = arith.constant 0 : index
    %75 = vector.load %arg1[%c0_140, %c0_141, %c1_142, %c0_143, %c0_144] : memref<1x1x9x16x128xbf16, #tpu.memory_space<vmem>>, vector<1x1x8x16x128xbf16>
    %76 = vector.shape_cast %75 : vector<1x1x8x16x128xbf16> to vector<1x8x16x128xbf16>
    %77 = vector.shape_cast %76 : vector<1x8x16x128xbf16> to vector<128x128xbf16>
    %c0_145 = arith.constant 0 : index
    %c2_146 = arith.constant 2 : index
    %c2_147 = arith.constant 2 : index
    %c0_148 = arith.constant 0 : index
    %c0_149 = arith.constant 0 : index
    %78 = vector.load %arg5[%c0_145, %c2_146, %c2_147, %c0_148, %c0_149] : memref<1x3x3x128x128xbf16, #tpu.memory_space<vmem>>, vector<1x1x1x128x128xbf16>
    %79 = vector.shape_cast %78 : vector<1x1x1x128x128xbf16> to vector<128x128xbf16>
    %cst_150 = arith.constant dense<0.000000e+00> : vector<128x128xf32>
    %80 = tpu.matmul %77, %79, %cst_150 {dimension_numbers = #tpu.dot_dimension_numbers<[1], [0], [0], [1], [0, 0, 1, 1], [], []>} : vector<128x128xbf16>, vector<128x128xbf16>, vector<128x128xf32> -> vector<128x128xf32>
    %81 = vector.shape_cast %80 : vector<128x128xf32> to vector<1x8x16x128xf32>
    %82 = arith.addf %74, %81 : vector<1x8x16x128xf32>
    %c0_151 = arith.constant 0 : index
    %c0_152 = arith.constant 0 : index
    %c0_153 = arith.constant 0 : index
    %c0_154 = arith.constant 0 : index
    %83 = vector.load %arg11[%c0_151, %c0_152, %c0_153, %c0_154] : memref<1x8x16x128xf32, #tpu.memory_space<vmem>>, vector<1x8x16x128xf32>
    tpu.vector_store %arg11[%c0_151, %c0_152, %c0_153, %c0_154], %82 {strides = array<i32>} : memref<1x8x16x128xf32, #tpu.memory_space<vmem>>, vector<1x8x16x128xf32>,
    %c0_155 = arith.constant 0 : index
    %c0_156 = arith.constant 0 : index
    %c0_157 = arith.constant 0 : index
    %c0_158 = arith.constant 0 : index
    %84 = vector.load %arg9[%c0_155, %c0_156, %c0_157, %c0_158] : memref<1x8x16x128xf32, #tpu.memory_space<vmem>>, vector<1x8x8x128xf32>
    %c0_159 = arith.constant 0 : index
    %c0_160 = arith.constant 0 : index
    %c1_161 = arith.constant 1 : index
    %c0_162 = arith.constant 0 : index
    %85 = vector.load %arg11[%c0_159, %c0_160, %c1_161, %c0_162] : memref<1x8x16x128xf32, #tpu.memory_space<vmem>>, vector<1x8x8x128xf32>
    %86 = arith.addf %84, %85 : vector<1x8x8x128xf32>
    %c0_163 = arith.constant 0 : index
    %c0_164 = arith.constant 0 : index
    %c0_165 = arith.constant 0 : index
    %c0_166 = arith.constant 0 : index
    %87 = vector.load %arg10[%c0_163, %c0_164, %c0_165, %c0_166] : memref<1x8x16x128xf32, #tpu.memory_space<vmem>>, vector<1x8x8x128xf32>
    %88 = arith.addf %86, %87 : vector<1x8x8x128xf32>
    %cst_167 = arith.constant dense<0.000000e+00> : vector<128xf32>
    %89 = vector.multi_reduction <add>, %88, %cst_167 [0, 1, 2] : vector<1x8x8x128xf32> to vector<128xf32>
    %90 = vector.shape_cast %89 : vector<128xf32> to vector<1x1x1x128xf32>
    %91 = arith.mulf %88, %88 : vector<1x8x8x128xf32>
    %cst_168 = arith.constant dense<0.000000e+00> : vector<128xf32>
    %92 = vector.multi_reduction <add>, %91, %cst_168 [0, 1, 2] : vector<1x8x8x128xf32> to vector<128xf32>
    %93 = vector.shape_cast %92 : vector<128xf32> to vector<1x1x1x128xf32>
    %cst_169 = arith.constant 1.562500e-02 : f32
    %94 = vector.broadcast %cst_169 : f32 to vector<1x1x1x128xf32>
    %95 = arith.mulf %90, %94 : vector<1x1x1x128xf32>
    %cst_170 = arith.constant 1.562500e-02 : f32
    %96 = vector.broadcast %cst_170 : f32 to vector<1x1x1x128xf32>
    %97 = arith.mulf %93, %96 : vector<1x1x1x128xf32>
    %98 = arith.mulf %95, %95 : vector<1x1x1x128xf32>
    %99 = arith.subf %97, %98 : vector<1x1x1x128xf32>
    %cst_171 = arith.constant 0.000000e+00 : f32
    %100 = vector.broadcast %cst_171 : f32 to vector<1x1x1x128xf32>
    %101 = arith.maximumf %99, %100 : vector<1x1x1x128xf32>
    %cst_172 = arith.constant 9.99999974E-6 : f32
    %102 = vector.broadcast %cst_172 : f32 to vector<1x1x1x128xf32>
    %103 = arith.addf %101, %102 : vector<1x1x1x128xf32>
    %104 = math.rsqrt %103 : vector<1x1x1x128xf32>
    %c0_173 = arith.constant 0 : index
    %c0_174 = arith.constant 0 : index
    %c0_175 = arith.constant 0 : index
    %105 = vector.load %arg6[%c0_173, %c0_174, %c0_175] : memref<1x1x128xf32, #tpu.memory_space<vmem>>, vector<1x1x128xf32>
    %106 = vector.shape_cast %105 : vector<1x1x128xf32> to vector<1x128xf32>
    %107 = vector.shape_cast %106 : vector<1x128xf32> to vector<1x1x1x128xf32>
    %108 = arith.mulf %107, %104 : vector<1x1x1x128xf32>
    %c0_176 = arith.constant 0 : index
    %c0_177 = arith.constant 0 : index
    %c0_178 = arith.constant 0 : index
    %109 = vector.load %arg7[%c0_176, %c0_177, %c0_178] : memref<1x1x128xf32, #tpu.memory_space<vmem>>, vector<1x1x128xf32>
    %110 = vector.shape_cast %109 : vector<1x1x128xf32> to vector<1x128xf32>
    %111 = vector.shape_cast %110 : vector<1x128xf32> to vector<1x1x1x128xf32>
    %112 = arith.mulf %95, %108 : vector<1x1x1x128xf32>
    %113 = arith.subf %111, %112 : vector<1x1x1x128xf32>
    %114 = vector.broadcast %108 : vector<1x1x1x128xf32> to vector<1x8x8x128xf32>
    %115 = arith.mulf %88, %114 : vector<1x8x8x128xf32>
    %116 = vector.broadcast %113 : vector<1x1x1x128xf32> to vector<1x8x8x128xf32>
    %117 = arith.addf %115, %116 : vector<1x8x8x128xf32>
    %cst_179 = arith.constant 0.000000e+00 : f32
    %118 = vector.broadcast %cst_179 : f32 to vector<1x8x8x128xf32>
    %119 = arith.maximumf %117, %118 : vector<1x8x8x128xf32>
    %c0_180 = arith.constant 0 : index
    %c0_181 = arith.constant 0 : index
    %c0_182 = arith.constant 0 : index
    %c0_183 = arith.constant 0 : index
    %c0_184 = arith.constant 0 : index
    %120 = vector.load %arg8[%c0_180, %c0_181, %c0_182, %c0_183, %c0_184] : memref<1x1x8x8x128xf32, #tpu.memory_space<vmem>>, vector<1x1x8x8x128xf32>
    %121 = vector.shape_cast %120 : vector<1x1x8x8x128xf32> to vector<1x8x8x128xf32>
    %122 = vector.shape_cast %119 : vector<1x8x8x128xf32> to vector<1x1x8x8x128xf32>
    tpu.vector_store %arg8[%c0_180, %c0_181, %c0_182, %c0_183, %c0_184], %122 {strides = array<i32>} : memref<1x1x8x8x128xf32, #tpu.memory_space<vmem>>, vector<1x1x8x8x128xf32>,
    return
  }
  func.func @transform_0(%arg0: i32) -> (i32, i32, i32, i32, i32) {
    %c0_i32 = arith.constant 0 : i32
    %c0_i32_0 = arith.constant 0 : i32
    %c0_i32_1 = arith.constant 0 : i32
    %c0_i32_2 = arith.constant 0 : i32
    %c0_i32_3 = arith.constant 0 : i32
    return %arg0, %c0_i32, %c0_i32_0, %c0_i32_1, %c0_i32_2 : i32, i32, i32, i32, i32
  }
  func.func @transform_1(%arg0: i32) -> (i32, i32, i32, i32, i32) {
    %c0_i32 = arith.constant 0 : i32
    %c0_i32_0 = arith.constant 0 : i32
    %c0_i32_1 = arith.constant 0 : i32
    %c0_i32_2 = arith.constant 0 : i32
    %c0_i32_3 = arith.constant 0 : i32
    return %arg0, %c0_i32, %c0_i32_0, %c0_i32_1, %c0_i32_2 : i32, i32, i32, i32, i32
  }
  func.func @transform_2(%arg0: i32) -> (i32, i32, i32, i32, i32) {
    %c0_i32 = arith.constant 0 : i32
    %c0_i32_0 = arith.constant 0 : i32
    %c0_i32_1 = arith.constant 0 : i32
    %c0_i32_2 = arith.constant 0 : i32
    %c0_i32_3 = arith.constant 0 : i32
    return %arg0, %c0_i32, %c0_i32_0, %c0_i32_1, %c0_i32_2 : i32, i32, i32, i32, i32
  }
  func.func @transform_3(%arg0: i32) -> (i32, i32, i32, i32, i32) {
    %c0_i32 = arith.constant 0 : i32
    %c0_i32_0 = arith.constant 0 : i32
    %c0_i32_1 = arith.constant 0 : i32
    %c0_i32_2 = arith.constant 0 : i32
    %c0_i32_3 = arith.constant 0 : i32
    return %arg0, %c0_i32, %c0_i32_0, %c0_i32_1, %c0_i32_2 : i32, i32, i32, i32, i32
  }
  func.func @transform_4(%arg0: i32) -> (i32, i32, i32, i32, i32) {
    %c0_i32 = arith.constant 0 : i32
    %c0_i32_0 = arith.constant 0 : i32
    %c0_i32_1 = arith.constant 0 : i32
    %c0_i32_2 = arith.constant 0 : i32
    %c0_i32_3 = arith.constant 0 : i32
    return %arg0, %c0_i32, %c0_i32_0, %c0_i32_1, %c0_i32_2 : i32, i32, i32, i32, i32
  }
  func.func @transform_5(%arg0: i32) -> (i32, i32, i32) {
    %c0_i32 = arith.constant 0 : i32
    %c0_i32_0 = arith.constant 0 : i32
    %c0_i32_1 = arith.constant 0 : i32
    return %arg0, %c0_i32, %c0_i32_0 : i32, i32, i32
  }
  func.func @transform_6(%arg0: i32) -> (i32, i32, i32) {
    %c0_i32 = arith.constant 0 : i32
    %c0_i32_0 = arith.constant 0 : i32
    %c0_i32_1 = arith.constant 0 : i32
    return %arg0, %c0_i32, %c0_i32_0 : i32, i32, i32
  }
  func.func @transform_7(%arg0: i32) -> (i32, i32, i32, i32, i32) {
    %c0_i32 = arith.constant 0 : i32
    %c0_i32_0 = arith.constant 0 : i32
    %c0_i32_1 = arith.constant 0 : i32
    %c0_i32_2 = arith.constant 0 : i32
    %c0_i32_3 = arith.constant 0 : i32
    return %arg0, %c0_i32, %c0_i32_0, %c0_i32_1, %c0_i32_2 : i32, i32, i32, i32, i32
  }
}

</mosaic_0001>

<llo_original>
// kernel: relu_conv_bn_relu.1
$region0: #{relu_conv_bn_relu.1}
  #allocation0 [shape = 'u32[]', space=smem, size = 0x4, offset = 0x4, fixed_abs, tag = 'smem constant byte address 0x4 - core index']
  #allocation1 [shape = 'u32[144,128]{1,0:T(1,128)}', space=vmem, size = 0x12000, scoped, tag = 'internal scratch']
  #allocation2 [shape = 'f32[1,8,16,128]{3,2,1,0:T(8,128)}', space=vmem, size = 0x10000, scoped, tag = 'scratch operand']
  #allocation3 [shape = 'f32[1,8,16,128]{3,2,1,0:T(8,128)}', space=vmem, size = 0x10000, scoped, tag = 'scratch operand']
  #allocation4 [shape = 'f32[1,8,16,128]{3,2,1,0:T(8,128)}', space=vmem, size = 0x10000, scoped, tag = 'scratch operand']
  %s0 = inlined_call_operand.vmem [shape: bf16[4,1,9,16,128], index: 0, kind: input, shape index: {}]
  %s1 = inlined_call_operand.vmem [shape: bf16[4,1,9,16,128], index: 1, kind: input, shape index: {}]
  %s2 = inlined_call_operand.vmem [shape: bf16[4,1,8,16,128], index: 2, kind: input, shape index: {}]
  %s3 = inlined_call_operand.vmem [shape: bf16[4,1,8,16,128], index: 3, kind: input, shape index: {}]
  %s4 = inlined_call_operand.vmem [shape: bf16[4,3,3,128,128], index: 4, kind: input, shape index: {}]
  %s5 = inlined_call_operand.vmem [shape: f32[4,1,128], index: 5, kind: input, shape index: {}]
  %s6 = inlined_call_operand.vmem [shape: f32[4,1,128], index: 6, kind: input, shape index: {}]
  %s7 = inlined_call_operand.vmem [shape: f32[4,1,8,8,128], index: 7, kind: output, shape index: {}]
  %s8 = sld [smem:[#allocation0]]
  $region61: #{relu_conv_bn_relu.1} parent=0
    _
  %s10 = ssub.s32 1, %s8
  %s11 = scalar_select 0, %s10, %s8
  loop: start=0, step=1, limit=6
  $region2: #{relu_conv_bn_relu.1} parent=0 // loop_pre_header
    _
  $region3: #{relu_conv_bn_relu.1} parent=0 // loop_header
    %s13 = sphi 0, %s17
    %p14 = scmp.ge.s32.totalorder %s13, 6
    %s23 = sphi 0, %s25
    %s26 = sphi 0, %s23
    %s27 = sphi 0, %s26
    %s43 = sphi 0, %s27
    %s49 = sphi 0, %s51
    %s52 = sphi 0, %s49
    %s53 = sphi 0, %s52
    %s69 = sphi 0, %s53
    %s75 = sphi 0, %s77
    %s78 = sphi 0, %s75
    %s79 = sphi 0, %s78
    %s95 = sphi 0, %s79
    %s101 = sphi 0, %s103
    %s104 = sphi 0, %s101
    %s105 = sphi 0, %s104
    %s121 = sphi 0, %s105
    %s127 = sphi 0, %s129
    %s130 = sphi 0, %s127
    %s131 = sphi 0, %s130
    %s147 = sphi 0, %s131
    %s153 = sphi 0, %s155
    %s156 = sphi 0, %s153
    %s157 = sphi 0, %s156
    %s173 = sphi 0, %s157
    %s179 = sphi 0, %s181
    %s182 = sphi 0, %s179
    %s183 = sphi 0, %s182
    %s199 = sphi 0, %s183
    %s205 = sphi 0, %s207
    %s208 = sphi 0, %s205
    %s209 = sphi 0, %s208
    %s225 = sphi 0, %s209
  $region4: #{relu_conv_bn_relu.1} parent=0 // loop_header_branch
    %16 = sbr.rel (%p14) target = $region8
  $region5: #{relu_conv_bn_relu.1} parent=0 // loop_body
    %s18 = ssub.s32 %s13, 1
    %s19 = ssub.s32 %s13, 2
    %s20 = sadd.s32 %s13, 1
    %s21 = ssub.s32 %s13, %s20
    %p22 = scmp.eq.s32.totalorder %s21, 0
    %s24 = sadd.s32 %s23, 1
    %s25 = scalar_select %p22, %s23, %s24
    %p28 = pneg %p22
    %p29 = scmp.eq.s32.totalorder %s13, 3
    %p30 = por %p28, %p29
    %p31 = scmp.ne.s32.totalorder %s23, %s26
    %p32 = scmp.eq.s32.totalorder %s13, 0
    %p33 = por %p31, %p32
    %p34 = scmp.ne.s32.totalorder %s23, %s26
    %p35 = scmp.eq.s32.totalorder %s18, 3
    %p36 = por %p34, %p35
    %p37 = scmp.ne.s32.totalorder %s26, %s27
    %p38 = scmp.eq.s32.totalorder %s18, 0
    %p39 = por %p37, %p38
    %p40 = scmp.ne.s32.totalorder %s26, %s27
    %p41 = scmp.eq.s32.totalorder %s19, 3
    %p42 = por %p40, %p41
    %p44 = scmp.ne.s32.totalorder %s27, %s43
    %p45 = scmp.eq.s32.totalorder %s19, 0
    %p46 = por %p44, %p45
    %s47 = ssub.s32 %s13, %s20
    %p48 = scmp.eq.s32.totalorder %s47, 0
    %s50 = sadd.s32 %s49, 1
    %s51 = scalar_select %p48, %s49, %s50
    %p54 = pneg %p48
    %p55 = scmp.eq.s32.totalorder %s13, 3
    %p56 = por %p54, %p55
    %p57 = scmp.ne.s32.totalorder %s49, %s52
    %p58 = scmp.eq.s32.totalorder %s13, 0
    %p59 = por %p57, %p58
    %p60 = scmp.ne.s32.totalorder %s49, %s52
    %p61 = scmp.eq.s32.totalorder %s18, 3
    %p62 = por %p60, %p61
    %p63 = scmp.ne.s32.totalorder %s52, %s53
    %p64 = scmp.eq.s32.totalorder %s18, 0
    %p65 = por %p63, %p64
    %p66 = scmp.ne.s32.totalorder %s52, %s53
    %p67 = scmp.eq.s32.totalorder %s19, 3
    %p68 = por %p66, %p67
    %p70 = scmp.ne.s32.totalorder %s53, %s69
    %p71 = scmp.eq.s32.totalorder %s19, 0
    %p72 = por %p70, %p71
    %s73 = ssub.s32 %s13, %s20
    %p74 = scmp.eq.s32.totalorder %s73, 0
    %s76 = sadd.s32 %s75, 1
    %s77 = scalar_select %p74, %s75, %s76
    %p80 = pneg %p74
    %p81 = scmp.eq.s32.totalorder %s13, 3
    %p82 = por %p80, %p81
    %p83 = scmp.ne.s32.totalorder %s75, %s78
    %p84 = scmp.eq.s32.totalorder %s13, 0
    %p85 = por %p83, %p84
    %p86 = scmp.ne.s32.totalorder %s75, %s78
    %p87 = scmp.eq.s32.totalorder %s18, 3
    %p88 = por %p86, %p87
    %p89 = scmp.ne.s32.totalorder %s78, %s79
    %p90 = scmp.eq.s32.totalorder %s18, 0
    %p91 = por %p89, %p90
    %p92 = scmp.ne.s32.totalorder %s78, %s79
    %p93 = scmp.eq.s32.totalorder %s19, 3
    %p94 = por %p92, %p93
    %p96 = scmp.ne.s32.totalorder %s79, %s95
    %p97 = scmp.eq.s32.totalorder %s19, 0
    %p98 = por %p96, %p97
    %s99 = ssub.s32 %s13, %s20
    %p100 = scmp.eq.s32.totalorder %s99, 0
    %s102 = sadd.s32 %s101, 1
    %s103 = scalar_select %p100, %s101, %s102
    %p106 = pneg %p100
    %p107 = scmp.eq.s32.totalorder %s13, 3
    %p108 = por %p106, %p107
    %p109 = scmp.ne.s32.totalorder %s101, %s104
    %p110 = scmp.eq.s32.totalorder %s13, 0
    %p111 = por %p109, %p110
    %p112 = scmp.ne.s32.totalorder %s101, %s104
    %p113 = scmp.eq.s32.totalorder %s18, 3
    %p114 = por %p112, %p113
    %p115 = scmp.ne.s32.totalorder %s104, %s105
    %p116 = scmp.eq.s32.totalorder %s18, 0
    %p117 = por %p115, %p116
    %p118 = scmp.ne.s32.totalorder %s104, %s105
    %p119 = scmp.eq.s32.totalorder %s19, 3
    %p120 = por %p118, %p119
    %p122 = scmp.ne.s32.totalorder %s105, %s121
    %p123 = scmp.eq.s32.totalorder %s19, 0
    %p124 = por %p122, %p123
    %s125 = ssub.s32 %s13, %s20
    %p126 = scmp.eq.s32.totalorder %s125, 0
    %s128 = sadd.s32 %s127, 1
    %s129 = scalar_select %p126, %s127, %s128
    %p132 = pneg %p126
    %p133 = scmp.eq.s32.totalorder %s13, 3
    %p134 = por %p132, %p133
    %p135 = scmp.ne.s32.totalorder %s127, %s130
    %p136 = scmp.eq.s32.totalorder %s13, 0
    %p137 = por %p135, %p136
    %p138 = scmp.ne.s32.totalorder %s127, %s130
    %p139 = scmp.eq.s32.totalorder %s18, 3
    %p140 = por %p138, %p139
    %p141 = scmp.ne.s32.totalorder %s130, %s131
    %p142 = scmp.eq.s32.totalorder %s18, 0
    %p143 = por %p141, %p142
    %p144 = scmp.ne.s32.totalorder %s130, %s131
    %p145 = scmp.eq.s32.totalorder %s19, 3
    %p146 = por %p144, %p145
    %p148 = scmp.ne.s32.totalorder %s131, %s147
    %p149 = scmp.eq.s32.totalorder %s19, 0
    %p150 = por %p148, %p149
    %s151 = ssub.s32 %s13, %s20
    %p152 = scmp.eq.s32.totalorder %s151, 0
    %s154 = sadd.s32 %s153, 1
    %s155 = scalar_select %p152, %s153, %s154
    %p158 = pneg %p152
    %p159 = scmp.eq.s32.totalorder %s13, 3
    %p160 = por %p158, %p159
    %p161 = scmp.ne.s32.totalorder %s153, %s156
    %p162 = scmp.eq.s32.totalorder %s13, 0
    %p163 = por %p161, %p162
    %p164 = scmp.ne.s32.totalorder %s153, %s156
    %p165 = scmp.eq.s32.totalorder %s18, 3
    %p166 = por %p164, %p165
    %p167 = scmp.ne.s32.totalorder %s156, %s157
    %p168 = scmp.eq.s32.totalorder %s18, 0
    %p169 = por %p167, %p168
    %p170 = scmp.ne.s32.totalorder %s156, %s157
    %p171 = scmp.eq.s32.totalorder %s19, 3
    %p172 = por %p170, %p171
    %p174 = scmp.ne.s32.totalorder %s157, %s173
    %p175 = scmp.eq.s32.totalorder %s19, 0
    %p176 = por %p174, %p175
    %s177 = ssub.s32 %s13, %s20
    %p178 = scmp.eq.s32.totalorder %s177, 0
    %s180 = sadd.s32 %s179, 1
    %s181 = scalar_select %p178, %s179, %s180
    %p184 = pneg %p178
    %p185 = scmp.eq.s32.totalorder %s13, 3
    %p186 = por %p184, %p185
    %p187 = scmp.ne.s32.totalorder %s179, %s182
    %p188 = scmp.eq.s32.totalorder %s13, 0
    %p189 = por %p187, %p188
    %p190 = scmp.ne.s32.totalorder %s179, %s182
    %p191 = scmp.eq.s32.totalorder %s18, 3
    %p192 = por %p190, %p191
    %p193 = scmp.ne.s32.totalorder %s182, %s183
    %p194 = scmp.eq.s32.totalorder %s18, 0
    %p195 = por %p193, %p194
    %p196 = scmp.ne.s32.totalorder %s182, %s183
    %p197 = scmp.eq.s32.totalorder %s19, 3
    %p198 = por %p196, %p197
    %p200 = scmp.ne.s32.totalorder %s183, %s199
    %p201 = scmp.eq.s32.totalorder %s19, 0
    %p202 = por %p200, %p201
    %s203 = ssub.s32 %s13, %s20
    %p204 = scmp.eq.s32.totalorder %s203, 0
    %s206 = sadd.s32 %s205, 1
    %s207 = scalar_select %p204, %s205, %s206
    %p210 = pneg %p204
    %p211 = scmp.eq.s32.totalorder %s13, 3
    %p212 = por %p210, %p211
    %p213 = scmp.ne.s32.totalorder %s205, %s208
    %p214 = scmp.eq.s32.totalorder %s13, 0
    %p215 = por %p213, %p214
    %p216 = scmp.ne.s32.totalorder %s205, %s208
    %p217 = scmp.eq.s32.totalorder %s18, 3
    %p218 = por %p216, %p217
    %p219 = scmp.ne.s32.totalorder %s208, %s209
    %p220 = scmp.eq.s32.totalorder %s18, 0
    %p221 = por %p219, %p220
    %p222 = scmp.ne.s32.totalorder %s208, %s209
    %p223 = scmp.eq.s32.totalorder %s19, 3
    %p224 = por %p222, %p223
    %p226 = scmp.ne.s32.totalorder %s209, %s225
    %p227 = scmp.eq.s32.totalorder %s19, 0
    %p228 = por %p226, %p227
    %p229 = scmp.le.s32.totalorder 1, %s13
    %p230 = scmp.lt.s32.totalorder %s13, 5
    %p231 = pnand %p229, %p230
    %p232 = pneg %p231
    // Predicated region
    $region9: #{relu_conv_bn_relu.1} parent=5 // pred_check
      _
    $region10: #{relu_conv_bn_relu.1} parent=5 // pred_check_branch
      %234 = sbr.rel (%p231) target = $region12
    $region11: #{relu_conv_bn_relu.1} parent=5 // pred_region
      %s235 = ssub.s32 %s13, 1
    $region12: #{relu_conv_bn_relu.1} parent=5 // pred_fallthru
      _
    %p236 = scmp.lt.s32.totalorder %s13, 4
    // Predicated region
    $region13: #{relu_conv_bn_relu.1} parent=5 // pred_check
      %p237 = pneg %p236
    $region14: #{relu_conv_bn_relu.1} parent=5 // pred_check_branch
      %239 = sbr.rel (%p237) target = $region16
    $region15: #{relu_conv_bn_relu.1} parent=5 // pred_region
      // Predicated region
      $region17: #{relu_conv_bn_relu.1} parent=15 // pred_check
        %p240 = pneg %p33
      $region18: #{relu_conv_bn_relu.1} parent=15 // pred_check_branch
        %242 = sbr.rel (%p240) target = $region20
      $region19: #{relu_conv_bn_relu.1} parent=15 // pred_region
        %p243 = scmp.lt.s32.totalorder %s13, 3
        %s244 = scalar_select %p243, %s13, 3
        %s245 = smul.addr %s244, 18
        %s246 = smul.addr %s245, 4
        %s247 = scalar_lea.vmem %s0, %s246
      $region20: #{relu_conv_bn_relu.1} parent=15 // pred_fallthru
        _
      // Predicated region
      $region21: #{relu_conv_bn_relu.1} parent=15 // pred_check
        %p248 = pneg %p59
      $region22: #{relu_conv_bn_relu.1} parent=15 // pred_check_branch
        %250 = sbr.rel (%p248) target = $region24
      $region23: #{relu_conv_bn_relu.1} parent=15 // pred_region
        %p251 = scmp.lt.s32.totalorder %s13, 3
        %s252 = scalar_select %p251, %s13, 3
        %s253 = smul.addr %s252, 18
        %s254 = smul.addr %s253, 4
        %s255 = scalar_lea.vmem %s1, %s254
      $region24: #{relu_conv_bn_relu.1} parent=15 // pred_fallthru
        _
      // Predicated region
      $region25: #{relu_conv_bn_relu.1} parent=15 // pred_check
        %p256 = pneg %p85
      $region26: #{relu_conv_bn_relu.1} parent=15 // pred_check_branch
        %258 = sbr.rel (%p256) target = $region28
      $region27: #{relu_conv_bn_relu.1} parent=15 // pred_region
        %p259 = scmp.lt.s32.totalorder %s13, 3
        %s260 = scalar_select %p259, %s13, 3
        %s261 = smul.addr %s260, 16
        %s262 = smul.addr %s261, 4
        %s263 = scalar_lea.vmem %s2, %s262
      $region28: #{relu_conv_bn_relu.1} parent=15 // pred_fallthru
        _
      // Predicated region
      $region29: #{relu_conv_bn_relu.1} parent=15 // pred_check
        %p264 = pneg %p111
      $region30: #{relu_conv_bn_relu.1} parent=15 // pred_check_branch
        %266 = sbr.rel (%p264) target = $region32
      $region31: #{relu_conv_bn_relu.1} parent=15 // pred_region
        %p267 = scmp.lt.s32.totalorder %s13, 3
        %s268 = scalar_select %p267, %s13, 3
        %s269 = smul.addr %s268, 16
        %s270 = smul.addr %s269, 4
        %s271 = scalar_lea.vmem %s3, %s270
      $region32: #{relu_conv_bn_relu.1} parent=15 // pred_fallthru
        _
      // Predicated region
      $region33: #{relu_conv_bn_relu.1} parent=15 // pred_check
        %p272 = pneg %p137
      $region34: #{relu_conv_bn_relu.1} parent=15 // pred_check_branch
        %274 = sbr.rel (%p272) target = $region36
      $region35: #{relu_conv_bn_relu.1} parent=15 // pred_region
        %p275 = scmp.lt.s32.totalorder %s13, 3
        %s276 = scalar_select %p275, %s13, 3
        %s277 = smul.addr %s276, 144
        %s278 = smul.addr %s277, 4
        %s279 = scalar_lea.vmem %s4, %s278
      $region36: #{relu_conv_bn_relu.1} parent=15 // pred_fallthru
        _
      // Predicated region
      $region37: #{relu_conv_bn_relu.1} parent=15 // pred_check
        %p280 = pneg %p163
      $region38: #{relu_conv_bn_relu.1} parent=15 // pred_check_branch
        %282 = sbr.rel (%p280) target = $region40
      $region39: #{relu_conv_bn_relu.1} parent=15 // pred_region
        %p283 = scmp.lt.s32.totalorder %s13, 3
        %s284 = scalar_select %p283, %s13, 3
        %s285 = scalar_lea.vmem %s5, %s284
      $region40: #{relu_conv_bn_relu.1} parent=15 // pred_fallthru
        _
      // Predicated region
      $region41: #{relu_conv_bn_relu.1} parent=15 // pred_check
        %p286 = pneg %p189
      $region42: #{relu_conv_bn_relu.1} parent=15 // pred_check_branch
        %288 = sbr.rel (%p286) target = $region44
      $region43: #{relu_conv_bn_relu.1} parent=15 // pred_region
        %p289 = scmp.lt.s32.totalorder %s13, 3
        %s290 = scalar_select %p289, %s13, 3
        %s291 = scalar_lea.vmem %s6, %s290
      $region44: #{relu_conv_bn_relu.1} parent=15 // pred_fallthru
        _
    $region16: #{relu_conv_bn_relu.1} parent=5 // pred_fallthru
      _
    %p292 = scmp.le.s32.totalorder 1, %s13
    %p293 = scmp.lt.s32.totalorder %s13, 5
    %p294 = pnand %p292, %p293
    %p295 = pneg %p294
    // Predicated region
    $region45: #{relu_conv_bn_relu.1} parent=5 // pred_check
      _
    $region46: #{relu_conv_bn_relu.1} parent=5 // pred_check_branch
      %297 = sbr.rel (%p294) target = $region48
    $region47: #{relu_conv_bn_relu.1} parent=5 // pred_region
      %s298 = ssub.s32 %s13, 1
      %p299 = scmp.lt.s32.totalorder %s18, 3
      %s300 = scalar_select %p299, %s18, 3
      %s301 = smul.addr %s300, 18
      %s302 = smul.addr %s301, 4
      %s303 = scalar_lea.vmem %s0, %s302
      %p304 = pneg %p39
      %p305 = pneg %p36
      %p306 = scmp.lt.s32.totalorder %s18, 3
      %s307 = scalar_select %p306, %s18, 3
      %s308 = smul.addr %s307, 18
      %s309 = smul.addr %s308, 4
      %s310 = scalar_lea.vmem %s1, %s309
      %p311 = pneg %p65
      %p312 = pneg %p62
      %p313 = scmp.lt.s32.totalorder %s18, 3
      %s314 = scalar_select %p313, %s18, 3
      %s315 = smul.addr %s314, 16
      %s316 = smul.addr %s315, 4
      %s317 = scalar_lea.vmem %s2, %s316
      %p318 = pneg %p91
      %p319 = pneg %p88
      %p320 = scmp.lt.s32.totalorder %s18, 3
      %s321 = scalar_select %p320, %s18, 3
      %s322 = smul.addr %s321, 16
      %s323 = smul.addr %s322, 4
      %s324 = scalar_lea.vmem %s3, %s323
      %p325 = pneg %p117
      %p326 = pneg %p114
      %p327 = scmp.lt.s32.totalorder %s18, 3
      %s328 = scalar_select %p327, %s18, 3
      %s329 = smul.addr %s328, 144
      %s330 = smul.addr %s329, 4
      %s331 = scalar_lea.vmem %s4, %s330
      %p332 = pneg %p143
      %p333 = pneg %p140
      %p334 = scmp.lt.s32.totalorder %s18, 3
      %s335 = scalar_select %p334, %s18, 3
      %s336 = scalar_lea.vmem %s5, %s335
      %p337 = pneg %p169
      %p338 = pneg %p166
      %p339 = scmp.lt.s32.totalorder %s18, 3
      %s340 = scalar_select %p339, %s18, 3
      %s341 = scalar_lea.vmem %s6, %s340
      %p342 = pneg %p195
      %p343 = pneg %p192
      %p344 = pneg %p221
      %p345 = pneg %p218
      %p346 = scmp.lt.s32.totalorder %s18, 3
      %s347 = scalar_select %p346, %s18, 3
      %s348 = smul.addr %s347, 8
      %s349 = smul.addr %s348, 8
      %s350 = scalar_lea.vmem %s7, %s349
      %p351 = scmp.lt.s32.totalorder %s18, 3
      %s352 = scalar_select %p351, %s18, 3
      %s353 = smul.addr %s352, 18
      %s354 = smul.addr %s353, 4
      %s355 = scalar_lea.vmem %s0, %s354
      %p356 = scmp.lt.s32.totalorder %s18, 3
      %s357 = scalar_select %p356, %s18, 3
      %s358 = smul.addr %s357, 18
      %s359 = smul.addr %s358, 4
      %s360 = scalar_lea.vmem %s1, %s359
      %p361 = scmp.lt.s32.totalorder %s18, 3
      %s362 = scalar_select %p361, %s18, 3
      %s363 = smul.addr %s362, 16
      %s364 = smul.addr %s363, 4
      %s365 = scalar_lea.vmem %s2, %s364
      %p366 = scmp.lt.s32.totalorder %s18, 3
      %s367 = scalar_select %p366, %s18, 3
      %s368 = smul.addr %s367, 16
      %s369 = smul.addr %s368, 4
      %s370 = scalar_lea.vmem %s3, %s369
      %p371 = scmp.lt.s32.totalorder %s18, 3
      %s372 = scalar_select %p371, %s18, 3
      %s373 = smul.addr %s372, 144
      %s374 = smul.addr %s373, 4
      %s375 = scalar_lea.vmem %s4, %s374
      %p376 = scmp.lt.s32.totalorder %s18, 3
      %s377 = scalar_select %p376, %s18, 3
      %s378 = scalar_lea.vmem %s5, %s377
      %p379 = scmp.lt.s32.totalorder %s18, 3
      %s380 = scalar_select %p379, %s18, 3
      %s381 = scalar_lea.vmem %s6, %s380
      %p382 = scmp.lt.s32.totalorder %s18, 3
      %s383 = scalar_select %p382, %s18, 3
      %s384 = smul.addr %s383, 8
      %s385 = smul.addr %s384, 8
      %s386 = scalar_lea.vmem %s7, %s385
      %v388 = vld [vmem:[%s355] sm:$0xf]
      %v389 = vld [vmem:[%s355 + $0x4] sm:$0xf]
      %v390 = vld [vmem:[%s355 + $0x8] sm:$0xf]
      %v391 = vld [vmem:[%s355 + $0xc] sm:$0xf]
      %v392 = vld [vmem:[%s355 + $0x10] sm:$0xf]
      %v393 = vld [vmem:[%s355 + $0x14] sm:$0xf]
      %v394 = vld [vmem:[%s355 + $0x18] sm:$0xf]
      %v395 = vld [vmem:[%s355 + $0x1c] sm:$0xf]
      %v396 = vld [vmem:[%s355 + $0x20] sm:$0xf]
      %v397 = vld [vmem:[%s355 + $0x24] sm:$0xf]
      %v398 = vld [vmem:[%s355 + $0x28] sm:$0xf]
      %v399 = vld [vmem:[%s355 + $0x2c] sm:$0xf]
      %v400 = vld [vmem:[%s355 + $0x30] sm:$0xf]
      %v401 = vld [vmem:[%s355 + $0x34] sm:$0xf]
      %v402 = vld [vmem:[%s355 + $0x38] sm:$0xf]
      %v403 = vld [vmem:[%s355 + $0x3c] sm:$0xf]
      %v404 = vld [vmem:[%s375] sm:$0xf]
      %v405 = vld [vmem:[%s375 + $0x4] sm:$0xf]
      %v406 = vld [vmem:[%s375 + $0x8] sm:$0xf]
      %v407 = vld [vmem:[%s375 + $0xc] sm:$0xf]
      %v408 = vld [vmem:[%s375 + $0x10] sm:$0xf]
      %v409 = vld [vmem:[%s375 + $0x14] sm:$0xf]
      %v410 = vld [vmem:[%s375 + $0x18] sm:$0xf]
      %v411 = vld [vmem:[%s375 + $0x1c] sm:$0xf]
      %v412 = vld [vmem:[%s375 + $0x20] sm:$0xf]
      %v413 = vld [vmem:[%s375 + $0x24] sm:$0xf]
      %v414 = vld [vmem:[%s375 + $0x28] sm:$0xf]
      %v415 = vld [vmem:[%s375 + $0x2c] sm:$0xf]
      %v416 = vld [vmem:[%s375 + $0x30] sm:$0xf]
      %v417 = vld [vmem:[%s375 + $0x34] sm:$0xf]
      %v418 = vld [vmem:[%s375 + $0x38] sm:$0xf]
      %v419 = vld [vmem:[%s375 + $0x3c] sm:$0xf]
      %v436 = vunpack.c.l.b16 %v388
      %v437 = vunpack.c.l.b16 %v389
      %v438 = vunpack.c.l.b16 %v390
      %v439 = vunpack.c.l.b16 %v391
      %v440 = vunpack.c.l.b16 %v392
      %v441 = vunpack.c.l.b16 %v393
      %v442 = vunpack.c.l.b16 %v394
      %v443 = vunpack.c.l.b16 %v395
      %v444 = vunpack.c.l.b16 %v396
      %v445 = vunpack.c.l.b16 %v397
      %v446 = vunpack.c.l.b16 %v398
      %v447 = vunpack.c.l.b16 %v399
      %v448 = vunpack.c.l.b16 %v400
      %v449 = vunpack.c.l.b16 %v401
      %v450 = vunpack.c.l.b16 %v402
      %v451 = vunpack.c.l.b16 %v403
      %v452 = vpack.c.b16 %v437, %v436
      %v453 = vpack.c.b16 %v439, %v438
      %v454 = vpack.c.b16 %v441, %v440
      %v455 = vpack.c.b16 %v443, %v442
      %v456 = vpack.c.b16 %v445, %v444
      %v457 = vpack.c.b16 %v447, %v446
      %v458 = vpack.c.b16 %v449, %v448
      %v459 = vpack.c.b16 %v451, %v450
      %v484 = vunpack.c.l.b16 %v404
      %v485 = vunpack.c.l.b16 %v405
      %v486 = vunpack.c.l.b16 %v406
      %v487 = vunpack.c.l.b16 %v407
      %v488 = vunpack.c.l.b16 %v408
      %v489 = vunpack.c.l.b16 %v409
      %v490 = vunpack.c.l.b16 %v410
      %v491 = vunpack.c.l.b16 %v411
      %v492 = vunpack.c.l.b16 %v412
      %v493 = vunpack.c.l.b16 %v413
      %v494 = vunpack.c.l.b16 %v414
      %v495 = vunpack.c.l.b16 %v415
      %v496 = vunpack.c.l.b16 %v416
      %v497 = vunpack.c.l.b16 %v417
      %v498 = vunpack.c.l.b16 %v418
      %v499 = vunpack.c.l.b16 %v419
      %v500 = vpack.c.b16 %v485, %v484
      %v501 = vpack.c.b16 %v487, %v486
      %v502 = vpack.c.b16 %v489, %v488
      %v503 = vpack.c.b16 %v491, %v490
      %v504 = vpack.c.b16 %v493, %v492
      %v505 = vpack.c.b16 %v495, %v494
      %v506 = vpack.c.b16 %v497, %v496
      %v507 = vpack.c.b16 %v499, %v498
      %516 = vmatprep.subr.bf16.mxu0 0
      %517 = vmatpush1.bf16.msra.mxu0 %v500
      %518 = vmatprep.subr.bf16.mxu0 0
      %519 = vmatpush1.bf16.msra.mxu0 %v501
      %520 = vmatprep.subr.bf16.mxu0 0
      %521 = vmatpush1.bf16.msra.mxu0 %v502
      %522 = vmatprep.subr.bf16.mxu0 0
      %523 = vmatpush1.bf16.msra.mxu0 %v503
      %524 = vmatprep.subr.bf16.mxu0 0
      %525 = vmatpush1.bf16.msra.mxu0 %v504
      %526 = vmatprep.subr.bf16.mxu0 0
      %527 = vmatpush1.bf16.msra.mxu0 %v505
      %528 = vmatprep.subr.bf16.mxu0 0
      %529 = vmatpush1.bf16.msra.mxu0 %v506
      %530 = vmatprep.subr.bf16.mxu0 0
      %531 = vmatpush1.bf16.msra.mxu0 %v507
      %532 = vmatprep.subr.bf16.mxu0 0
      %533 = vmatpush1.bf16.msra.mxu0 0
      %534 = vmatprep.subr.bf16.mxu0 0
      %535 = vmatpush1.bf16.msra.mxu0 0
      %536 = vmatprep.subr.bf16.mxu0 0
      %537 = vmatpush1.bf16.msra.mxu0 0
      %538 = vmatprep.subr.bf16.mxu0 0
      %539 = vmatpush1.bf16.msra.mxu0 0
      %540 = vmatprep.subr.bf16.mxu0 0
      %541 = vmatpush1.bf16.msra.mxu0 0
      %542 = vmatprep.subr.bf16.mxu0 0
      %543 = vmatpush1.bf16.msra.mxu0 0
      %544 = vmatprep.subr.bf16.mxu0 0
      %545 = vmatpush1.bf16.msra.mxu0 0
      %546 = vmatprep.subr.bf16.mxu0 0
      %547 = vmatpush1.bf16.msra.mxu0 0
      %548 = vmatprep.mubr.bf16.mxu0 0
      %549 = vmatmul.mubr.bf16.gmra.mrb[0].mxu0 %v452
      %v550 = vpop.f32.mrb[0].mxu0
      %v551 = vadd.f32 0.0, %v550
      %v552 = vpop.f32.mrb[0].mxu0
      %v553 = vpop.f32.mrb[0].mxu0
      %v554 = vadd.f32 0.0, %v553
      %v555 = vpop.f32.mrb[0].mxu0
      %556 = vmatprep.mubr.bf16.mxu0 0
      %557 = vmatmul.mubr.bf16.gmra.mrb[0].mxu0 %v453
      %v558 = vpop.f32.mrb[0].mxu0
      %v559 = vadd.f32 0.0, %v558
      %v560 = vpop.f32.mrb[0].mxu0
      %v561 = vpop.f32.mrb[0].mxu0
      %v562 = vadd.f32 0.0, %v561
      %v563 = vpop.f32.mrb[0].mxu0
      %564 = vmatprep.mubr.bf16.mxu0 0
      %565 = vmatmul.mubr.bf16.gmra.mrb[0].mxu0 %v454
      %v566 = vpop.f32.mrb[0].mxu0
      %v567 = vadd.f32 0.0, %v566
      %v568 = vpop.f32.mrb[0].mxu0
      %v569 = vpop.f32.mrb[0].mxu0
      %v570 = vadd.f32 0.0, %v569
      %v571 = vpop.f32.mrb[0].mxu0
      %572 = vmatprep.mubr.bf16.mxu0 0
      %573 = vmatmul.mubr.bf16.gmra.mrb[0].mxu0 %v455
      %v574 = vpop.f32.mrb[0].mxu0
      %v575 = vadd.f32 0.0, %v574
      %v576 = vpop.f32.mrb[0].mxu0
      %v577 = vpop.f32.mrb[0].mxu0
      %v578 = vadd.f32 0.0, %v577
      %v579 = vpop.f32.mrb[0].mxu0
      %580 = vmatprep.mubr.bf16.mxu0 0
      %581 = vmatmul.mubr.bf16.gmra.mrb[0].mxu0 %v456
      %v582 = vpop.f32.mrb[0].mxu0
      %v583 = vadd.f32 0.0, %v582
      %v584 = vpop.f32.mrb[0].mxu0
      %v585 = vpop.f32.mrb[0].mxu0
      %v586 = vadd.f32 0.0, %v585
      %v587 = vpop.f32.mrb[0].mxu0
      %588 = vmatprep.mubr.bf16.mxu0 0
      %589 = vmatmul.mubr.bf16.gmra.mrb[0].mxu0 %v457
      %v590 = vpop.f32.mrb[0].mxu0
      %v591 = vadd.f32 0.0, %v590
      %v592 = vpop.f32.mrb[0].mxu0
      %v593 = vpop.f32.mrb[0].mxu0
      %v594 = vadd.f32 0.0, %v593
      %v595 = vpop.f32.mrb[0].mxu0
      %596 = vmatprep.mubr.bf16.mxu0 0
      %597 = vmatmul.mubr.bf16.gmra.mrb[0].mxu0 %v458
      %v598 = vpop.f32.mrb[0].mxu0
      %v599 = vadd.f32 0.0, %v598
      %v600 = vpop.f32.mrb[0].mxu0
      %v601 = vpop.f32.mrb[0].mxu0
      %v602 = vadd.f32 0.0, %v601
      %v603 = vpop.f32.mrb[0].mxu0
      %604 = vmatprep.mubr.bf16.mxu0 0
      %605 = vmatmul.mubr.bf16.gmra.mrb[0].mxu0 %v459
      %v606 = vpop.f32.mrb[0].mxu0
      %v607 = vadd.f32 0.0, %v606
      %v608 = vpop.f32.mrb[0].mxu0
      %v609 = vpop.f32.mrb[0].mxu0
      %v610 = vadd.f32 0.0, %v609
      %v611 = vpop.f32.mrb[0].mxu0
      %612 = vdwg.mxu0
      %613 = vst [vmem:[#allocation2] sm:$0xff] %v551
      %614 = vst [vmem:[#allocation2 + $0x8] sm:$0xff] %v554
      %615 = vst [vmem:[#allocation2 + $0x10] sm:$0xff] %v559
      %616 = vst [vmem:[#allocation2 + $0x18] sm:$0xff] %v562
      %617 = vst [vmem:[#allocation2 + $0x20] sm:$0xff] %v567
      %618 = vst [vmem:[#allocation2 + $0x28] sm:$0xff] %v570
      %619 = vst [vmem:[#allocation2 + $0x30] sm:$0xff] %v575
      %620 = vst [vmem:[#allocation2 + $0x38] sm:$0xff] %v578
      %621 = vst [vmem:[#allocation2 + $0x40] sm:$0xff] %v583
      %622 = vst [vmem:[#allocation2 + $0x48] sm:$0xff] %v586
      %623 = vst [vmem:[#allocation2 + $0x50] sm:$0xff] %v591
      %624 = vst [vmem:[#allocation2 + $0x58] sm:$0xff] %v594
      %625 = vst [vmem:[#allocation2 + $0x60] sm:$0xff] %v599
      %626 = vst [vmem:[#allocation2 + $0x68] sm:$0xff] %v602
      %627 = vst [vmem:[#allocation2 + $0x70] sm:$0xff] %v607
      %628 = vst [vmem:[#allocation2 + $0x78] sm:$0xff] %v610
      %v629 = vld [vmem:[#allocation2] sm:$0xff]
      %v630 = vld [vmem:[#allocation2 + $0x8] sm:$0xff]
      %v631 = vld [vmem:[#allocation2 + $0x10] sm:$0xff]
      %v632 = vld [vmem:[#allocation2 + $0x18] sm:$0xff]
      %v633 = vld [vmem:[#allocation2 + $0x20] sm:$0xff]
      %v634 = vld [vmem:[#allocation2 + $0x28] sm:$0xff]
      %v635 = vld [vmem:[#allocation2 + $0x30] sm:$0xff]
      %v636 = vld [vmem:[#allocation2 + $0x38] sm:$0xff]
      %v637 = vld [vmem:[#allocation2 + $0x40] sm:$0xff]
      %v638 = vld [vmem:[#allocation2 + $0x48] sm:$0xff]
      %v639 = vld [vmem:[#allocation2 + $0x50] sm:$0xff]
      %v640 = vld [vmem:[#allocation2 + $0x58] sm:$0xff]
      %v641 = vld [vmem:[#allocation2 + $0x60] sm:$0xff]
      %v642 = vld [vmem:[#allocation2 + $0x68] sm:$0xff]
      %v643 = vld [vmem:[#allocation2 + $0x70] sm:$0xff]
      %v644 = vld [vmem:[#allocation2 + $0x78] sm:$0xff]
      %v645 = vld [vmem:[%s365] sm:$0xf]
      %v646 = vld [vmem:[%s365 + $0x4] sm:$0xf]
      %v647 = vld [vmem:[%s365 + $0x8] sm:$0xf]
      %v648 = vld [vmem:[%s365 + $0xc] sm:$0xf]
      %v649 = vld [vmem:[%s365 + $0x10] sm:$0xf]
      %v650 = vld [vmem:[%s365 + $0x14] sm:$0xf]
      %v651 = vld [vmem:[%s365 + $0x18] sm:$0xf]
      %v652 = vld [vmem:[%s365 + $0x1c] sm:$0xf]
      %v653 = vld [vmem:[%s365 + $0x20] sm:$0xf]
      %v654 = vld [vmem:[%s365 + $0x24] sm:$0xf]
      %v655 = vld [vmem:[%s365 + $0x28] sm:$0xf]
      %v656 = vld [vmem:[%s365 + $0x2c] sm:$0xf]
      %v657 = vld [vmem:[%s365 + $0x30] sm:$0xf]
      %v658 = vld [vmem:[%s365 + $0x34] sm:$0xf]
      %v659 = vld [vmem:[%s365 + $0x38] sm:$0xf]
      %v660 = vld [vmem:[%s365 + $0x3c] sm:$0xf]
      %s661 = scalar_lea.vmem %s375, 192
      %v662 = vld [vmem:[%s661] sm:$0xf]
      %v663 = vld [vmem:[%s661 + $0x4] sm:$0xf]
      %v664 = vld [vmem:[%s661 + $0x8] sm:$0xf]
      %v665 = vld [vmem:[%s661 + $0xc] sm:$0xf]
      %v666 = vld [vmem:[%s661 + $0x10] sm:$0xf]
      %v667 = vld [vmem:[%s661 + $0x14] sm:$0xf]
      %v668 = vld [vmem:[%s661 + $0x18] sm:$0xf]
      %v669 = vld [vmem:[%s661 + $0x1c] sm:$0xf]
      %v670 = vld [vmem:[%s661 + $0x20] sm:$0xf]
      %v671 = vld [vmem:[%s661 + $0x24] sm:$0xf]
      %v672 = vld [vmem:[%s661 + $0x28] sm:$0xf]
      %v673 = vld [vmem:[%s661 + $0x2c] sm:$0xf]
      %v674 = vld [vmem:[%s661 + $0x30] sm:$0xf]
      %v675 = vld [vmem:[%s661 + $0x34] sm:$0xf]
      %v676 = vld [vmem:[%s661 + $0x38] sm:$0xf]
      %v677 = vld [vmem:[%s661 + $0x3c] sm:$0xf]
      %v694 = vunpack.c.l.b16 %v645
      %v695 = vunpack.c.l.b16 %v646
      %v696 = vunpack.c.l.b16 %v647
      %v697 = vunpack.c.l.b16 %v648
      %v698 = vunpack.c.l.b16 %v649
      %v699 = vunpack.c.l.b16 %v650
      %v700 = vunpack.c.l.b16 %v651
      %v701 = vunpack.c.l.b16 %v652
      %v702 = vunpack.c.l.b16 %v653
      %v703 = vunpack.c.l.b16 %v654
      %v704 = vunpack.c.l.b16 %v655
      %v705 = vunpack.c.l.b16 %v656
      %v706 = vunpack.c.l.b16 %v657
      %v707 = vunpack.c.l.b16 %v658
      %v708 = vunpack.c.l.b16 %v659
      %v709 = vunpack.c.l.b16 %v660
      %v710 = vpack.c.b16 %v695, %v694
      %v711 = vpack.c.b16 %v697, %v696
      %v712 = vpack.c.b16 %v699, %v698
      %v713 = vpack.c.b16 %v701, %v700
      %v714 = vpack.c.b16 %v703, %v702
      %v715 = vpack.c.b16 %v705, %v704
      %v716 = vpack.c.b16 %v707, %v706
      %v717 = vpack.c.b16 %v709, %v708
      %v742 = vunpack.c.l.b16 %v662
      %v743 = vunpack.c.l.b16 %v663
      %v744 = vunpack.c.l.b16 %v664
      %v745 = vunpack.c.l.b16 %v665
      %v746 = vunpack.c.l.b16 %v666
      %v747 = vunpack.c.l.b16 %v667
      %v748 = vunpack.c.l.b16 %v668
      %v749 = vunpack.c.l.b16 %v669
      %v750 = vunpack.c.l.b16 %v670
      %v751 = vunpack.c.l.b16 %v671
      %v752 = vunpack.c.l.b16 %v672
      %v753 = vunpack.c.l.b16 %v673
      %v754 = vunpack.c.l.b16 %v674
      %v755 = vunpack.c.l.b16 %v675
      %v756 = vunpack.c.l.b16 %v676
      %v757 = vunpack.c.l.b16 %v677
      %v758 = vpack.c.b16 %v743, %v742
      %v759 = vpack.c.b16 %v745, %v744
      %v760 = vpack.c.b16 %v747, %v746
      %v761 = vpack.c.b16 %v749, %v748
      %v762 = vpack.c.b16 %v751, %v750
      %v763 = vpack.c.b16 %v753, %v752
      %v764 = vpack.c.b16 %v755, %v754
      %v765 = vpack.c.b16 %v757, %v756
      %774 = vmatprep.subr.bf16.mxu0 0
      %775 = vmatpush1.bf16.msra.mxu0 %v758
      %776 = vmatprep.subr.bf16.mxu0 0
      %777 = vmatpush1.bf16.msra.mxu0 %v759
      %778 = vmatprep.subr.bf16.mxu0 0
      %779 = vmatpush1.bf16.msra.mxu0 %v760
      %780 = vmatprep.subr.bf16.mxu0 0
      %781 = vmatpush1.bf16.msra.mxu0 %v761
      %782 = vmatprep.subr.bf16.mxu0 0
      %783 = vmatpush1.bf16.msra.mxu0 %v762
      %784 = vmatprep.subr.bf16.mxu0 0
      %785 = vmatpush1.bf16.msra.mxu0 %v763
      %786 = vmatprep.subr.bf16.mxu0 0
      %787 = vmatpush1.bf16.msra.mxu0 %v764
      %788 = vmatprep.subr.bf16.mxu0 0
      %789 = vmatpush1.bf16.msra.mxu0 %v765
      %790 = vmatprep.subr.bf16.mxu0 0
      %791 = vmatpush1.bf16.msra.mxu0 0
      %792 = vmatprep.subr.bf16.mxu0 0
      %793 = vmatpush1.bf16.msra.mxu0 0
      %794 = vmatprep.subr.bf16.mxu0 0
      %795 = vmatpush1.bf16.msra.mxu0 0
      %796 = vmatprep.subr.bf16.mxu0 0
      %797 = vmatpush1.bf16.msra.mxu0 0
      %798 = vmatprep.subr.bf16.mxu0 0
      %799 = vmatpush1.bf16.msra.mxu0 0
      %800 = vmatprep.subr.bf16.mxu0 0
      %801 = vmatpush1.bf16.msra.mxu0 0
      %802 = vmatprep.subr.bf16.mxu0 0
      %803 = vmatpush1.bf16.msra.mxu0 0
      %804 = vmatprep.subr.bf16.mxu0 0
      %805 = vmatpush1.bf16.msra.mxu0 0
      %806 = vmatprep.mubr.bf16.mxu0 0
      %807 = vmatmul.mubr.bf16.gmra.mrb[0].mxu0 %v710
      %v808 = vpop.f32.mrb[0].mxu0
      %v809 = vadd.f32 0.0, %v808
      %v810 = vpop.f32.mrb[0].mxu0
      %v811 = vpop.f32.mrb[0].mxu0
      %v812 = vadd.f32 0.0, %v811
      %v813 = vpop.f32.mrb[0].mxu0
      %814 = vmatprep.mubr.bf16.mxu0 0
      %815 = vmatmul.mubr.bf16.gmra.mrb[0].mxu0 %v711
      %v816 = vpop.f32.mrb[0].mxu0
      %v817 = vadd.f32 0.0, %v816
      %v818 = vpop.f32.mrb[0].mxu0
      %v819 = vpop.f32.mrb[0].mxu0
      %v820 = vadd.f32 0.0, %v819
      %v821 = vpop.f32.mrb[0].mxu0
      %822 = vmatprep.mubr.bf16.mxu0 0
      %823 = vmatmul.mubr.bf16.gmra.mrb[0].mxu0 %v712
      %v824 = vpop.f32.mrb[0].mxu0
      %v825 = vadd.f32 0.0, %v824
      %v826 = vpop.f32.mrb[0].mxu0
      %v827 = vpop.f32.mrb[0].mxu0
      %v828 = vadd.f32 0.0, %v827
      %v829 = vpop.f32.mrb[0].mxu0
      %830 = vmatprep.mubr.bf16.mxu0 0
      %831 = vmatmul.mubr.bf16.gmra.mrb[0].mxu0 %v713
      %v832 = vpop.f32.mrb[0].mxu0
      %v833 = vadd.f32 0.0, %v832
      %v834 = vpop.f32.mrb[0].mxu0
      %v835 = vpop.f32.mrb[0].mxu0
      %v836 = vadd.f32 0.0, %v835
      %v837 = vpop.f32.mrb[0].mxu0
      %838 = vmatprep.mubr.bf16.mxu0 0
      %839 = vmatmul.mubr.bf16.gmra.mrb[0].mxu0 %v714
      %v840 = vpop.f32.mrb[0].mxu0
      %v841 = vadd.f32 0.0, %v840
      %v842 = vpop.f32.mrb[0].mxu0
      %v843 = vpop.f32.mrb[0].mxu0
      %v844 = vadd.f32 0.0, %v843
      %v845 = vpop.f32.mrb[0].mxu0
      %846 = vmatprep.mubr.bf16.mxu0 0
      %847 = vmatmul.mubr.bf16.gmra.mrb[0].mxu0 %v715
      %v848 = vpop.f32.mrb[0].mxu0
      %v849 = vadd.f32 0.0, %v848
      %v850 = vpop.f32.mrb[0].mxu0
      %v851 = vpop.f32.mrb[0].mxu0
      %v852 = vadd.f32 0.0, %v851
      %v853 = vpop.f32.mrb[0].mxu0
      %854 = vmatprep.mubr.bf16.mxu0 0
      %855 = vmatmul.mubr.bf16.gmra.mrb[0].mxu0 %v716
      %v856 = vpop.f32.mrb[0].mxu0
      %v857 = vadd.f32 0.0, %v856
      %v858 = vpop.f32.mrb[0].mxu0
      %v859 = vpop.f32.mrb[0].mxu0
      %v860 = vadd.f32 0.0, %v859
      %v861 = vpop.f32.mrb[0].mxu0
      %862 = vmatprep.mubr.bf16.mxu0 0
      %863 = vmatmul.mubr.bf16.gmra.mrb[0].mxu0 %v717
      %v864 = vpop.f32.mrb[0].mxu0
      %v865 = vadd.f32 0.0, %v864
      %v866 = vpop.f32.mrb[0].mxu0
      %v867 = vpop.f32.mrb[0].mxu0
      %v868 = vadd.f32 0.0, %v867
      %v869 = vpop.f32.mrb[0].mxu0
      %870 = vdwg.mxu0
      %v871 = vadd.f32 %v629, %v809
      %v872 = vadd.f32 %v630, %v812
      %v873 = vadd.f32 %v631, %v817
      %v874 = vadd.f32 %v632, %v820
      %v875 = vadd.f32 %v633, %v825
      %v876 = vadd.f32 %v634, %v828
      %v877 = vadd.f32 %v635, %v833
      %v878 = vadd.f32 %v636, %v836
      %v879 = vadd.f32 %v637, %v841
      %v880 = vadd.f32 %v638, %v844
      %v881 = vadd.f32 %v639, %v849
      %v882 = vadd.f32 %v640, %v852
      %v883 = vadd.f32 %v641, %v857
      %v884 = vadd.f32 %v642, %v860
      %v885 = vadd.f32 %v643, %v865
      %v886 = vadd.f32 %v644, %v868
      %887 = vst [vmem:[#allocation2] sm:$0xff] %v871
      %888 = vst [vmem:[#allocation2 + $0x8] sm:$0xff] %v872
      %889 = vst [vmem:[#allocation2 + $0x10] sm:$0xff] %v873
      %890 = vst [vmem:[#allocation2 + $0x18] sm:$0xff] %v874
      %891 = vst [vmem:[#allocation2 + $0x20] sm:$0xff] %v875
      %892 = vst [vmem:[#allocation2 + $0x28] sm:$0xff] %v876
      %893 = vst [vmem:[#allocation2 + $0x30] sm:$0xff] %v877
      %894 = vst [vmem:[#allocation2 + $0x38] sm:$0xff] %v878
      %895 = vst [vmem:[#allocation2 + $0x40] sm:$0xff] %v879
      %896 = vst [vmem:[#allocation2 + $0x48] sm:$0xff] %v880
      %897 = vst [vmem:[#allocation2 + $0x50] sm:$0xff] %v881
      %898 = vst [vmem:[#allocation2 + $0x58] sm:$0xff] %v882
      %899 = vst [vmem:[#allocation2 + $0x60] sm:$0xff] %v883
      %900 = vst [vmem:[#allocation2 + $0x68] sm:$0xff] %v884
      %901 = vst [vmem:[#allocation2 + $0x70] sm:$0xff] %v885
      %902 = vst [vmem:[#allocation2 + $0x78] sm:$0xff] %v886
      %v903 = vld [vmem:[#allocation2] sm:$0xff]
      %v904 = vld [vmem:[#allocation2 + $0x8] sm:$0xff]
      %v905 = vld [vmem:[#allocation2 + $0x10] sm:$0xff]
      %v906 = vld [vmem:[#allocation2 + $0x18] sm:$0xff]
      %v907 = vld [vmem:[#allocation2 + $0x20] sm:$0xff]
      %v908 = vld [vmem:[#allocation2 + $0x28] sm:$0xff]
      %v909 = vld [vmem:[#allocation2 + $0x30] sm:$0xff]
      %v910 = vld [vmem:[#allocation2 + $0x38] sm:$0xff]
      %v911 = vld [vmem:[#allocation2 + $0x40] sm:$0xff]
      %v912 = vld [vmem:[#allocation2 + $0x48] sm:$0xff]
      %v913 = vld [vmem:[#allocation2 + $0x50] sm:$0xff]
      %v914 = vld [vmem:[#allocation2 + $0x58] sm:$0xff]
      %v915 = vld [vmem:[#allocation2 + $0x60] sm:$0xff]
      %v916 = vld [vmem:[#allocation2 + $0x68] sm:$0xff]
      %v917 = vld [vmem:[#allocation2 + $0x70] sm:$0xff]
      %v918 = vld [vmem:[#allocation2 + $0x78] sm:$0xff]
      %s919 = scalar_lea.vmem %s355, 8
      %v920 = vld [vmem:[%s919] sm:$0xf]
      %v921 = vld [vmem:[%s919 + $0x4] sm:$0xf]
      %v922 = vld [vmem:[%s919 + $0x8] sm:$0xf]
      %v923 = vld [vmem:[%s919 + $0xc] sm:$0xf]
      %v924 = vld [vmem:[%s919 + $0x10] sm:$0xf]
      %v925 = vld [vmem:[%s919 + $0x14] sm:$0xf]
      %v926 = vld [vmem:[%s919 + $0x18] sm:$0xf]
      %v927 = vld [vmem:[%s919 + $0x1c] sm:$0xf]
      %v928 = vld [vmem:[%s919 + $0x20] sm:$0xf]
      %v929 = vld [vmem:[%s919 + $0x24] sm:$0xf]
      %v930 = vld [vmem:[%s919 + $0x28] sm:$0xf]
      %v931 = vld [vmem:[%s919 + $0x2c] sm:$0xf]
      %v932 = vld [vmem:[%s919 + $0x30] sm:$0xf]
      %v933 = vld [vmem:[%s919 + $0x34] sm:$0xf]
      %v934 = vld [vmem:[%s919 + $0x38] sm:$0xf]
      %v935 = vld [vmem:[%s919 + $0x3c] sm:$0xf]
      %s936 = scalar_lea.vmem %s375, 384
      %v937 = vld [vmem:[%s936] sm:$0xf]
      %v938 = vld [vmem:[%s936 + $0x4] sm:$0xf]
      %v939 = vld [vmem:[%s936 + $0x8] sm:$0xf]
      %v940 = vld [vmem:[%s936 + $0xc] sm:$0xf]
      %v941 = vld [vmem:[%s936 + $0x10] sm:$0xf]
      %v942 = vld [vmem:[%s936 + $0x14] sm:$0xf]
      %v943 = vld [vmem:[%s936 + $0x18] sm:$0xf]
      %v944 = vld [vmem:[%s936 + $0x1c] sm:$0xf]
      %v945 = vld [vmem:[%s936 + $0x20] sm:$0xf]
      %v946 = vld [vmem:[%s936 + $0x24] sm:$0xf]
      %v947 = vld [vmem:[%s936 + $0x28] sm:$0xf]
      %v948 = vld [vmem:[%s936 + $0x2c] sm:$0xf]
      %v949 = vld [vmem:[%s936 + $0x30] sm:$0xf]
      %v950 = vld [vmem:[%s936 + $0x34] sm:$0xf]
      %v951 = vld [vmem:[%s936 + $0x38] sm:$0xf]
      %v952 = vld [vmem:[%s936 + $0x3c] sm:$0xf]
      %v969 = vunpack.c.l.b16 %v920
      %v970 = vunpack.c.l.b16 %v921
      %v971 = vunpack.c.l.b16 %v922
      %v972 = vunpack.c.l.b16 %v923
      %v973 = vunpack.c.l.b16 %v924
      %v974 = vunpack.c.l.b16 %v925
      %v975 = vunpack.c.l.b16 %v926
      %v976 = vunpack.c.l.b16 %v927
      %v977 = vunpack.c.l.b16 %v928
      %v978 = vunpack.c.l.b16 %v929
      %v979 = vunpack.c.l.b16 %v930
      %v980 = vunpack.c.l.b16 %v931
      %v981 = vunpack.c.l.b16 %v932
      %v982 = vunpack.c.l.b16 %v933
      %v983 = vunpack.c.l.b16 %v934
      %v984 = vunpack.c.l.b16 %v935
      %v985 = vpack.c.b16 %v970, %v969
      %v986 = vpack.c.b16 %v972, %v971
      %v987 = vpack.c.b16 %v974, %v973
      %v988 = vpack.c.b16 %v976, %v975
      %v989 = vpack.c.b16 %v978, %v977
      %v990 = vpack.c.b16 %v980, %v979
      %v991 = vpack.c.b16 %v982, %v981
      %v992 = vpack.c.b16 %v984, %v983
      %v1017 = vunpack.c.l.b16 %v937
      %v1018 = vunpack.c.l.b16 %v938
      %v1019 = vunpack.c.l.b16 %v939
      %v1020 = vunpack.c.l.b16 %v940
      %v1021 = vunpack.c.l.b16 %v941
      %v1022 = vunpack.c.l.b16 %v942
      %v1023 = vunpack.c.l.b16 %v943
      %v1024 = vunpack.c.l.b16 %v944
      %v1025 = vunpack.c.l.b16 %v945
      %v1026 = vunpack.c.l.b16 %v946
      %v1027 = vunpack.c.l.b16 %v947
      %v1028 = vunpack.c.l.b16 %v948
      %v1029 = vunpack.c.l.b16 %v949
      %v1030 = vunpack.c.l.b16 %v950
      %v1031 = vunpack.c.l.b16 %v951
      %v1032 = vunpack.c.l.b16 %v952
      %v1033 = vpack.c.b16 %v1018, %v1017
      %v1034 = vpack.c.b16 %v1020, %v1019
      %v1035 = vpack.c.b16 %v1022, %v1021
      %v1036 = vpack.c.b16 %v1024, %v1023
      %v1037 = vpack.c.b16 %v1026, %v1025
      %v1038 = vpack.c.b16 %v1028, %v1027
      %v1039 = vpack.c.b16 %v1030, %v1029
      %v1040 = vpack.c.b16 %v1032, %v1031
      %1049 = vmatprep.subr.bf16.mxu0 0
      %1050 = vmatpush1.bf16.msra.mxu0 %v1033
      %1051 = vmatprep.subr.bf16.mxu0 0
      %1052 = vmatpush1.bf16.msra.mxu0 %v1034
      %1053 = vmatprep.subr.bf16.mxu0 0
      %1054 = vmatpush1.bf16.msra.mxu0 %v1035
      %1055 = vmatprep.subr.bf16.mxu0 0
      %1056 = vmatpush1.bf16.msra.mxu0 %v1036
      %1057 = vmatprep.subr.bf16.mxu0 0
      %1058 = vmatpush1.bf16.msra.mxu0 %v1037
      %1059 = vmatprep.subr.bf16.mxu0 0
      %1060 = vmatpush1.bf16.msra.mxu0 %v1038
      %1061 = vmatprep.subr.bf16.mxu0 0
      %1062 = vmatpush1.bf16.msra.mxu0 %v1039
      %1063 = vmatprep.subr.bf16.mxu0 0
      %1064 = vmatpush1.bf16.msra.mxu0 %v1040
      %1065 = vmatprep.subr.bf16.mxu0 0
      %1066 = vmatpush1.bf16.msra.mxu0 0
      %1067 = vmatprep.subr.bf16.mxu0 0
      %1068 = vmatpush1.bf16.msra.mxu0 0
      %1069 = vmatprep.subr.bf16.mxu0 0
      %1070 = vmatpush1.bf16.msra.mxu0 0
      %1071 = vmatprep.subr.bf16.mxu0 0
      %1072 = vmatpush1.bf16.msra.mxu0 0
      %1073 = vmatprep.subr.bf16.mxu0 0
      %1074 = vmatpush1.bf16.msra.mxu0 0
      %1075 = vmatprep.subr.bf16.mxu0 0
      %1076 = vmatpush1.bf16.msra.mxu0 0
      %1077 = vmatprep.subr.bf16.mxu0 0
      %1078 = vmatpush1.bf16.msra.mxu0 0
      %1079 = vmatprep.subr.bf16.mxu0 0
      %1080 = vmatpush1.bf16.msra.mxu0 0
      %1081 = vmatprep.mubr.bf16.mxu0 0
      %1082 = vmatmul.mubr.bf16.gmra.mrb[0].mxu0 %v985
      %v1083 = vpop.f32.mrb[0].mxu0
      %v1084 = vadd.f32 0.0, %v1083
      %v1085 = vpop.f32.mrb[0].mxu0
      %v1086 = vpop.f32.mrb[0].mxu0
      %v1087 = vadd.f32 0.0, %v1086
      %v1088 = vpop.f32.mrb[0].mxu0
      %1089 = vmatprep.mubr.bf16.mxu0 0
      %1090 = vmatmul.mubr.bf16.gmra.mrb[0].mxu0 %v986
      %v1091 = vpop.f32.mrb[0].mxu0
      %v1092 = vadd.f32 0.0, %v1091
      %v1093 = vpop.f32.mrb[0].mxu0
      %v1094 = vpop.f32.mrb[0].mxu0
      %v1095 = vadd.f32 0.0, %v1094
      %v1096 = vpop.f32.mrb[0].mxu0
      %1097 = vmatprep.mubr.bf16.mxu0 0
      %1098 = vmatmul.mubr.bf16.gmra.mrb[0].mxu0 %v987
      %v1099 = vpop.f32.mrb[0].mxu0
      %v1100 = vadd.f32 0.0, %v1099
      %v1101 = vpop.f32.mrb[0].mxu0
      %v1102 = vpop.f32.mrb[0].mxu0
      %v1103 = vadd.f32 0.0, %v1102
      %v1104 = vpop.f32.mrb[0].mxu0
      %1105 = vmatprep.mubr.bf16.mxu0 0
      %1106 = vmatmul.mubr.bf16.gmra.mrb[0].mxu0 %v988
      %v1107 = vpop.f32.mrb[0].mxu0
      %v1108 = vadd.f32 0.0, %v1107
      %v1109 = vpop.f32.mrb[0].mxu0
      %v1110 = vpop.f32.mrb[0].mxu0
      %v1111 = vadd.f32 0.0, %v1110
      %v1112 = vpop.f32.mrb[0].mxu0
      %1113 = vmatprep.mubr.bf16.mxu0 0
      %1114 = vmatmul.mubr.bf16.gmra.mrb[0].mxu0 %v989
      %v1115 = vpop.f32.mrb[0].mxu0
      %v1116 = vadd.f32 0.0, %v1115
      %v1117 = vpop.f32.mrb[0].mxu0
      %v1118 = vpop.f32.mrb[0].mxu0
      %v1119 = vadd.f32 0.0, %v1118
      %v1120 = vpop.f32.mrb[0].mxu0
      %1121 = vmatprep.mubr.bf16.mxu0 0
      %1122 = vmatmul.mubr.bf16.gmra.mrb[0].mxu0 %v990
      %v1123 = vpop.f32.mrb[0].mxu0
      %v1124 = vadd.f32 0.0, %v1123
      %v1125 = vpop.f32.mrb[0].mxu0
      %v1126 = vpop.f32.mrb[0].mxu0
      %v1127 = vadd.f32 0.0, %v1126
      %v1128 = vpop.f32.mrb[0].mxu0
      %1129 = vmatprep.mubr.bf16.mxu0 0
      %1130 = vmatmul.mubr.bf16.gmra.mrb[0].mxu0 %v991
      %v1131 = vpop.f32.mrb[0].mxu0
      %v1132 = vadd.f32 0.0, %v1131
      %v1133 = vpop.f32.mrb[0].mxu0
      %v1134 = vpop.f32.mrb[0].mxu0
      %v1135 = vadd.f32 0.0, %v1134
      %v1136 = vpop.f32.mrb[0].mxu0
      %1137 = vmatprep.mubr.bf16.mxu0 0
      %1138 = vmatmul.mubr.bf16.gmra.mrb[0].mxu0 %v992
      %v1139 = vpop.f32.mrb[0].mxu0
      %v1140 = vadd.f32 0.0, %v1139
      %v1141 = vpop.f32.mrb[0].mxu0
      %v1142 = vpop.f32.mrb[0].mxu0
      %v1143 = vadd.f32 0.0, %v1142
      %v1144 = vpop.f32.mrb[0].mxu0
      %1145 = vdwg.mxu0
      %v1146 = vadd.f32 %v903, %v1084
      %v1147 = vadd.f32 %v904, %v1087
      %v1148 = vadd.f32 %v905, %v1092
      %v1149 = vadd.f32 %v906, %v1095
      %v1150 = vadd.f32 %v907, %v1100
      %v1151 = vadd.f32 %v908, %v1103
      %v1152 = vadd.f32 %v909, %v1108
      %v1153 = vadd.f32 %v910, %v1111
      %v1154 = vadd.f32 %v911, %v1116
      %v1155 = vadd.f32 %v912, %v1119
      %v1156 = vadd.f32 %v913, %v1124
      %v1157 = vadd.f32 %v914, %v1127
      %v1158 = vadd.f32 %v915, %v1132
      %v1159 = vadd.f32 %v916, %v1135
      %v1160 = vadd.f32 %v917, %v1140
      %v1161 = vadd.f32 %v918, %v1143
      %1162 = vst [vmem:[#allocation2] sm:$0xff] %v1146
      %1163 = vst [vmem:[#allocation2 + $0x8] sm:$0xff] %v1147
      %1164 = vst [vmem:[#allocation2 + $0x10] sm:$0xff] %v1148
      %1165 = vst [vmem:[#allocation2 + $0x18] sm:$0xff] %v1149
      %1166 = vst [vmem:[#allocation2 + $0x20] sm:$0xff] %v1150
      %1167 = vst [vmem:[#allocation2 + $0x28] sm:$0xff] %v1151
      %1168 = vst [vmem:[#allocation2 + $0x30] sm:$0xff] %v1152
      %1169 = vst [vmem:[#allocation2 + $0x38] sm:$0xff] %v1153
      %1170 = vst [vmem:[#allocation2 + $0x40] sm:$0xff] %v1154
      %1171 = vst [vmem:[#allocation2 + $0x48] sm:$0xff] %v1155
      %1172 = vst [vmem:[#allocation2 + $0x50] sm:$0xff] %v1156
      %1173 = vst [vmem:[#allocation2 + $0x58] sm:$0xff] %v1157
      %1174 = vst [vmem:[#allocation2 + $0x60] sm:$0xff] %v1158
      %1175 = vst [vmem:[#allocation2 + $0x68] sm:$0xff] %v1159
      %1176 = vst [vmem:[#allocation2 + $0x70] sm:$0xff] %v1160
      %1177 = vst [vmem:[#allocation2 + $0x78] sm:$0xff] %v1161
      %v1178 = vld [vmem:[%s360] sm:$0xf]
      %v1179 = vld [vmem:[%s360 + $0x4] sm:$0xf]
      %v1180 = vld [vmem:[%s360 + $0x8] sm:$0xf]
      %v1181 = vld [vmem:[%s360 + $0xc] sm:$0xf]
      %v1182 = vld [vmem:[%s360 + $0x10] sm:$0xf]
      %v1183 = vld [vmem:[%s360 + $0x14] sm:$0xf]
      %v1184 = vld [vmem:[%s360 + $0x18] sm:$0xf]
      %v1185 = vld [vmem:[%s360 + $0x1c] sm:$0xf]
      %v1186 = vld [vmem:[%s360 + $0x20] sm:$0xf]
      %v1187 = vld [vmem:[%s360 + $0x24] sm:$0xf]
      %v1188 = vld [vmem:[%s360 + $0x28] sm:$0xf]
      %v1189 = vld [vmem:[%s360 + $0x2c] sm:$0xf]
      %v1190 = vld [vmem:[%s360 + $0x30] sm:$0xf]
      %v1191 = vld [vmem:[%s360 + $0x34] sm:$0xf]
      %v1192 = vld [vmem:[%s360 + $0x38] sm:$0xf]
      %v1193 = vld [vmem:[%s360 + $0x3c] sm:$0xf]
      %s1194 = scalar_lea.vmem %s375, 64
      %v1195 = vld [vmem:[%s1194] sm:$0xf]
      %v1196 = vld [vmem:[%s1194 + $0x4] sm:$0xf]
      %v1197 = vld [vmem:[%s1194 + $0x8] sm:$0xf]
      %v1198 = vld [vmem:[%s1194 + $0xc] sm:$0xf]
      %v1199 = vld [vmem:[%s1194 + $0x10] sm:$0xf]
      %v1200 = vld [vmem:[%s1194 + $0x14] sm:$0xf]
      %v1201 = vld [vmem:[%s1194 + $0x18] sm:$0xf]
      %v1202 = vld [vmem:[%s1194 + $0x1c] sm:$0xf]
      %v1203 = vld [vmem:[%s1194 + $0x20] sm:$0xf]
      %v1204 = vld [vmem:[%s1194 + $0x24] sm:$0xf]
      %v1205 = vld [vmem:[%s1194 + $0x28] sm:$0xf]
      %v1206 = vld [vmem:[%s1194 + $0x2c] sm:$0xf]
      %v1207 = vld [vmem:[%s1194 + $0x30] sm:$0xf]
      %v1208 = vld [vmem:[%s1194 + $0x34] sm:$0xf]
      %v1209 = vld [vmem:[%s1194 + $0x38] sm:$0xf]
      %v1210 = vld [vmem:[%s1194 + $0x3c] sm:$0xf]
      %v1227 = vunpack.c.l.b16 %v1178
      %v1228 = vunpack.c.l.b16 %v1179
      %v1229 = vunpack.c.l.b16 %v1180
      %v1230 = vunpack.c.l.b16 %v1181
      %v1231 = vunpack.c.l.b16 %v1182
      %v1232 = vunpack.c.l.b16 %v1183
      %v1233 = vunpack.c.l.b16 %v1184
      %v1234 = vunpack.c.l.b16 %v1185
      %v1235 = vunpack.c.l.b16 %v1186
      %v1236 = vunpack.c.l.b16 %v1187
      %v1237 = vunpack.c.l.b16 %v1188
      %v1238 = vunpack.c.l.b16 %v1189
      %v1239 = vunpack.c.l.b16 %v1190
      %v1240 = vunpack.c.l.b16 %v1191
      %v1241 = vunpack.c.l.b16 %v1192
      %v1242 = vunpack.c.l.b16 %v1193
      %v1243 = vpack.c.b16 %v1228, %v1227
      %v1244 = vpack.c.b16 %v1230, %v1229
      %v1245 = vpack.c.b16 %v1232, %v1231
      %v1246 = vpack.c.b16 %v1234, %v1233
      %v1247 = vpack.c.b16 %v1236, %v1235
      %v1248 = vpack.c.b16 %v1238, %v1237
      %v1249 = vpack.c.b16 %v1240, %v1239
      %v1250 = vpack.c.b16 %v1242, %v1241
      %v1275 = vunpack.c.l.b16 %v1195
      %v1276 = vunpack.c.l.b16 %v1196
      %v1277 = vunpack.c.l.b16 %v1197
      %v1278 = vunpack.c.l.b16 %v1198
      %v1279 = vunpack.c.l.b16 %v1199
      %v1280 = vunpack.c.l.b16 %v1200
      %v1281 = vunpack.c.l.b16 %v1201
      %v1282 = vunpack.c.l.b16 %v1202
      %v1283 = vunpack.c.l.b16 %v1203
      %v1284 = vunpack.c.l.b16 %v1204
      %v1285 = vunpack.c.l.b16 %v1205
      %v1286 = vunpack.c.l.b16 %v1206
      %v1287 = vunpack.c.l.b16 %v1207
      %v1288 = vunpack.c.l.b16 %v1208
      %v1289 = vunpack.c.l.b16 %v1209
      %v1290 = vunpack.c.l.b16 %v1210
      %v1291 = vpack.c.b16 %v1276, %v1275
      %v1292 = vpack.c.b16 %v1278, %v1277
      %v1293 = vpack.c.b16 %v1280, %v1279
      %v1294 = vpack.c.b16 %v1282, %v1281
      %v1295 = vpack.c.b16 %v1284, %v1283
      %v1296 = vpack.c.b16 %v1286, %v1285
      %v1297 = vpack.c.b16 %v1288, %v1287
      %v1298 = vpack.c.b16 %v1290, %v1289
      %1307 = vmatprep.subr.bf16.mxu0 0
      %1308 = vmatpush1.bf16.msra.mxu0 %v1291
      %1309 = vmatprep.subr.bf16.mxu0 0
      %1310 = vmatpush1.bf16.msra.mxu0 %v1292
      %1311 = vmatprep.subr.bf16.mxu0 0
      %1312 = vmatpush1.bf16.msra.mxu0 %v1293
      %1313 = vmatprep.subr.bf16.mxu0 0
      %1314 = vmatpush1.bf16.msra.mxu0 %v1294
      %1315 = vmatprep.subr.bf16.mxu0 0
      %1316 = vmatpush1.bf16.msra.mxu0 %v1295
      %1317 = vmatprep.subr.bf16.mxu0 0
      %1318 = vmatpush1.bf16.msra.mxu0 %v1296
      %1319 = vmatprep.subr.bf16.mxu0 0
      %1320 = vmatpush1.bf16.msra.mxu0 %v1297
      %1321 = vmatprep.subr.bf16.mxu0 0
      %1322 = vmatpush1.bf16.msra.mxu0 %v1298
      %1323 = vmatprep.subr.bf16.mxu0 0
      %1324 = vmatpush1.bf16.msra.mxu0 0
      %1325 = vmatprep.subr.bf16.mxu0 0
      %1326 = vmatpush1.bf16.msra.mxu0 0
      %1327 = vmatprep.subr.bf16.mxu0 0
      %1328 = vmatpush1.bf16.msra.mxu0 0
      %1329 = vmatprep.subr.bf16.mxu0 0
      %1330 = vmatpush1.bf16.msra.mxu0 0
      %1331 = vmatprep.subr.bf16.mxu0 0
      %1332 = vmatpush1.bf16.msra.mxu0 0
      %1333 = vmatprep.subr.bf16.mxu0 0
      %1334 = vmatpush1.bf16.msra.mxu0 0
      %1335 = vmatprep.subr.bf16.mxu0 0
      %1336 = vmatpush1.bf16.msra.mxu0 0
      %1337 = vmatprep.subr.bf16.mxu0 0
      %1338 = vmatpush1.bf16.msra.mxu0 0
      %1339 = vmatprep.mubr.bf16.mxu0 0
      %1340 = vmatmul.mubr.bf16.gmra.mrb[0].mxu0 %v1243
      %v1341 = vpop.f32.mrb[0].mxu0
      %v1342 = vadd.f32 0.0, %v1341
      %v1343 = vpop.f32.mrb[0].mxu0
      %v1344 = vpop.f32.mrb[0].mxu0
      %v1345 = vadd.f32 0.0, %v1344
      %v1346 = vpop.f32.mrb[0].mxu0
      %1347 = vmatprep.mubr.bf16.mxu0 0
      %1348 = vmatmul.mubr.bf16.gmra.mrb[0].mxu0 %v1244
      %v1349 = vpop.f32.mrb[0].mxu0
      %v1350 = vadd.f32 0.0, %v1349
      %v1351 = vpop.f32.mrb[0].mxu0
      %v1352 = vpop.f32.mrb[0].mxu0
      %v1353 = vadd.f32 0.0, %v1352
      %v1354 = vpop.f32.mrb[0].mxu0
      %1355 = vmatprep.mubr.bf16.mxu0 0
      %1356 = vmatmul.mubr.bf16.gmra.mrb[0].mxu0 %v1245
      %v1357 = vpop.f32.mrb[0].mxu0
      %v1358 = vadd.f32 0.0, %v1357
      %v1359 = vpop.f32.mrb[0].mxu0
      %v1360 = vpop.f32.mrb[0].mxu0
      %v1361 = vadd.f32 0.0, %v1360
      %v1362 = vpop.f32.mrb[0].mxu0
      %1363 = vmatprep.mubr.bf16.mxu0 0
      %1364 = vmatmul.mubr.bf16.gmra.mrb[0].mxu0 %v1246
      %v1365 = vpop.f32.mrb[0].mxu0
      %v1366 = vadd.f32 0.0, %v1365
      %v1367 = vpop.f32.mrb[0].mxu0
      %v1368 = vpop.f32.mrb[0].mxu0
      %v1369 = vadd.f32 0.0, %v1368
      %v1370 = vpop.f32.mrb[0].mxu0
      %1371 = vmatprep.mubr.bf16.mxu0 0
      %1372 = vmatmul.mubr.bf16.gmra.mrb[0].mxu0 %v1247
      %v1373 = vpop.f32.mrb[0].mxu0
      %v1374 = vadd.f32 0.0, %v1373
      %v1375 = vpop.f32.mrb[0].mxu0
      %v1376 = vpop.f32.mrb[0].mxu0
      %v1377 = vadd.f32 0.0, %v1376
      %v1378 = vpop.f32.mrb[0].mxu0
      %1379 = vmatprep.mubr.bf16.mxu0 0
      %1380 = vmatmul.mubr.bf16.gmra.mrb[0].mxu0 %v1248
      %v1381 = vpop.f32.mrb[0].mxu0
      %v1382 = vadd.f32 0.0, %v1381
      %v1383 = vpop.f32.mrb[0].mxu0
      %v1384 = vpop.f32.mrb[0].mxu0
      %v1385 = vadd.f32 0.0, %v1384
      %v1386 = vpop.f32.mrb[0].mxu0
      %1387 = vmatprep.mubr.bf16.mxu0 0
      %1388 = vmatmul.mubr.bf16.gmra.mrb[0].mxu0 %v1249
      %v1389 = vpop.f32.mrb[0].mxu0
      %v1390 = vadd.f32 0.0, %v1389
      %v1391 = vpop.f32.mrb[0].mxu0
      %v1392 = vpop.f32.mrb[0].mxu0
      %v1393 = vadd.f32 0.0, %v1392
      %v1394 = vpop.f32.mrb[0].mxu0
      %1395 = vmatprep.mubr.bf16.mxu0 0
      %1396 = vmatmul.mubr.bf16.gmra.mrb[0].mxu0 %v1250
      %v1397 = vpop.f32.mrb[0].mxu0
      %v1398 = vadd.f32 0.0, %v1397
      %v1399 = vpop.f32.mrb[0].mxu0
      %v1400 = vpop.f32.mrb[0].mxu0
      %v1401 = vadd.f32 0.0, %v1400
      %v1402 = vpop.f32.mrb[0].mxu0
      %1403 = vdwg.mxu0
      %1404 = vst [vmem:[#allocation3] sm:$0xff] %v1342
      %1405 = vst [vmem:[#allocation3 + $0x8] sm:$0xff] %v1345
      %1406 = vst [vmem:[#allocation3 + $0x10] sm:$0xff] %v1350
      %1407 = vst [vmem:[#allocation3 + $0x18] sm:$0xff] %v1353
      %1408 = vst [vmem:[#allocation3 + $0x20] sm:$0xff] %v1358
      %1409 = vst [vmem:[#allocation3 + $0x28] sm:$0xff] %v1361
      %1410 = vst [vmem:[#allocation3 + $0x30] sm:$0xff] %v1366
      %1411 = vst [vmem:[#allocation3 + $0x38] sm:$0xff] %v1369
      %1412 = vst [vmem:[#allocation3 + $0x40] sm:$0xff] %v1374
      %1413 = vst [vmem:[#allocation3 + $0x48] sm:$0xff] %v1377
      %1414 = vst [vmem:[#allocation3 + $0x50] sm:$0xff] %v1382
      %1415 = vst [vmem:[#allocation3 + $0x58] sm:$0xff] %v1385
      %1416 = vst [vmem:[#allocation3 + $0x60] sm:$0xff] %v1390
      %1417 = vst [vmem:[#allocation3 + $0x68] sm:$0xff] %v1393
      %1418 = vst [vmem:[#allocation3 + $0x70] sm:$0xff] %v1398
      %1419 = vst [vmem:[#allocation3 + $0x78] sm:$0xff] %v1401
      %v1420 = vld [vmem:[#allocation3] sm:$0xff]
      %v1421 = vld [vmem:[#allocation3 + $0x8] sm:$0xff]
      %v1422 = vld [vmem:[#allocation3 + $0x10] sm:$0xff]
      %v1423 = vld [vmem:[#allocation3 + $0x18] sm:$0xff]
      %v1424 = vld [vmem:[#allocation3 + $0x20] sm:$0xff]
      %v1425 = vld [vmem:[#allocation3 + $0x28] sm:$0xff]
      %v1426 = vld [vmem:[#allocation3 + $0x30] sm:$0xff]
      %v1427 = vld [vmem:[#allocation3 + $0x38] sm:$0xff]
      %v1428 = vld [vmem:[#allocation3 + $0x40] sm:$0xff]
      %v1429 = vld [vmem:[#allocation3 + $0x48] sm:$0xff]
      %v1430 = vld [vmem:[#allocation3 + $0x50] sm:$0xff]
      %v1431 = vld [vmem:[#allocation3 + $0x58] sm:$0xff]
      %v1432 = vld [vmem:[#allocation3 + $0x60] sm:$0xff]
      %v1433 = vld [vmem:[#allocation3 + $0x68] sm:$0xff]
      %v1434 = vld [vmem:[#allocation3 + $0x70] sm:$0xff]
      %v1435 = vld [vmem:[#allocation3 + $0x78] sm:$0xff]
      %v1436 = vld [vmem:[%s370] sm:$0xf]
      %v1437 = vld [vmem:[%s370 + $0x4] sm:$0xf]
      %v1438 = vld [vmem:[%s370 + $0x8] sm:$0xf]
      %v1439 = vld [vmem:[%s370 + $0xc] sm:$0xf]
      %v1440 = vld [vmem:[%s370 + $0x10] sm:$0xf]
      %v1441 = vld [vmem:[%s370 + $0x14] sm:$0xf]
      %v1442 = vld [vmem:[%s370 + $0x18] sm:$0xf]
      %v1443 = vld [vmem:[%s370 + $0x1c] sm:$0xf]
      %v1444 = vld [vmem:[%s370 + $0x20] sm:$0xf]
      %v1445 = vld [vmem:[%s370 + $0x24] sm:$0xf]
      %v1446 = vld [vmem:[%s370 + $0x28] sm:$0xf]
      %v1447 = vld [vmem:[%s370 + $0x2c] sm:$0xf]
      %v1448 = vld [vmem:[%s370 + $0x30] sm:$0xf]
      %v1449 = vld [vmem:[%s370 + $0x34] sm:$0xf]
      %v1450 = vld [vmem:[%s370 + $0x38] sm:$0xf]
      %v1451 = vld [vmem:[%s370 + $0x3c] sm:$0xf]
      %s1452 = scalar_lea.vmem %s375, 256
      %v1453 = vld [vmem:[%s1452] sm:$0xf]
      %v1454 = vld [vmem:[%s1452 + $0x4] sm:$0xf]
      %v1455 = vld [vmem:[%s1452 + $0x8] sm:$0xf]
      %v1456 = vld [vmem:[%s1452 + $0xc] sm:$0xf]
      %v1457 = vld [vmem:[%s1452 + $0x10] sm:$0xf]
      %v1458 = vld [vmem:[%s1452 + $0x14] sm:$0xf]
      %v1459 = vld [vmem:[%s1452 + $0x18] sm:$0xf]
      %v1460 = vld [vmem:[%s1452 + $0x1c] sm:$0xf]
      %v1461 = vld [vmem:[%s1452 + $0x20] sm:$0xf]
      %v1462 = vld [vmem:[%s1452 + $0x24] sm:$0xf]
      %v1463 = vld [vmem:[%s1452 + $0x28] sm:$0xf]
      %v1464 = vld [vmem:[%s1452 + $0x2c] sm:$0xf]
      %v1465 = vld [vmem:[%s1452 + $0x30] sm:$0xf]
      %v1466 = vld [vmem:[%s1452 + $0x34] sm:$0xf]
      %v1467 = vld [vmem:[%s1452 + $0x38] sm:$0xf]
      %v1468 = vld [vmem:[%s1452 + $0x3c] sm:$0xf]
      %v1485 = vunpack.c.l.b16 %v1436
      %v1486 = vunpack.c.l.b16 %v1437
      %v1487 = vunpack.c.l.b16 %v1438
      %v1488 = vunpack.c.l.b16 %v1439
      %v1489 = vunpack.c.l.b16 %v1440
      %v1490 = vunpack.c.l.b16 %v1441
      %v1491 = vunpack.c.l.b16 %v1442
      %v1492 = vunpack.c.l.b16 %v1443
      %v1493 = vunpack.c.l.b16 %v1444
      %v1494 = vunpack.c.l.b16 %v1445
      %v1495 = vunpack.c.l.b16 %v1446
      %v1496 = vunpack.c.l.b16 %v1447
      %v1497 = vunpack.c.l.b16 %v1448
      %v1498 = vunpack.c.l.b16 %v1449
      %v1499 = vunpack.c.l.b16 %v1450
      %v1500 = vunpack.c.l.b16 %v1451
      %v1501 = vpack.c.b16 %v1486, %v1485
      %v1502 = vpack.c.b16 %v1488, %v1487
      %v1503 = vpack.c.b16 %v1490, %v1489
      %v1504 = vpack.c.b16 %v1492, %v1491
      %v1505 = vpack.c.b16 %v1494, %v1493
      %v1506 = vpack.c.b16 %v1496, %v1495
      %v1507 = vpack.c.b16 %v1498, %v1497
      %v1508 = vpack.c.b16 %v1500, %v1499
      %v1533 = vunpack.c.l.b16 %v1453
      %v1534 = vunpack.c.l.b16 %v1454
      %v1535 = vunpack.c.l.b16 %v1455
      %v1536 = vunpack.c.l.b16 %v1456
      %v1537 = vunpack.c.l.b16 %v1457
      %v1538 = vunpack.c.l.b16 %v1458
      %v1539 = vunpack.c.l.b16 %v1459
      %v1540 = vunpack.c.l.b16 %v1460
      %v1541 = vunpack.c.l.b16 %v1461
      %v1542 = vunpack.c.l.b16 %v1462
      %v1543 = vunpack.c.l.b16 %v1463
      %v1544 = vunpack.c.l.b16 %v1464
      %v1545 = vunpack.c.l.b16 %v1465
      %v1546 = vunpack.c.l.b16 %v1466
      %v1547 = vunpack.c.l.b16 %v1467
      %v1548 = vunpack.c.l.b16 %v1468
      %v1549 = vpack.c.b16 %v1534, %v1533
      %v1550 = vpack.c.b16 %v1536, %v1535
      %v1551 = vpack.c.b16 %v1538, %v1537
      %v1552 = vpack.c.b16 %v1540, %v1539
      %v1553 = vpack.c.b16 %v1542, %v1541
      %v1554 = vpack.c.b16 %v1544, %v1543
      %v1555 = vpack.c.b16 %v1546, %v1545
      %v1556 = vpack.c.b16 %v1548, %v1547
      %1565 = vmatprep.subr.bf16.mxu0 0
      %1566 = vmatpush1.bf16.msra.mxu0 %v1549
      %1567 = vmatprep.subr.bf16.mxu0 0
      %1568 = vmatpush1.bf16.msra.mxu0 %v1550
      %1569 = vmatprep.subr.bf16.mxu0 0
      %1570 = vmatpush1.bf16.msra.mxu0 %v1551
      %1571 = vmatprep.subr.bf16.mxu0 0
      %1572 = vmatpush1.bf16.msra.mxu0 %v1552
      %1573 = vmatprep.subr.bf16.mxu0 0
      %1574 = vmatpush1.bf16.msra.mxu0 %v1553
      %1575 = vmatprep.subr.bf16.mxu0 0
      %1576 = vmatpush1.bf16.msra.mxu0 %v1554
      %1577 = vmatprep.subr.bf16.mxu0 0
      %1578 = vmatpush1.bf16.msra.mxu0 %v1555
      %1579 = vmatprep.subr.bf16.mxu0 0
      %1580 = vmatpush1.bf16.msra.mxu0 %v1556
      %1581 = vmatprep.subr.bf16.mxu0 0
      %1582 = vmatpush1.bf16.msra.mxu0 0
      %1583 = vmatprep.subr.bf16.mxu0 0
      %1584 = vmatpush1.bf16.msra.mxu0 0
      %1585 = vmatprep.subr.bf16.mxu0 0
      %1586 = vmatpush1.bf16.msra.mxu0 0
      %1587 = vmatprep.subr.bf16.mxu0 0
      %1588 = vmatpush1.bf16.msra.mxu0 0
      %1589 = vmatprep.subr.bf16.mxu0 0
      %1590 = vmatpush1.bf16.msra.mxu0 0
      %1591 = vmatprep.subr.bf16.mxu0 0
      %1592 = vmatpush1.bf16.msra.mxu0 0
      %1593 = vmatprep.subr.bf16.mxu0 0
      %1594 = vmatpush1.bf16.msra.mxu0 0
      %1595 = vmatprep.subr.bf16.mxu0 0
      %1596 = vmatpush1.bf16.msra.mxu0 0
      %1597 = vmatprep.mubr.bf16.mxu0 0
      %1598 = vmatmul.mubr.bf16.gmra.mrb[0].mxu0 %v1501
      %v1599 = vpop.f32.mrb[0].mxu0
      %v1600 = vadd.f32 0.0, %v1599
      %v1601 = vpop.f32.mrb[0].mxu0
      %v1602 = vpop.f32.mrb[0].mxu0
      %v1603 = vadd.f32 0.0, %v1602
      %v1604 = vpop.f32.mrb[0].mxu0
      %1605 = vmatprep.mubr.bf16.mxu0 0
      %1606 = vmatmul.mubr.bf16.gmra.mrb[0].mxu0 %v1502
      %v1607 = vpop.f32.mrb[0].mxu0
      %v1608 = vadd.f32 0.0, %v1607
      %v1609 = vpop.f32.mrb[0].mxu0
      %v1610 = vpop.f32.mrb[0].mxu0
      %v1611 = vadd.f32 0.0, %v1610
      %v1612 = vpop.f32.mrb[0].mxu0
      %1613 = vmatprep.mubr.bf16.mxu0 0
      %1614 = vmatmul.mubr.bf16.gmra.mrb[0].mxu0 %v1503
      %v1615 = vpop.f32.mrb[0].mxu0
      %v1616 = vadd.f32 0.0, %v1615
      %v1617 = vpop.f32.mrb[0].mxu0
      %v1618 = vpop.f32.mrb[0].mxu0
      %v1619 = vadd.f32 0.0, %v1618
      %v1620 = vpop.f32.mrb[0].mxu0
      %1621 = vmatprep.mubr.bf16.mxu0 0
      %1622 = vmatmul.mubr.bf16.gmra.mrb[0].mxu0 %v1504
      %v1623 = vpop.f32.mrb[0].mxu0
      %v1624 = vadd.f32 0.0, %v1623
      %v1625 = vpop.f32.mrb[0].mxu0
      %v1626 = vpop.f32.mrb[0].mxu0
      %v1627 = vadd.f32 0.0, %v1626
      %v1628 = vpop.f32.mrb[0].mxu0
      %1629 = vmatprep.mubr.bf16.mxu0 0
      %1630 = vmatmul.mubr.bf16.gmra.mrb[0].mxu0 %v1505
      %v1631 = vpop.f32.mrb[0].mxu0
      %v1632 = vadd.f32 0.0, %v1631
      %v1633 = vpop.f32.mrb[0].mxu0
      %v1634 = vpop.f32.mrb[0].mxu0
      %v1635 = vadd.f32 0.0, %v1634
      %v1636 = vpop.f32.mrb[0].mxu0
      %1637 = vmatprep.mubr.bf16.mxu0 0
      %1638 = vmatmul.mubr.bf16.gmra.mrb[0].mxu0 %v1506
      %v1639 = vpop.f32.mrb[0].mxu0
      %v1640 = vadd.f32 0.0, %v1639
      %v1641 = vpop.f32.mrb[0].mxu0
      %v1642 = vpop.f32.mrb[0].mxu0
      %v1643 = vadd.f32 0.0, %v1642
      %v1644 = vpop.f32.mrb[0].mxu0
      %1645 = vmatprep.mubr.bf16.mxu0 0
      %1646 = vmatmul.mubr.bf16.gmra.mrb[0].mxu0 %v1507
      %v1647 = vpop.f32.mrb[0].mxu0
      %v1648 = vadd.f32 0.0, %v1647
      %v1649 = vpop.f32.mrb[0].mxu0
      %v1650 = vpop.f32.mrb[0].mxu0
      %v1651 = vadd.f32 0.0, %v1650
      %v1652 = vpop.f32.mrb[0].mxu0
      %1653 = vmatprep.mubr.bf16.mxu0 0
      %1654 = vmatmul.mubr.bf16.gmra.mrb[0].mxu0 %v1508
      %v1655 = vpop.f32.mrb[0].mxu0
      %v1656 = vadd.f32 0.0, %v1655
      %v1657 = vpop.f32.mrb[0].mxu0
      %v1658 = vpop.f32.mrb[0].mxu0
      %v1659 = vadd.f32 0.0, %v1658
      %v1660 = vpop.f32.mrb[0].mxu0
      %1661 = vdwg.mxu0
      %v1662 = vadd.f32 %v1420, %v1600
      %v1663 = vadd.f32 %v1421, %v1603
      %v1664 = vadd.f32 %v1422, %v1608
      %v1665 = vadd.f32 %v1423, %v1611
      %v1666 = vadd.f32 %v1424, %v1616
      %v1667 = vadd.f32 %v1425, %v1619
      %v1668 = vadd.f32 %v1426, %v1624
      %v1669 = vadd.f32 %v1427, %v1627
      %v1670 = vadd.f32 %v1428, %v1632
      %v1671 = vadd.f32 %v1429, %v1635
      %v1672 = vadd.f32 %v1430, %v1640
      %v1673 = vadd.f32 %v1431, %v1643
      %v1674 = vadd.f32 %v1432, %v1648
      %v1675 = vadd.f32 %v1433, %v1651
      %v1676 = vadd.f32 %v1434, %v1656
      %v1677 = vadd.f32 %v1435, %v1659
      %1678 = vst [vmem:[#allocation3] sm:$0xff] %v1662
      %1679 = vst [vmem:[#allocation3 + $0x8] sm:$0xff] %v1663
      %1680 = vst [vmem:[#allocation3 + $0x10] sm:$0xff] %v1664
      %1681 = vst [vmem:[#allocation3 + $0x18] sm:$0xff] %v1665
      %1682 = vst [vmem:[#allocation3 + $0x20] sm:$0xff] %v1666
      %1683 = vst [vmem:[#allocation3 + $0x28] sm:$0xff] %v1667
      %1684 = vst [vmem:[#allocation3 + $0x30] sm:$0xff] %v1668
      %1685 = vst [vmem:[#allocation3 + $0x38] sm:$0xff] %v1669
      %1686 = vst [vmem:[#allocation3 + $0x40] sm:$0xff] %v1670
      %1687 = vst [vmem:[#allocation3 + $0x48] sm:$0xff] %v1671
      %1688 = vst [vmem:[#allocation3 + $0x50] sm:$0xff] %v1672
      %1689 = vst [vmem:[#allocation3 + $0x58] sm:$0xff] %v1673
      %1690 = vst [vmem:[#allocation3 + $0x60] sm:$0xff] %v1674
      %1691 = vst [vmem:[#allocation3 + $0x68] sm:$0xff] %v1675
      %1692 = vst [vmem:[#allocation3 + $0x70] sm:$0xff] %v1676
      %1693 = vst [vmem:[#allocation3 + $0x78] sm:$0xff] %v1677
      %v1694 = vld [vmem:[#allocation3] sm:$0xff]
      %v1695 = vld [vmem:[#allocation3 + $0x8] sm:$0xff]
      %v1696 = vld [vmem:[#allocation3 + $0x10] sm:$0xff]
      %v1697 = vld [vmem:[#allocation3 + $0x18] sm:$0xff]
      %v1698 = vld [vmem:[#allocation3 + $0x20] sm:$0xff]
      %v1699 = vld [vmem:[#allocation3 + $0x28] sm:$0xff]
      %v1700 = vld [vmem:[#allocation3 + $0x30] sm:$0xff]
      %v1701 = vld [vmem:[#allocation3 + $0x38] sm:$0xff]
      %v1702 = vld [vmem:[#allocation3 + $0x40] sm:$0xff]
      %v1703 = vld [vmem:[#allocation3 + $0x48] sm:$0xff]
      %v1704 = vld [vmem:[#allocation3 + $0x50] sm:$0xff]
      %v1705 = vld [vmem:[#allocation3 + $0x58] sm:$0xff]
      %v1706 = vld [vmem:[#allocation3 + $0x60] sm:$0xff]
      %v1707 = vld [vmem:[#allocation3 + $0x68] sm:$0xff]
      %v1708 = vld [vmem:[#allocation3 + $0x70] sm:$0xff]
      %v1709 = vld [vmem:[#allocation3 + $0x78] sm:$0xff]
      %s1710 = scalar_lea.vmem %s360, 8
      %v1711 = vld [vmem:[%s1710] sm:$0xf]
      %v1712 = vld [vmem:[%s1710 + $0x4] sm:$0xf]
      %v1713 = vld [vmem:[%s1710 + $0x8] sm:$0xf]
      %v1714 = vld [vmem:[%s1710 + $0xc] sm:$0xf]
      %v1715 = vld [vmem:[%s1710 + $0x10] sm:$0xf]
      %v1716 = vld [vmem:[%s1710 + $0x14] sm:$0xf]
      %v1717 = vld [vmem:[%s1710 + $0x18] sm:$0xf]
      %v1718 = vld [vmem:[%s1710 + $0x1c] sm:$0xf]
      %v1719 = vld [vmem:[%s1710 + $0x20] sm:$0xf]
      %v1720 = vld [vmem:[%s1710 + $0x24] sm:$0xf]
      %v1721 = vld [vmem:[%s1710 + $0x28] sm:$0xf]
      %v1722 = vld [vmem:[%s1710 + $0x2c] sm:$0xf]
      %v1723 = vld [vmem:[%s1710 + $0x30] sm:$0xf]
      %v1724 = vld [vmem:[%s1710 + $0x34] sm:$0xf]
      %v1725 = vld [vmem:[%s1710 + $0x38] sm:$0xf]
      %v1726 = vld [vmem:[%s1710 + $0x3c] sm:$0xf]
      %s1727 = scalar_lea.vmem %s375, 448
      %v1728 = vld [vmem:[%s1727] sm:$0xf]
      %v1729 = vld [vmem:[%s1727 + $0x4] sm:$0xf]
      %v1730 = vld [vmem:[%s1727 + $0x8] sm:$0xf]
      %v1731 = vld [vmem:[%s1727 + $0xc] sm:$0xf]
      %v1732 = vld [vmem:[%s1727 + $0x10] sm:$0xf]
      %v1733 = vld [vmem:[%s1727 + $0x14] sm:$0xf]
      %v1734 = vld [vmem:[%s1727 + $0x18] sm:$0xf]
      %v1735 = vld [vmem:[%s1727 + $0x1c] sm:$0xf]
      %v1736 = vld [vmem:[%s1727 + $0x20] sm:$0xf]
      %v1737 = vld [vmem:[%s1727 + $0x24] sm:$0xf]
      %v1738 = vld [vmem:[%s1727 + $0x28] sm:$0xf]
      %v1739 = vld [vmem:[%s1727 + $0x2c] sm:$0xf]
      %v1740 = vld [vmem:[%s1727 + $0x30] sm:$0xf]
      %v1741 = vld [vmem:[%s1727 + $0x34] sm:$0xf]
      %v1742 = vld [vmem:[%s1727 + $0x38] sm:$0xf]
      %v1743 = vld [vmem:[%s1727 + $0x3c] sm:$0xf]
      %v1760 = vunpack.c.l.b16 %v1711
      %v1761 = vunpack.c.l.b16 %v1712
      %v1762 = vunpack.c.l.b16 %v1713
      %v1763 = vunpack.c.l.b16 %v1714
      %v1764 = vunpack.c.l.b16 %v1715
      %v1765 = vunpack.c.l.b16 %v1716
      %v1766 = vunpack.c.l.b16 %v1717
      %v1767 = vunpack.c.l.b16 %v1718
      %v1768 = vunpack.c.l.b16 %v1719
      %v1769 = vunpack.c.l.b16 %v1720
      %v1770 = vunpack.c.l.b16 %v1721
      %v1771 = vunpack.c.l.b16 %v1722
      %v1772 = vunpack.c.l.b16 %v1723
      %v1773 = vunpack.c.l.b16 %v1724
      %v1774 = vunpack.c.l.b16 %v1725
      %v1775 = vunpack.c.l.b16 %v1726
      %v1776 = vpack.c.b16 %v1761, %v1760
      %v1777 = vpack.c.b16 %v1763, %v1762
      %v1778 = vpack.c.b16 %v1765, %v1764
      %v1779 = vpack.c.b16 %v1767, %v1766
      %v1780 = vpack.c.b16 %v1769, %v1768
      %v1781 = vpack.c.b16 %v1771, %v1770
      %v1782 = vpack.c.b16 %v1773, %v1772
      %v1783 = vpack.c.b16 %v1775, %v1774
      %v1808 = vunpack.c.l.b16 %v1728
      %v1809 = vunpack.c.l.b16 %v1729
      %v1810 = vunpack.c.l.b16 %v1730
      %v1811 = vunpack.c.l.b16 %v1731
      %v1812 = vunpack.c.l.b16 %v1732
      %v1813 = vunpack.c.l.b16 %v1733
      %v1814 = vunpack.c.l.b16 %v1734
      %v1815 = vunpack.c.l.b16 %v1735
      %v1816 = vunpack.c.l.b16 %v1736
      %v1817 = vunpack.c.l.b16 %v1737
      %v1818 = vunpack.c.l.b16 %v1738
      %v1819 = vunpack.c.l.b16 %v1739
      %v1820 = vunpack.c.l.b16 %v1740
      %v1821 = vunpack.c.l.b16 %v1741
      %v1822 = vunpack.c.l.b16 %v1742
      %v1823 = vunpack.c.l.b16 %v1743
      %v1824 = vpack.c.b16 %v1809, %v1808
      %v1825 = vpack.c.b16 %v1811, %v1810
      %v1826 = vpack.c.b16 %v1813, %v1812
      %v1827 = vpack.c.b16 %v1815, %v1814
      %v1828 = vpack.c.b16 %v1817, %v1816
      %v1829 = vpack.c.b16 %v1819, %v1818
      %v1830 = vpack.c.b16 %v1821, %v1820
      %v1831 = vpack.c.b16 %v1823, %v1822
      %1840 = vmatprep.subr.bf16.mxu0 0
      %1841 = vmatpush1.bf16.msra.mxu0 %v1824
      %1842 = vmatprep.subr.bf16.mxu0 0
      %1843 = vmatpush1.bf16.msra.mxu0 %v1825
      %1844 = vmatprep.subr.bf16.mxu0 0
      %1845 = vmatpush1.bf16.msra.mxu0 %v1826
      %1846 = vmatprep.subr.bf16.mxu0 0
      %1847 = vmatpush1.bf16.msra.mxu0 %v1827
      %1848 = vmatprep.subr.bf16.mxu0 0
      %1849 = vmatpush1.bf16.msra.mxu0 %v1828
      %1850 = vmatprep.subr.bf16.mxu0 0
      %1851 = vmatpush1.bf16.msra.mxu0 %v1829
      %1852 = vmatprep.subr.bf16.mxu0 0
      %1853 = vmatpush1.bf16.msra.mxu0 %v1830
      %1854 = vmatprep.subr.bf16.mxu0 0
      %1855 = vmatpush1.bf16.msra.mxu0 %v1831
      %1856 = vmatprep.subr.bf16.mxu0 0
      %1857 = vmatpush1.bf16.msra.mxu0 0
      %1858 = vmatprep.subr.bf16.mxu0 0
      %1859 = vmatpush1.bf16.msra.mxu0 0
      %1860 = vmatprep.subr.bf16.mxu0 0
      %1861 = vmatpush1.bf16.msra.mxu0 0
      %1862 = vmatprep.subr.bf16.mxu0 0
      %1863 = vmatpush1.bf16.msra.mxu0 0
      %1864 = vmatprep.subr.bf16.mxu0 0
      %1865 = vmatpush1.bf16.msra.mxu0 0
      %1866 = vmatprep.subr.bf16.mxu0 0
      %1867 = vmatpush1.bf16.msra.mxu0 0
      %1868 = vmatprep.subr.bf16.mxu0 0
      %1869 = vmatpush1.bf16.msra.mxu0 0
      %1870 = vmatprep.subr.bf16.mxu0 0
      %1871 = vmatpush1.bf16.msra.mxu0 0
      %1872 = vmatprep.mubr.bf16.mxu0 0
      %1873 = vmatmul.mubr.bf16.gmra.mrb[0].mxu0 %v1776
      %v1874 = vpop.f32.mrb[0].mxu0
      %v1875 = vadd.f32 0.0, %v1874
      %v1876 = vpop.f32.mrb[0].mxu0
      %v1877 = vpop.f32.mrb[0].mxu0
      %v1878 = vadd.f32 0.0, %v1877
      %v1879 = vpop.f32.mrb[0].mxu0
      %1880 = vmatprep.mubr.bf16.mxu0 0
      %1881 = vmatmul.mubr.bf16.gmra.mrb[0].mxu0 %v1777
      %v1882 = vpop.f32.mrb[0].mxu0
      %v1883 = vadd.f32 0.0, %v1882
      %v1884 = vpop.f32.mrb[0].mxu0
      %v1885 = vpop.f32.mrb[0].mxu0
      %v1886 = vadd.f32 0.0, %v1885
      %v1887 = vpop.f32.mrb[0].mxu0
      %1888 = vmatprep.mubr.bf16.mxu0 0
      %1889 = vmatmul.mubr.bf16.gmra.mrb[0].mxu0 %v1778
      %v1890 = vpop.f32.mrb[0].mxu0
      %v1891 = vadd.f32 0.0, %v1890
      %v1892 = vpop.f32.mrb[0].mxu0
      %v1893 = vpop.f32.mrb[0].mxu0
      %v1894 = vadd.f32 0.0, %v1893
      %v1895 = vpop.f32.mrb[0].mxu0
      %1896 = vmatprep.mubr.bf16.mxu0 0
      %1897 = vmatmul.mubr.bf16.gmra.mrb[0].mxu0 %v1779
      %v1898 = vpop.f32.mrb[0].mxu0
      %v1899 = vadd.f32 0.0, %v1898
      %v1900 = vpop.f32.mrb[0].mxu0
      %v1901 = vpop.f32.mrb[0].mxu0
      %v1902 = vadd.f32 0.0, %v1901
      %v1903 = vpop.f32.mrb[0].mxu0
      %1904 = vmatprep.mubr.bf16.mxu0 0
      %1905 = vmatmul.mubr.bf16.gmra.mrb[0].mxu0 %v1780
      %v1906 = vpop.f32.mrb[0].mxu0
      %v1907 = vadd.f32 0.0, %v1906
      %v1908 = vpop.f32.mrb[0].mxu0
      %v1909 = vpop.f32.mrb[0].mxu0
      %v1910 = vadd.f32 0.0, %v1909
      %v1911 = vpop.f32.mrb[0].mxu0
      %1912 = vmatprep.mubr.bf16.mxu0 0
      %1913 = vmatmul.mubr.bf16.gmra.mrb[0].mxu0 %v1781
      %v1914 = vpop.f32.mrb[0].mxu0
      %v1915 = vadd.f32 0.0, %v1914
      %v1916 = vpop.f32.mrb[0].mxu0
      %v1917 = vpop.f32.mrb[0].mxu0
      %v1918 = vadd.f32 0.0, %v1917
      %v1919 = vpop.f32.mrb[0].mxu0
      %1920 = vmatprep.mubr.bf16.mxu0 0
      %1921 = vmatmul.mubr.bf16.gmra.mrb[0].mxu0 %v1782
      %v1922 = vpop.f32.mrb[0].mxu0
      %v1923 = vadd.f32 0.0, %v1922
      %v1924 = vpop.f32.mrb[0].mxu0
      %v1925 = vpop.f32.mrb[0].mxu0
      %v1926 = vadd.f32 0.0, %v1925
      %v1927 = vpop.f32.mrb[0].mxu0
      %1928 = vmatprep.mubr.bf16.mxu0 0
      %1929 = vmatmul.mubr.bf16.gmra.mrb[0].mxu0 %v1783
      %v1930 = vpop.f32.mrb[0].mxu0
      %v1931 = vadd.f32 0.0, %v1930
      %v1932 = vpop.f32.mrb[0].mxu0
      %v1933 = vpop.f32.mrb[0].mxu0
      %v1934 = vadd.f32 0.0, %v1933
      %v1935 = vpop.f32.mrb[0].mxu0
      %1936 = vdwg.mxu0
      %v1937 = vadd.f32 %v1694, %v1875
      %v1938 = vadd.f32 %v1695, %v1878
      %v1939 = vadd.f32 %v1696, %v1883
      %v1940 = vadd.f32 %v1697, %v1886
      %v1941 = vadd.f32 %v1698, %v1891
      %v1942 = vadd.f32 %v1699, %v1894
      %v1943 = vadd.f32 %v1700, %v1899
      %v1944 = vadd.f32 %v1701, %v1902
      %v1945 = vadd.f32 %v1702, %v1907
      %v1946 = vadd.f32 %v1703, %v1910
      %v1947 = vadd.f32 %v1704, %v1915
      %v1948 = vadd.f32 %v1705, %v1918
      %v1949 = vadd.f32 %v1706, %v1923
      %v1950 = vadd.f32 %v1707, %v1926
      %v1951 = vadd.f32 %v1708, %v1931
      %v1952 = vadd.f32 %v1709, %v1934
      %1953 = vst [vmem:[#allocation3] sm:$0xff] %v1937
      %1954 = vst [vmem:[#allocation3 + $0x8] sm:$0xff] %v1938
      %1955 = vst [vmem:[#allocation3 + $0x10] sm:$0xff] %v1939
      %1956 = vst [vmem:[#allocation3 + $0x18] sm:$0xff] %v1940
      %1957 = vst [vmem:[#allocation3 + $0x20] sm:$0xff] %v1941
      %1958 = vst [vmem:[#allocation3 + $0x28] sm:$0xff] %v1942
      %1959 = vst [vmem:[#allocation3 + $0x30] sm:$0xff] %v1943
      %1960 = vst [vmem:[#allocation3 + $0x38] sm:$0xff] %v1944
      %1961 = vst [vmem:[#allocation3 + $0x40] sm:$0xff] %v1945
      %1962 = vst [vmem:[#allocation3 + $0x48] sm:$0xff] %v1946
      %1963 = vst [vmem:[#allocation3 + $0x50] sm:$0xff] %v1947
      %1964 = vst [vmem:[#allocation3 + $0x58] sm:$0xff] %v1948
      %1965 = vst [vmem:[#allocation3 + $0x60] sm:$0xff] %v1949
      %1966 = vst [vmem:[#allocation3 + $0x68] sm:$0xff] %v1950
      %1967 = vst [vmem:[#allocation3 + $0x70] sm:$0xff] %v1951
      %1968 = vst [vmem:[#allocation3 + $0x78] sm:$0xff] %v1952
      %v1969 = vld [vmem:[%s355] sm:$0xf]
      %v1970 = vld [vmem:[%s355 + $0x4] sm:$0xf]
      %v1971 = vld [vmem:[%s355 + $0x8] sm:$0xf]
      %v1972 = vld [vmem:[%s355 + $0xc] sm:$0xf]
      %v1973 = vld [vmem:[%s355 + $0x10] sm:$0xf]
      %v1974 = vld [vmem:[%s355 + $0x14] sm:$0xf]
      %v1975 = vld [vmem:[%s355 + $0x18] sm:$0xf]
      %v1976 = vld [vmem:[%s355 + $0x1c] sm:$0xf]
      %v1977 = vld [vmem:[%s355 + $0x20] sm:$0xf]
      %v1978 = vld [vmem:[%s355 + $0x24] sm:$0xf]
      %v1979 = vld [vmem:[%s355 + $0x28] sm:$0xf]
      %v1980 = vld [vmem:[%s355 + $0x2c] sm:$0xf]
      %v1981 = vld [vmem:[%s355 + $0x30] sm:$0xf]
      %v1982 = vld [vmem:[%s355 + $0x34] sm:$0xf]
      %v1983 = vld [vmem:[%s355 + $0x38] sm:$0xf]
      %v1984 = vld [vmem:[%s355 + $0x3c] sm:$0xf]
      %s1985 = scalar_lea.vmem %s375, 128
      %v1986 = vld [vmem:[%s1985] sm:$0xf]
      %v1987 = vld [vmem:[%s1985 + $0x4] sm:$0xf]
      %v1988 = vld [vmem:[%s1985 + $0x8] sm:$0xf]
      %v1989 = vld [vmem:[%s1985 + $0xc] sm:$0xf]
      %v1990 = vld [vmem:[%s1985 + $0x10] sm:$0xf]
      %v1991 = vld [vmem:[%s1985 + $0x14] sm:$0xf]
      %v1992 = vld [vmem:[%s1985 + $0x18] sm:$0xf]
      %v1993 = vld [vmem:[%s1985 + $0x1c] sm:$0xf]
      %v1994 = vld [vmem:[%s1985 + $0x20] sm:$0xf]
      %v1995 = vld [vmem:[%s1985 + $0x24] sm:$0xf]
      %v1996 = vld [vmem:[%s1985 + $0x28] sm:$0xf]
      %v1997 = vld [vmem:[%s1985 + $0x2c] sm:$0xf]
      %v1998 = vld [vmem:[%s1985 + $0x30] sm:$0xf]
      %v1999 = vld [vmem:[%s1985 + $0x34] sm:$0xf]
      %v2000 = vld [vmem:[%s1985 + $0x38] sm:$0xf]
      %v2001 = vld [vmem:[%s1985 + $0x3c] sm:$0xf]
      %v2018 = vunpack.c.l.b16 %v1969
      %v2019 = vunpack.c.l.b16 %v1970
      %v2020 = vunpack.c.l.b16 %v1971
      %v2021 = vunpack.c.l.b16 %v1972
      %v2022 = vunpack.c.l.b16 %v1973
      %v2023 = vunpack.c.l.b16 %v1974
      %v2024 = vunpack.c.l.b16 %v1975
      %v2025 = vunpack.c.l.b16 %v1976
      %v2026 = vunpack.c.l.b16 %v1977
      %v2027 = vunpack.c.l.b16 %v1978
      %v2028 = vunpack.c.l.b16 %v1979
      %v2029 = vunpack.c.l.b16 %v1980
      %v2030 = vunpack.c.l.b16 %v1981
      %v2031 = vunpack.c.l.b16 %v1982
      %v2032 = vunpack.c.l.b16 %v1983
      %v2033 = vunpack.c.l.b16 %v1984
      %v2034 = vpack.c.b16 %v2019, %v2018
      %v2035 = vpack.c.b16 %v2021, %v2020
      %v2036 = vpack.c.b16 %v2023, %v2022
      %v2037 = vpack.c.b16 %v2025, %v2024
      %v2038 = vpack.c.b16 %v2027, %v2026
      %v2039 = vpack.c.b16 %v2029, %v2028
      %v2040 = vpack.c.b16 %v2031, %v2030
      %v2041 = vpack.c.b16 %v2033, %v2032
      %v2066 = vunpack.c.l.b16 %v1986
      %v2067 = vunpack.c.l.b16 %v1987
      %v2068 = vunpack.c.l.b16 %v1988
      %v2069 = vunpack.c.l.b16 %v1989
      %v2070 = vunpack.c.l.b16 %v1990
      %v2071 = vunpack.c.l.b16 %v1991
      %v2072 = vunpack.c.l.b16 %v1992
      %v2073 = vunpack.c.l.b16 %v1993
      %v2074 = vunpack.c.l.b16 %v1994
      %v2075 = vunpack.c.l.b16 %v1995
      %v2076 = vunpack.c.l.b16 %v1996
      %v2077 = vunpack.c.l.b16 %v1997
      %v2078 = vunpack.c.l.b16 %v1998
      %v2079 = vunpack.c.l.b16 %v1999
      %v2080 = vunpack.c.l.b16 %v2000
      %v2081 = vunpack.c.l.b16 %v2001
      %v2082 = vpack.c.b16 %v2067, %v2066
      %v2083 = vpack.c.b16 %v2069, %v2068
      %v2084 = vpack.c.b16 %v2071, %v2070
      %v2085 = vpack.c.b16 %v2073, %v2072
      %v2086 = vpack.c.b16 %v2075, %v2074
      %v2087 = vpack.c.b16 %v2077, %v2076
      %v2088 = vpack.c.b16 %v2079, %v2078
      %v2089 = vpack.c.b16 %v2081, %v2080
      %2098 = vmatprep.subr.bf16.mxu0 0
      %2099 = vmatpush1.bf16.msra.mxu0 %v2082
      %2100 = vmatprep.subr.bf16.mxu0 0
      %2101 = vmatpush1.bf16.msra.mxu0 %v2083
      %2102 = vmatprep.subr.bf16.mxu0 0
      %2103 = vmatpush1.bf16.msra.mxu0 %v2084
      %2104 = vmatprep.subr.bf16.mxu0 0
      %2105 = vmatpush1.bf16.msra.mxu0 %v2085
      %2106 = vmatprep.subr.bf16.mxu0 0
      %2107 = vmatpush1.bf16.msra.mxu0 %v2086
      %2108 = vmatprep.subr.bf16.mxu0 0
      %2109 = vmatpush1.bf16.msra.mxu0 %v2087
      %2110 = vmatprep.subr.bf16.mxu0 0
      %2111 = vmatpush1.bf16.msra.mxu0 %v2088
      %2112 = vmatprep.subr.bf16.mxu0 0
      %2113 = vmatpush1.bf16.msra.mxu0 %v2089
      %2114 = vmatprep.subr.bf16.mxu0 0
      %2115 = vmatpush1.bf16.msra.mxu0 0
      %2116 = vmatprep.subr.bf16.mxu0 0
      %2117 = vmatpush1.bf16.msra.mxu0 0
      %2118 = vmatprep.subr.bf16.mxu0 0
      %2119 = vmatpush1.bf16.msra.mxu0 0
      %2120 = vmatprep.subr.bf16.mxu0 0
      %2121 = vmatpush1.bf16.msra.mxu0 0
      %2122 = vmatprep.subr.bf16.mxu0 0
      %2123 = vmatpush1.bf16.msra.mxu0 0
      %2124 = vmatprep.subr.bf16.mxu0 0
      %2125 = vmatpush1.bf16.msra.mxu0 0
      %2126 = vmatprep.subr.bf16.mxu0 0
      %2127 = vmatpush1.bf16.msra.mxu0 0
      %2128 = vmatprep.subr.bf16.mxu0 0
      %2129 = vmatpush1.bf16.msra.mxu0 0
      %2130 = vmatprep.mubr.bf16.mxu0 0
      %2131 = vmatmul.mubr.bf16.gmra.mrb[0].mxu0 %v2034
      %v2132 = vpop.f32.mrb[0].mxu0
      %v2133 = vadd.f32 0.0, %v2132
      %v2134 = vpop.f32.mrb[0].mxu0
      %v2135 = vpop.f32.mrb[0].mxu0
      %v2136 = vadd.f32 0.0, %v2135
      %v2137 = vpop.f32.mrb[0].mxu0
      %2138 = vmatprep.mubr.bf16.mxu0 0
      %2139 = vmatmul.mubr.bf16.gmra.mrb[0].mxu0 %v2035
      %v2140 = vpop.f32.mrb[0].mxu0
      %v2141 = vadd.f32 0.0, %v2140
      %v2142 = vpop.f32.mrb[0].mxu0
      %v2143 = vpop.f32.mrb[0].mxu0
      %v2144 = vadd.f32 0.0, %v2143
      %v2145 = vpop.f32.mrb[0].mxu0
      %2146 = vmatprep.mubr.bf16.mxu0 0
      %2147 = vmatmul.mubr.bf16.gmra.mrb[0].mxu0 %v2036
      %v2148 = vpop.f32.mrb[0].mxu0
      %v2149 = vadd.f32 0.0, %v2148
      %v2150 = vpop.f32.mrb[0].mxu0
      %v2151 = vpop.f32.mrb[0].mxu0
      %v2152 = vadd.f32 0.0, %v2151
      %v2153 = vpop.f32.mrb[0].mxu0
      %2154 = vmatprep.mubr.bf16.mxu0 0
      %2155 = vmatmul.mubr.bf16.gmra.mrb[0].mxu0 %v2037
      %v2156 = vpop.f32.mrb[0].mxu0
      %v2157 = vadd.f32 0.0, %v2156
      %v2158 = vpop.f32.mrb[0].mxu0
      %v2159 = vpop.f32.mrb[0].mxu0
      %v2160 = vadd.f32 0.0, %v2159
      %v2161 = vpop.f32.mrb[0].mxu0
      %2162 = vmatprep.mubr.bf16.mxu0 0
      %2163 = vmatmul.mubr.bf16.gmra.mrb[0].mxu0 %v2038
      %v2164 = vpop.f32.mrb[0].mxu0
      %v2165 = vadd.f32 0.0, %v2164
      %v2166 = vpop.f32.mrb[0].mxu0
      %v2167 = vpop.f32.mrb[0].mxu0
      %v2168 = vadd.f32 0.0, %v2167
      %v2169 = vpop.f32.mrb[0].mxu0
      %2170 = vmatprep.mubr.bf16.mxu0 0
      %2171 = vmatmul.mubr.bf16.gmra.mrb[0].mxu0 %v2039
      %v2172 = vpop.f32.mrb[0].mxu0
      %v2173 = vadd.f32 0.0, %v2172
      %v2174 = vpop.f32.mrb[0].mxu0
      %v2175 = vpop.f32.mrb[0].mxu0
      %v2176 = vadd.f32 0.0, %v2175
      %v2177 = vpop.f32.mrb[0].mxu0
      %2178 = vmatprep.mubr.bf16.mxu0 0
      %2179 = vmatmul.mubr.bf16.gmra.mrb[0].mxu0 %v2040
      %v2180 = vpop.f32.mrb[0].mxu0
      %v2181 = vadd.f32 0.0, %v2180
      %v2182 = vpop.f32.mrb[0].mxu0
      %v2183 = vpop.f32.mrb[0].mxu0
      %v2184 = vadd.f32 0.0, %v2183
      %v2185 = vpop.f32.mrb[0].mxu0
      %2186 = vmatprep.mubr.bf16.mxu0 0
      %2187 = vmatmul.mubr.bf16.gmra.mrb[0].mxu0 %v2041
      %v2188 = vpop.f32.mrb[0].mxu0
      %v2189 = vadd.f32 0.0, %v2188
      %v2190 = vpop.f32.mrb[0].mxu0
      %v2191 = vpop.f32.mrb[0].mxu0
      %v2192 = vadd.f32 0.0, %v2191
      %v2193 = vpop.f32.mrb[0].mxu0
      %2194 = vdwg.mxu0
      %2195 = vst [vmem:[#allocation4] sm:$0xff] %v2133
      %2196 = vst [vmem:[#allocation4 + $0x8] sm:$0xff] %v2136
      %2197 = vst [vmem:[#allocation4 + $0x10] sm:$0xff] %v2141
      %2198 = vst [vmem:[#allocation4 + $0x18] sm:$0xff] %v2144
      %2199 = vst [vmem:[#allocation4 + $0x20] sm:$0xff] %v2149
      %2200 = vst [vmem:[#allocation4 + $0x28] sm:$0xff] %v2152
      %2201 = vst [vmem:[#allocation4 + $0x30] sm:$0xff] %v2157
      %2202 = vst [vmem:[#allocation4 + $0x38] sm:$0xff] %v2160
      %2203 = vst [vmem:[#allocation4 + $0x40] sm:$0xff] %v2165
      %2204 = vst [vmem:[#allocation4 + $0x48] sm:$0xff] %v2168
      %2205 = vst [vmem:[#allocation4 + $0x50] sm:$0xff] %v2173
      %2206 = vst [vmem:[#allocation4 + $0x58] sm:$0xff] %v2176
      %2207 = vst [vmem:[#allocation4 + $0x60] sm:$0xff] %v2181
      %2208 = vst [vmem:[#allocation4 + $0x68] sm:$0xff] %v2184
      %2209 = vst [vmem:[#allocation4 + $0x70] sm:$0xff] %v2189
      %2210 = vst [vmem:[#allocation4 + $0x78] sm:$0xff] %v2192
      %v2211 = vld [vmem:[#allocation4] sm:$0xff]
      %v2212 = vld [vmem:[#allocation4 + $0x8] sm:$0xff]
      %v2213 = vld [vmem:[#allocation4 + $0x10] sm:$0xff]
      %v2214 = vld [vmem:[#allocation4 + $0x18] sm:$0xff]
      %v2215 = vld [vmem:[#allocation4 + $0x20] sm:$0xff]
      %v2216 = vld [vmem:[#allocation4 + $0x28] sm:$0xff]
      %v2217 = vld [vmem:[#allocation4 + $0x30] sm:$0xff]
      %v2218 = vld [vmem:[#allocation4 + $0x38] sm:$0xff]
      %v2219 = vld [vmem:[#allocation4 + $0x40] sm:$0xff]
      %v2220 = vld [vmem:[#allocation4 + $0x48] sm:$0xff]
      %v2221 = vld [vmem:[#allocation4 + $0x50] sm:$0xff]
      %v2222 = vld [vmem:[#allocation4 + $0x58] sm:$0xff]
      %v2223 = vld [vmem:[#allocation4 + $0x60] sm:$0xff]
      %v2224 = vld [vmem:[#allocation4 + $0x68] sm:$0xff]
      %v2225 = vld [vmem:[#allocation4 + $0x70] sm:$0xff]
      %v2226 = vld [vmem:[#allocation4 + $0x78] sm:$0xff]
      %v2227 = vld [vmem:[%s365] sm:$0xf]
      %v2228 = vld [vmem:[%s365 + $0x4] sm:$0xf]
      %v2229 = vld [vmem:[%s365 + $0x8] sm:$0xf]
      %v2230 = vld [vmem:[%s365 + $0xc] sm:$0xf]
      %v2231 = vld [vmem:[%s365 + $0x10] sm:$0xf]
      %v2232 = vld [vmem:[%s365 + $0x14] sm:$0xf]
      %v2233 = vld [vmem:[%s365 + $0x18] sm:$0xf]
      %v2234 = vld [vmem:[%s365 + $0x1c] sm:$0xf]
      %v2235 = vld [vmem:[%s365 + $0x20] sm:$0xf]
      %v2236 = vld [vmem:[%s365 + $0x24] sm:$0xf]
      %v2237 = vld [vmem:[%s365 + $0x28] sm:$0xf]
      %v2238 = vld [vmem:[%s365 + $0x2c] sm:$0xf]
      %v2239 = vld [vmem:[%s365 + $0x30] sm:$0xf]
      %v2240 = vld [vmem:[%s365 + $0x34] sm:$0xf]
      %v2241 = vld [vmem:[%s365 + $0x38] sm:$0xf]
      %v2242 = vld [vmem:[%s365 + $0x3c] sm:$0xf]
      %s2243 = scalar_lea.vmem %s375, 320
      %v2244 = vld [vmem:[%s2243] sm:$0xf]
      %v2245 = vld [vmem:[%s2243 + $0x4] sm:$0xf]
      %v2246 = vld [vmem:[%s2243 + $0x8] sm:$0xf]
      %v2247 = vld [vmem:[%s2243 + $0xc] sm:$0xf]
      %v2248 = vld [vmem:[%s2243 + $0x10] sm:$0xf]
      %v2249 = vld [vmem:[%s2243 + $0x14] sm:$0xf]
      %v2250 = vld [vmem:[%s2243 + $0x18] sm:$0xf]
      %v2251 = vld [vmem:[%s2243 + $0x1c] sm:$0xf]
      %v2252 = vld [vmem:[%s2243 + $0x20] sm:$0xf]
      %v2253 = vld [vmem:[%s2243 + $0x24] sm:$0xf]
      %v2254 = vld [vmem:[%s2243 + $0x28] sm:$0xf]
      %v2255 = vld [vmem:[%s2243 + $0x2c] sm:$0xf]
      %v2256 = vld [vmem:[%s2243 + $0x30] sm:$0xf]
      %v2257 = vld [vmem:[%s2243 + $0x34] sm:$0xf]
      %v2258 = vld [vmem:[%s2243 + $0x38] sm:$0xf]
      %v2259 = vld [vmem:[%s2243 + $0x3c] sm:$0xf]
      %v2276 = vunpack.c.l.b16 %v2227
      %v2277 = vunpack.c.l.b16 %v2228
      %v2278 = vunpack.c.l.b16 %v2229
      %v2279 = vunpack.c.l.b16 %v2230
      %v2280 = vunpack.c.l.b16 %v2231
      %v2281 = vunpack.c.l.b16 %v2232
      %v2282 = vunpack.c.l.b16 %v2233
      %v2283 = vunpack.c.l.b16 %v2234
      %v2284 = vunpack.c.l.b16 %v2235
      %v2285 = vunpack.c.l.b16 %v2236
      %v2286 = vunpack.c.l.b16 %v2237
      %v2287 = vunpack.c.l.b16 %v2238
      %v2288 = vunpack.c.l.b16 %v2239
      %v2289 = vunpack.c.l.b16 %v2240
      %v2290 = vunpack.c.l.b16 %v2241
      %v2291 = vunpack.c.l.b16 %v2242
      %v2292 = vpack.c.b16 %v2277, %v2276
      %v2293 = vpack.c.b16 %v2279, %v2278
      %v2294 = vpack.c.b16 %v2281, %v2280
      %v2295 = vpack.c.b16 %v2283, %v2282
      %v2296 = vpack.c.b16 %v2285, %v2284
      %v2297 = vpack.c.b16 %v2287, %v2286
      %v2298 = vpack.c.b16 %v2289, %v2288
      %v2299 = vpack.c.b16 %v2291, %v2290
      %v2324 = vunpack.c.l.b16 %v2244
      %v2325 = vunpack.c.l.b16 %v2245
      %v2326 = vunpack.c.l.b16 %v2246
      %v2327 = vunpack.c.l.b16 %v2247
      %v2328 = vunpack.c.l.b16 %v2248
      %v2329 = vunpack.c.l.b16 %v2249
      %v2330 = vunpack.c.l.b16 %v2250
      %v2331 = vunpack.c.l.b16 %v2251
      %v2332 = vunpack.c.l.b16 %v2252
      %v2333 = vunpack.c.l.b16 %v2253
      %v2334 = vunpack.c.l.b16 %v2254
      %v2335 = vunpack.c.l.b16 %v2255
      %v2336 = vunpack.c.l.b16 %v2256
      %v2337 = vunpack.c.l.b16 %v2257
      %v2338 = vunpack.c.l.b16 %v2258
      %v2339 = vunpack.c.l.b16 %v2259
      %v2340 = vpack.c.b16 %v2325, %v2324
      %v2341 = vpack.c.b16 %v2327, %v2326
      %v2342 = vpack.c.b16 %v2329, %v2328
      %v2343 = vpack.c.b16 %v2331, %v2330
      %v2344 = vpack.c.b16 %v2333, %v2332
      %v2345 = vpack.c.b16 %v2335, %v2334
      %v2346 = vpack.c.b16 %v2337, %v2336
      %v2347 = vpack.c.b16 %v2339, %v2338
      %2356 = vmatprep.subr.bf16.mxu0 0
      %2357 = vmatpush1.bf16.msra.mxu0 %v2340
      %2358 = vmatprep.subr.bf16.mxu0 0
      %2359 = vmatpush1.bf16.msra.mxu0 %v2341
      %2360 = vmatprep.subr.bf16.mxu0 0
      %2361 = vmatpush1.bf16.msra.mxu0 %v2342
      %2362 = vmatprep.subr.bf16.mxu0 0
      %2363 = vmatpush1.bf16.msra.mxu0 %v2343
      %2364 = vmatprep.subr.bf16.mxu0 0
      %2365 = vmatpush1.bf16.msra.mxu0 %v2344
      %2366 = vmatprep.subr.bf16.mxu0 0
      %2367 = vmatpush1.bf16.msra.mxu0 %v2345
      %2368 = vmatprep.subr.bf16.mxu0 0
      %2369 = vmatpush1.bf16.msra.mxu0 %v2346
      %2370 = vmatprep.subr.bf16.mxu0 0
      %2371 = vmatpush1.bf16.msra.mxu0 %v2347
      %2372 = vmatprep.subr.bf16.mxu0 0
      %2373 = vmatpush1.bf16.msra.mxu0 0
      %2374 = vmatprep.subr.bf16.mxu0 0
      %2375 = vmatpush1.bf16.msra.mxu0 0
      %2376 = vmatprep.subr.bf16.mxu0 0
      %2377 = vmatpush1.bf16.msra.mxu0 0
      %2378 = vmatprep.subr.bf16.mxu0 0
      %2379 = vmatpush1.bf16.msra.mxu0 0
      %2380 = vmatprep.subr.bf16.mxu0 0
      %2381 = vmatpush1.bf16.msra.mxu0 0
      %2382 = vmatprep.subr.bf16.mxu0 0
      %2383 = vmatpush1.bf16.msra.mxu0 0
      %2384 = vmatprep.subr.bf16.mxu0 0
      %2385 = vmatpush1.bf16.msra.mxu0 0
      %2386 = vmatprep.subr.bf16.mxu0 0
      %2387 = vmatpush1.bf16.msra.mxu0 0
      %2388 = vmatprep.mubr.bf16.mxu0 0
      %2389 = vmatmul.mubr.bf16.gmra.mrb[0].mxu0 %v2292
      %v2390 = vpop.f32.mrb[0].mxu0
      %v2391 = vadd.f32 0.0, %v2390
      %v2392 = vpop.f32.mrb[0].mxu0
      %v2393 = vpop.f32.mrb[0].mxu0
      %v2394 = vadd.f32 0.0, %v2393
      %v2395 = vpop.f32.mrb[0].mxu0
      %2396 = vmatprep.mubr.bf16.mxu0 0
      %2397 = vmatmul.mubr.bf16.gmra.mrb[0].mxu0 %v2293
      %v2398 = vpop.f32.mrb[0].mxu0
      %v2399 = vadd.f32 0.0, %v2398
      %v2400 = vpop.f32.mrb[0].mxu0
      %v2401 = vpop.f32.mrb[0].mxu0
      %v2402 = vadd.f32 0.0, %v2401
      %v2403 = vpop.f32.mrb[0].mxu0
      %2404 = vmatprep.mubr.bf16.mxu0 0
      %2405 = vmatmul.mubr.bf16.gmra.mrb[0].mxu0 %v2294
      %v2406 = vpop.f32.mrb[0].mxu0
      %v2407 = vadd.f32 0.0, %v2406
      %v2408 = vpop.f32.mrb[0].mxu0
      %v2409 = vpop.f32.mrb[0].mxu0
      %v2410 = vadd.f32 0.0, %v2409
      %v2411 = vpop.f32.mrb[0].mxu0
      %2412 = vmatprep.mubr.bf16.mxu0 0
      %2413 = vmatmul.mubr.bf16.gmra.mrb[0].mxu0 %v2295
      %v2414 = vpop.f32.mrb[0].mxu0
      %v2415 = vadd.f32 0.0, %v2414
      %v2416 = vpop.f32.mrb[0].mxu0
      %v2417 = vpop.f32.mrb[0].mxu0
      %v2418 = vadd.f32 0.0, %v2417
      %v2419 = vpop.f32.mrb[0].mxu0
      %2420 = vmatprep.mubr.bf16.mxu0 0
      %2421 = vmatmul.mubr.bf16.gmra.mrb[0].mxu0 %v2296
      %v2422 = vpop.f32.mrb[0].mxu0
      %v2423 = vadd.f32 0.0, %v2422
      %v2424 = vpop.f32.mrb[0].mxu0
      %v2425 = vpop.f32.mrb[0].mxu0
      %v2426 = vadd.f32 0.0, %v2425
      %v2427 = vpop.f32.mrb[0].mxu0
      %2428 = vmatprep.mubr.bf16.mxu0 0
      %2429 = vmatmul.mubr.bf16.gmra.mrb[0].mxu0 %v2297
      %v2430 = vpop.f32.mrb[0].mxu0
      %v2431 = vadd.f32 0.0, %v2430
      %v2432 = vpop.f32.mrb[0].mxu0
      %v2433 = vpop.f32.mrb[0].mxu0
      %v2434 = vadd.f32 0.0, %v2433
      %v2435 = vpop.f32.mrb[0].mxu0
      %2436 = vmatprep.mubr.bf16.mxu0 0
      %2437 = vmatmul.mubr.bf16.gmra.mrb[0].mxu0 %v2298
      %v2438 = vpop.f32.mrb[0].mxu0
      %v2439 = vadd.f32 0.0, %v2438
      %v2440 = vpop.f32.mrb[0].mxu0
      %v2441 = vpop.f32.mrb[0].mxu0
      %v2442 = vadd.f32 0.0, %v2441
      %v2443 = vpop.f32.mrb[0].mxu0
      %2444 = vmatprep.mubr.bf16.mxu0 0
      %2445 = vmatmul.mubr.bf16.gmra.mrb[0].mxu0 %v2299
      %v2446 = vpop.f32.mrb[0].mxu0
      %v2447 = vadd.f32 0.0, %v2446
      %v2448 = vpop.f32.mrb[0].mxu0
      %v2449 = vpop.f32.mrb[0].mxu0
      %v2450 = vadd.f32 0.0, %v2449
      %v2451 = vpop.f32.mrb[0].mxu0
      %2452 = vdwg.mxu0
      %v2453 = vadd.f32 %v2211, %v2391
      %v2454 = vadd.f32 %v2212, %v2394
      %v2455 = vadd.f32 %v2213, %v2399
      %v2456 = vadd.f32 %v2214, %v2402
      %v2457 = vadd.f32 %v2215, %v2407
      %v2458 = vadd.f32 %v2216, %v2410
      %v2459 = vadd.f32 %v2217, %v2415
      %v2460 = vadd.f32 %v2218, %v2418
      %v2461 = vadd.f32 %v2219, %v2423
      %v2462 = vadd.f32 %v2220, %v2426
      %v2463 = vadd.f32 %v2221, %v2431
      %v2464 = vadd.f32 %v2222, %v2434
      %v2465 = vadd.f32 %v2223, %v2439
      %v2466 = vadd.f32 %v2224, %v2442
      %v2467 = vadd.f32 %v2225, %v2447
      %v2468 = vadd.f32 %v2226, %v2450
      %2469 = vst [vmem:[#allocation4] sm:$0xff] %v2453
      %2470 = vst [vmem:[#allocation4 + $0x8] sm:$0xff] %v2454
      %2471 = vst [vmem:[#allocation4 + $0x10] sm:$0xff] %v2455
      %2472 = vst [vmem:[#allocation4 + $0x18] sm:$0xff] %v2456
      %2473 = vst [vmem:[#allocation4 + $0x20] sm:$0xff] %v2457
      %2474 = vst [vmem:[#allocation4 + $0x28] sm:$0xff] %v2458
      %2475 = vst [vmem:[#allocation4 + $0x30] sm:$0xff] %v2459
      %2476 = vst [vmem:[#allocation4 + $0x38] sm:$0xff] %v2460
      %2477 = vst [vmem:[#allocation4 + $0x40] sm:$0xff] %v2461
      %2478 = vst [vmem:[#allocation4 + $0x48] sm:$0xff] %v2462
      %2479 = vst [vmem:[#allocation4 + $0x50] sm:$0xff] %v2463
      %2480 = vst [vmem:[#allocation4 + $0x58] sm:$0xff] %v2464
      %2481 = vst [vmem:[#allocation4 + $0x60] sm:$0xff] %v2465
      %2482 = vst [vmem:[#allocation4 + $0x68] sm:$0xff] %v2466
      %2483 = vst [vmem:[#allocation4 + $0x70] sm:$0xff] %v2467
      %2484 = vst [vmem:[#allocation4 + $0x78] sm:$0xff] %v2468
      %v2485 = vld [vmem:[#allocation4] sm:$0xff]
      %v2486 = vld [vmem:[#allocation4 + $0x8] sm:$0xff]
      %v2487 = vld [vmem:[#allocation4 + $0x10] sm:$0xff]
      %v2488 = vld [vmem:[#allocation4 + $0x18] sm:$0xff]
      %v2489 = vld [vmem:[#allocation4 + $0x20] sm:$0xff]
      %v2490 = vld [vmem:[#allocation4 + $0x28] sm:$0xff]
      %v2491 = vld [vmem:[#allocation4 + $0x30] sm:$0xff]
      %v2492 = vld [vmem:[#allocation4 + $0x38] sm:$0xff]
      %v2493 = vld [vmem:[#allocation4 + $0x40] sm:$0xff]
      %v2494 = vld [vmem:[#allocation4 + $0x48] sm:$0xff]
      %v2495 = vld [vmem:[#allocation4 + $0x50] sm:$0xff]
      %v2496 = vld [vmem:[#allocation4 + $0x58] sm:$0xff]
      %v2497 = vld [vmem:[#allocation4 + $0x60] sm:$0xff]
      %v2498 = vld [vmem:[#allocation4 + $0x68] sm:$0xff]
      %v2499 = vld [vmem:[#allocation4 + $0x70] sm:$0xff]
      %v2500 = vld [vmem:[#allocation4 + $0x78] sm:$0xff]
      %v2501 = vld [vmem:[%s919] sm:$0xf]
      %v2502 = vld [vmem:[%s919 + $0x4] sm:$0xf]
      %v2503 = vld [vmem:[%s919 + $0x8] sm:$0xf]
      %v2504 = vld [vmem:[%s919 + $0xc] sm:$0xf]
      %v2505 = vld [vmem:[%s919 + $0x10] sm:$0xf]
      %v2506 = vld [vmem:[%s919 + $0x14] sm:$0xf]
      %v2507 = vld [vmem:[%s919 + $0x18] sm:$0xf]
      %v2508 = vld [vmem:[%s919 + $0x1c] sm:$0xf]
      %v2509 = vld [vmem:[%s919 + $0x20] sm:$0xf]
      %v2510 = vld [vmem:[%s919 + $0x24] sm:$0xf]
      %v2511 = vld [vmem:[%s919 + $0x28] sm:$0xf]
      %v2512 = vld [vmem:[%s919 + $0x2c] sm:$0xf]
      %v2513 = vld [vmem:[%s919 + $0x30] sm:$0xf]
      %v2514 = vld [vmem:[%s919 + $0x34] sm:$0xf]
      %v2515 = vld [vmem:[%s919 + $0x38] sm:$0xf]
      %v2516 = vld [vmem:[%s919 + $0x3c] sm:$0xf]
      %s2517 = scalar_lea.vmem %s375, 512
      %v2518 = vld [vmem:[%s2517] sm:$0xf]
      %v2519 = vld [vmem:[%s2517 + $0x4] sm:$0xf]
      %v2520 = vld [vmem:[%s2517 + $0x8] sm:$0xf]
      %v2521 = vld [vmem:[%s2517 + $0xc] sm:$0xf]
      %v2522 = vld [vmem:[%s2517 + $0x10] sm:$0xf]
      %v2523 = vld [vmem:[%s2517 + $0x14] sm:$0xf]
      %v2524 = vld [vmem:[%s2517 + $0x18] sm:$0xf]
      %v2525 = vld [vmem:[%s2517 + $0x1c] sm:$0xf]
      %v2526 = vld [vmem:[%s2517 + $0x20] sm:$0xf]
      %v2527 = vld [vmem:[%s2517 + $0x24] sm:$0xf]
      %v2528 = vld [vmem:[%s2517 + $0x28] sm:$0xf]
      %v2529 = vld [vmem:[%s2517 + $0x2c] sm:$0xf]
      %v2530 = vld [vmem:[%s2517 + $0x30] sm:$0xf]
      %v2531 = vld [vmem:[%s2517 + $0x34] sm:$0xf]
      %v2532 = vld [vmem:[%s2517 + $0x38] sm:$0xf]
      %v2533 = vld [vmem:[%s2517 + $0x3c] sm:$0xf]
      %v2550 = vunpack.c.l.b16 %v2501
      %v2551 = vunpack.c.l.b16 %v2502
      %v2552 = vunpack.c.l.b16 %v2503
      %v2553 = vunpack.c.l.b16 %v2504
      %v2554 = vunpack.c.l.b16 %v2505
      %v2555 = vunpack.c.l.b16 %v2506
      %v2556 = vunpack.c.l.b16 %v2507
      %v2557 = vunpack.c.l.b16 %v2508
      %v2558 = vunpack.c.l.b16 %v2509
      %v2559 = vunpack.c.l.b16 %v2510
      %v2560 = vunpack.c.l.b16 %v2511
      %v2561 = vunpack.c.l.b16 %v2512
      %v2562 = vunpack.c.l.b16 %v2513
      %v2563 = vunpack.c.l.b16 %v2514
      %v2564 = vunpack.c.l.b16 %v2515
      %v2565 = vunpack.c.l.b16 %v2516
      %v2566 = vpack.c.b16 %v2551, %v2550
      %v2567 = vpack.c.b16 %v2553, %v2552
      %v2568 = vpack.c.b16 %v2555, %v2554
      %v2569 = vpack.c.b16 %v2557, %v2556
      %v2570 = vpack.c.b16 %v2559, %v2558
      %v2571 = vpack.c.b16 %v2561, %v2560
      %v2572 = vpack.c.b16 %v2563, %v2562
      %v2573 = vpack.c.b16 %v2565, %v2564
      %v2598 = vunpack.c.l.b16 %v2518
      %v2599 = vunpack.c.l.b16 %v2519
      %v2600 = vunpack.c.l.b16 %v2520
      %v2601 = vunpack.c.l.b16 %v2521
      %v2602 = vunpack.c.l.b16 %v2522
      %v2603 = vunpack.c.l.b16 %v2523
      %v2604 = vunpack.c.l.b16 %v2524
      %v2605 = vunpack.c.l.b16 %v2525
      %v2606 = vunpack.c.l.b16 %v2526
      %v2607 = vunpack.c.l.b16 %v2527
      %v2608 = vunpack.c.l.b16 %v2528
      %v2609 = vunpack.c.l.b16 %v2529
      %v2610 = vunpack.c.l.b16 %v2530
      %v2611 = vunpack.c.l.b16 %v2531
      %v2612 = vunpack.c.l.b16 %v2532
      %v2613 = vunpack.c.l.b16 %v2533
      %v2614 = vpack.c.b16 %v2599, %v2598
      %v2615 = vpack.c.b16 %v2601, %v2600
      %v2616 = vpack.c.b16 %v2603, %v2602
      %v2617 = vpack.c.b16 %v2605, %v2604
      %v2618 = vpack.c.b16 %v2607, %v2606
      %v2619 = vpack.c.b16 %v2609, %v2608
      %v2620 = vpack.c.b16 %v2611, %v2610
      %v2621 = vpack.c.b16 %v2613, %v2612
      %2630 = vmatprep.subr.bf16.mxu0 0
      %2631 = vmatpush1.bf16.msra.mxu0 %v2614
      %2632 = vmatprep.subr.bf16.mxu0 0
      %2633 = vmatpush1.bf16.msra.mxu0 %v2615
      %2634 = vmatprep.subr.bf16.mxu0 0
      %2635 = vmatpush1.bf16.msra.mxu0 %v2616
      %2636 = vmatprep.subr.bf16.mxu0 0
      %2637 = vmatpush1.bf16.msra.mxu0 %v2617
      %2638 = vmatprep.subr.bf16.mxu0 0
      %2639 = vmatpush1.bf16.msra.mxu0 %v2618
      %2640 = vmatprep.subr.bf16.mxu0 0
      %2641 = vmatpush1.bf16.msra.mxu0 %v2619
      %2642 = vmatprep.subr.bf16.mxu0 0
      %2643 = vmatpush1.bf16.msra.mxu0 %v2620
      %2644 = vmatprep.subr.bf16.mxu0 0
      %2645 = vmatpush1.bf16.msra.mxu0 %v2621
      %2646 = vmatprep.subr.bf16.mxu0 0
      %2647 = vmatpush1.bf16.msra.mxu0 0
      %2648 = vmatprep.subr.bf16.mxu0 0
      %2649 = vmatpush1.bf16.msra.mxu0 0
      %2650 = vmatprep.subr.bf16.mxu0 0
      %2651 = vmatpush1.bf16.msra.mxu0 0
      %2652 = vmatprep.subr.bf16.mxu0 0
      %2653 = vmatpush1.bf16.msra.mxu0 0
      %2654 = vmatprep.subr.bf16.mxu0 0
      %2655 = vmatpush1.bf16.msra.mxu0 0
      %2656 = vmatprep.subr.bf16.mxu0 0
      %2657 = vmatpush1.bf16.msra.mxu0 0
      %2658 = vmatprep.subr.bf16.mxu0 0
      %2659 = vmatpush1.bf16.msra.mxu0 0
      %2660 = vmatprep.subr.bf16.mxu0 0
      %2661 = vmatpush1.bf16.msra.mxu0 0
      %2662 = vmatprep.mubr.bf16.mxu0 0
      %2663 = vmatmul.mubr.bf16.gmra.mrb[0].mxu0 %v2566
      %v2664 = vpop.f32.mrb[0].mxu0
      %v2665 = vadd.f32 0.0, %v2664
      %v2666 = vpop.f32.mrb[0].mxu0
      %v2667 = vpop.f32.mrb[0].mxu0
      %v2668 = vadd.f32 0.0, %v2667
      %v2669 = vpop.f32.mrb[0].mxu0
      %2670 = vmatprep.mubr.bf16.mxu0 0
      %2671 = vmatmul.mubr.bf16.gmra.mrb[0].mxu0 %v2567
      %v2672 = vpop.f32.mrb[0].mxu0
      %v2673 = vadd.f32 0.0, %v2672
      %v2674 = vpop.f32.mrb[0].mxu0
      %v2675 = vpop.f32.mrb[0].mxu0
      %v2676 = vadd.f32 0.0, %v2675
      %v2677 = vpop.f32.mrb[0].mxu0
      %2678 = vmatprep.mubr.bf16.mxu0 0
      %2679 = vmatmul.mubr.bf16.gmra.mrb[0].mxu0 %v2568
      %v2680 = vpop.f32.mrb[0].mxu0
      %v2681 = vadd.f32 0.0, %v2680
      %v2682 = vpop.f32.mrb[0].mxu0
      %v2683 = vpop.f32.mrb[0].mxu0
      %v2684 = vadd.f32 0.0, %v2683
      %v2685 = vpop.f32.mrb[0].mxu0
      %2686 = vmatprep.mubr.bf16.mxu0 0
      %2687 = vmatmul.mubr.bf16.gmra.mrb[0].mxu0 %v2569
      %v2688 = vpop.f32.mrb[0].mxu0
      %v2689 = vadd.f32 0.0, %v2688
      %v2690 = vpop.f32.mrb[0].mxu0
      %v2691 = vpop.f32.mrb[0].mxu0
      %v2692 = vadd.f32 0.0, %v2691
      %v2693 = vpop.f32.mrb[0].mxu0
      %2694 = vmatprep.mubr.bf16.mxu0 0
      %2695 = vmatmul.mubr.bf16.gmra.mrb[0].mxu0 %v2570
      %v2696 = vpop.f32.mrb[0].mxu0
      %v2697 = vadd.f32 0.0, %v2696
      %v2698 = vpop.f32.mrb[0].mxu0
      %v2699 = vpop.f32.mrb[0].mxu0
      %v2700 = vadd.f32 0.0, %v2699
      %v2701 = vpop.f32.mrb[0].mxu0
      %2702 = vmatprep.mubr.bf16.mxu0 0
      %2703 = vmatmul.mubr.bf16.gmra.mrb[0].mxu0 %v2571
      %v2704 = vpop.f32.mrb[0].mxu0
      %v2705 = vadd.f32 0.0, %v2704
      %v2706 = vpop.f32.mrb[0].mxu0
      %v2707 = vpop.f32.mrb[0].mxu0
      %v2708 = vadd.f32 0.0, %v2707
      %v2709 = vpop.f32.mrb[0].mxu0
      %2710 = vmatprep.mubr.bf16.mxu0 0
      %2711 = vmatmul.mubr.bf16.gmra.mrb[0].mxu0 %v2572
      %v2712 = vpop.f32.mrb[0].mxu0
      %v2713 = vadd.f32 0.0, %v2712
      %v2714 = vpop.f32.mrb[0].mxu0
      %v2715 = vpop.f32.mrb[0].mxu0
      %v2716 = vadd.f32 0.0, %v2715
      %v2717 = vpop.f32.mrb[0].mxu0
      %2718 = vmatprep.mubr.bf16.mxu0 0
      %2719 = vmatmul.mubr.bf16.gmra.mrb[0].mxu0 %v2573
      %v2720 = vpop.f32.mrb[0].mxu0
      %v2721 = vadd.f32 0.0, %v2720
      %v2722 = vpop.f32.mrb[0].mxu0
      %v2723 = vpop.f32.mrb[0].mxu0
      %v2724 = vadd.f32 0.0, %v2723
      %v2725 = vpop.f32.mrb[0].mxu0
      %2726 = vdwg.mxu0
      %v2727 = vadd.f32 %v2485, %v2665
      %v2728 = vadd.f32 %v2486, %v2668
      %v2729 = vadd.f32 %v2487, %v2673
      %v2730 = vadd.f32 %v2488, %v2676
      %v2731 = vadd.f32 %v2489, %v2681
      %v2732 = vadd.f32 %v2490, %v2684
      %v2733 = vadd.f32 %v2491, %v2689
      %v2734 = vadd.f32 %v2492, %v2692
      %v2735 = vadd.f32 %v2493, %v2697
      %v2736 = vadd.f32 %v2494, %v2700
      %v2737 = vadd.f32 %v2495, %v2705
      %v2738 = vadd.f32 %v2496, %v2708
      %v2739 = vadd.f32 %v2497, %v2713
      %v2740 = vadd.f32 %v2498, %v2716
      %v2741 = vadd.f32 %v2499, %v2721
      %v2742 = vadd.f32 %v2500, %v2724
      %2743 = vst [vmem:[#allocation4] sm:$0xff] %v2727
      %2744 = vst [vmem:[#allocation4 + $0x8] sm:$0xff] %v2728
      %2745 = vst [vmem:[#allocation4 + $0x10] sm:$0xff] %v2729
      %2746 = vst [vmem:[#allocation4 + $0x18] sm:$0xff] %v2730
      %2747 = vst [vmem:[#allocation4 + $0x20] sm:$0xff] %v2731
      %2748 = vst [vmem:[#allocation4 + $0x28] sm:$0xff] %v2732
      %2749 = vst [vmem:[#allocation4 + $0x30] sm:$0xff] %v2733
      %2750 = vst [vmem:[#allocation4 + $0x38] sm:$0xff] %v2734
      %2751 = vst [vmem:[#allocation4 + $0x40] sm:$0xff] %v2735
      %2752 = vst [vmem:[#allocation4 + $0x48] sm:$0xff] %v2736
      %2753 = vst [vmem:[#allocation4 + $0x50] sm:$0xff] %v2737
      %2754 = vst [vmem:[#allocation4 + $0x58] sm:$0xff] %v2738
      %2755 = vst [vmem:[#allocation4 + $0x60] sm:$0xff] %v2739
      %2756 = vst [vmem:[#allocation4 + $0x68] sm:$0xff] %v2740
      %2757 = vst [vmem:[#allocation4 + $0x70] sm:$0xff] %v2741
      %2758 = vst [vmem:[#allocation4 + $0x78] sm:$0xff] %v2742
      %v2759 = vld [vmem:[#allocation2] sm:$0xff]
      %v2760 = vld [vmem:[#allocation2 + $0x10] sm:$0xff]
      %v2761 = vld [vmem:[#allocation2 + $0x20] sm:$0xff]
      %v2762 = vld [vmem:[#allocation2 + $0x30] sm:$0xff]
      %v2763 = vld [vmem:[#allocation2 + $0x40] sm:$0xff]
      %v2764 = vld [vmem:[#allocation2 + $0x50] sm:$0xff]
      %v2765 = vld [vmem:[#allocation2 + $0x60] sm:$0xff]
      %v2766 = vld [vmem:[#allocation2 + $0x70] sm:$0xff]
      %v2767 = vld [vmem:[#allocation4 + $0x1] sm:$0xff]
      %v2768 = vld [vmem:[#allocation4 + $0x11] sm:$0xff]
      %v2769 = vld [vmem:[#allocation4 + $0x21] sm:$0xff]
      %v2770 = vld [vmem:[#allocation4 + $0x31] sm:$0xff]
      %v2771 = vld [vmem:[#allocation4 + $0x41] sm:$0xff]
      %v2772 = vld [vmem:[#allocation4 + $0x51] sm:$0xff]
      %v2773 = vld [vmem:[#allocation4 + $0x61] sm:$0xff]
      %v2774 = vld [vmem:[#allocation4 + $0x71] sm:$0xff]
      %v2775 = vadd.f32 %v2759, %v2767
      %v2776 = vadd.f32 %v2760, %v2768
      %v2777 = vadd.f32 %v2761, %v2769
      %v2778 = vadd.f32 %v2762, %v2770
      %v2779 = vadd.f32 %v2763, %v2771
      %v2780 = vadd.f32 %v2764, %v2772
      %v2781 = vadd.f32 %v2765, %v2773
      %v2782 = vadd.f32 %v2766, %v2774
      %v2783 = vld [vmem:[#allocation3] sm:$0xff]
      %v2784 = vld [vmem:[#allocation3 + $0x10] sm:$0xff]
      %v2785 = vld [vmem:[#allocation3 + $0x20] sm:$0xff]
      %v2786 = vld [vmem:[#allocation3 + $0x30] sm:$0xff]
      %v2787 = vld [vmem:[#allocation3 + $0x40] sm:$0xff]
      %v2788 = vld [vmem:[#allocation3 + $0x50] sm:$0xff]
      %v2789 = vld [vmem:[#allocation3 + $0x60] sm:$0xff]
      %v2790 = vld [vmem:[#allocation3 + $0x70] sm:$0xff]
      %v2791 = vadd.f32 %v2775, %v2783
      %v2792 = vadd.f32 %v2776, %v2784
      %v2793 = vadd.f32 %v2777, %v2785
      %v2794 = vadd.f32 %v2778, %v2786
      %v2795 = vadd.f32 %v2779, %v2787
      %v2796 = vadd.f32 %v2780, %v2788
      %v2797 = vadd.f32 %v2781, %v2789
      %v2798 = vadd.f32 %v2782, %v2790
      %v2799 = vadd.f32 %v2791, %v2792
      %v2800 = vadd.f32 %v2799, %v2793
      %v2801 = vadd.f32 %v2800, %v2794
      %v2802 = vadd.f32 %v2801, %v2795
      %v2803 = vadd.f32 %v2802, %v2796
      %v2804 = vadd.f32 %v2803, %v2797
      %v2805 = vadd.f32 %v2804, %v2798
      %v2806 = vrot.slane %v2805, 4
      %v2807 = vadd.f32 %v2805, %v2806
      %v2808 = vrot.slane %v2807, 2
      %v2809 = vadd.f32 %v2807, %v2808
      %v2810 = vrot.slane %v2809, 1
      %v2811 = vadd.f32 %v2809, %v2810
      %v2812 = vmul.f32 %v2791, %v2791
      %v2813 = vmul.f32 %v2792, %v2792
      %v2814 = vmul.f32 %v2793, %v2793
      %v2815 = vmul.f32 %v2794, %v2794
      %v2816 = vmul.f32 %v2795, %v2795
      %v2817 = vmul.f32 %v2796, %v2796
      %v2818 = vmul.f32 %v2797, %v2797
      %v2819 = vmul.f32 %v2798, %v2798
      %v2820 = vadd.f32 %v2812, %v2813
      %v2821 = vadd.f32 %v2820, %v2814
      %v2822 = vadd.f32 %v2821, %v2815
      %v2823 = vadd.f32 %v2822, %v2816
      %v2824 = vadd.f32 %v2823, %v2817
      %v2825 = vadd.f32 %v2824, %v2818
      %v2826 = vadd.f32 %v2825, %v2819
      %v2827 = vrot.slane %v2826, 4
      %v2828 = vadd.f32 %v2826, %v2827
      %v2829 = vrot.slane %v2828, 2
      %v2830 = vadd.f32 %v2828, %v2829
      %v2831 = vrot.slane %v2830, 1
      %v2832 = vadd.f32 %v2830, %v2831
      %v2833 = vmul.f32 %v2811, 0.015625
      %v2834 = vmul.f32 %v2832, 0.015625
      %v2835 = vmul.f32 %v2833, %v2833
      %v2836 = vsub.f32 %v2834, %v2835
      %v2837 = vmax.f32 %v2836, 0.0
      %v2838 = vadd.f32 %v2837, 1e-05
      %v2839 = vrsqrt.pop %v2838
      %v2840 = vld [vmem:[%s378] sm:$0x1]
      %v2841 = vmul.f32 %v2840, %v2839
      %v2842 = vld [vmem:[%s381] sm:$0x1]
      %v2843 = vmul.f32 %v2833, %v2841
      %v2844 = vsub.f32 %v2842, %v2843
      %v2846 = vlaneseq
      %v2847 = vshrl.u32 %v2846, 7
      %v2848 = vsub.s32 0, %v2847
      %v2849 = vrot.slane %v2841, %v2848
      %v2851 = vmul.f32 %v2791, %v2849
      %v2852 = vmul.f32 %v2792, %v2849
      %v2853 = vmul.f32 %v2793, %v2849
      %v2854 = vmul.f32 %v2794, %v2849
      %v2855 = vmul.f32 %v2795, %v2849
      %v2856 = vmul.f32 %v2796, %v2849
      %v2857 = vmul.f32 %v2797, %v2849
      %v2858 = vmul.f32 %v2798, %v2849
      %v2860 = vlaneseq
      %v2861 = vshrl.u32 %v2860, 7
      %v2862 = vsub.s32 0, %v2861
      %v2863 = vrot.slane %v2844, %v2862
      %v2865 = vadd.f32 %v2851, %v2863
      %v2866 = vadd.f32 %v2852, %v2863
      %v2867 = vadd.f32 %v2853, %v2863
      %v2868 = vadd.f32 %v2854, %v2863
      %v2869 = vadd.f32 %v2855, %v2863
      %v2870 = vadd.f32 %v2856, %v2863
      %v2871 = vadd.f32 %v2857, %v2863
      %v2872 = vadd.f32 %v2858, %v2863
      %v2873 = vmax.f32 %v2865, 0.0
      %v2874 = vmax.f32 %v2866, 0.0
      %v2875 = vmax.f32 %v2867, 0.0
      %v2876 = vmax.f32 %v2868, 0.0
      %v2877 = vmax.f32 %v2869, 0.0
      %v2878 = vmax.f32 %v2870, 0.0
      %v2879 = vmax.f32 %v2871, 0.0
      %v2880 = vmax.f32 %v2872, 0.0
      %2881 = vst [vmem:[%s386] sm:$0xff] %v2873
      %2882 = vst [vmem:[%s386 + $0x8] sm:$0xff] %v2874
      %2883 = vst [vmem:[%s386 + $0x10] sm:$0xff] %v2875
      %2884 = vst [vmem:[%s386 + $0x18] sm:$0xff] %v2876
      %2885 = vst [vmem:[%s386 + $0x20] sm:$0xff] %v2877
      %2886 = vst [vmem:[%s386 + $0x28] sm:$0xff] %v2878
      %2887 = vst [vmem:[%s386 + $0x30] sm:$0xff] %v2879
      %2888 = vst [vmem:[%s386 + $0x38] sm:$0xff] %v2880
      %p2889 = scmp.lt.s32.totalorder %s18, 3
      %s2890 = scalar_select %p2889, %s18, 3
      %s2891 = smul.addr %s2890, 8
      %s2892 = smul.addr %s2891, 8
      %s2893 = scalar_lea.vmem %s7, %s2892
      // Predicated region
      $region49: #{relu_conv_bn_relu.1} parent=47 // pred_check
        %p2894 = pneg %p218
      $region50: #{relu_conv_bn_relu.1} parent=47 // pred_check_branch
        %2896 = sbr.rel (%p2894) target = $region52
      $region51: #{relu_conv_bn_relu.1} parent=47 // pred_region
        _
      $region52: #{relu_conv_bn_relu.1} parent=47 // pred_fallthru
        _
    $region48: #{relu_conv_bn_relu.1} parent=5 // pred_fallthru
      _
    %p2897 = scmp.le.s32.totalorder 2, %s13
    // Predicated region
    $region53: #{relu_conv_bn_relu.1} parent=5 // pred_check
      %p2898 = pneg %p2897
    $region54: #{relu_conv_bn_relu.1} parent=5 // pred_check_branch
      %2900 = sbr.rel (%p2898) target = $region56
    $region55: #{relu_conv_bn_relu.1} parent=5 // pred_region
      %s2901 = ssub.s32 %s13, 2
      // Predicated region
      $region57: #{relu_conv_bn_relu.1} parent=55 // pred_check
        %p2902 = pneg %p224
      $region58: #{relu_conv_bn_relu.1} parent=55 // pred_check_branch
        %2904 = sbr.rel (%p2902) target = $region60
      $region59: #{relu_conv_bn_relu.1} parent=55 // pred_region
        %p2905 = scmp.lt.s32.totalorder %s19, 3
        %s2906 = scalar_select %p2905, %s19, 3
        %s2907 = smul.addr %s2906, 8
        %s2908 = smul.addr %s2907, 8
        %s2909 = scalar_lea.vmem %s7, %s2908
      $region60: #{relu_conv_bn_relu.1} parent=55 // pred_fallthru
        _
    $region56: #{relu_conv_bn_relu.1} parent=5 // pred_fallthru
      _
  $region6: #{relu_conv_bn_relu.1} parent=0 // loop_footer
    %s17 = sadd.s32 1, %s13
  $region7: #{relu_conv_bn_relu.1} parent=0 // loop_footer_branch
    %12 = sbr.rel target = $region3
  $region8: #{relu_conv_bn_relu.1} parent=0 // loop_exit
    _

</llo_original>
